<compile_context>
chip_gen: v6e
topology: v6e:2x2x1
jax: 0.10.0
libtpu: 0.0.40
codegen_flags: <defaults>
</compile_context>

<pallas_src>
import jax
import jax.numpy as jnp
import numpy as np
from jax import lax
from jax.experimental import pallas as pl
from jax.experimental.pallas import tpu as pltpu


def _sigmoid(v):
    return 1.0 / (1.0 + jnp.exp(-v))


def _sigmoid_via_tanh(v):
    # exact sigmoid, no divide: sigmoid(v) = 0.5 * (1 + tanh(v/2))  (tanh -> EUP)
    return 0.5 * (jnp.tanh(0.5 * v) + 1.0)


def _make_grcu_kernel(nheads, f_head, dim, alpha, concat, tb, n_nodes):
    """Build the per-layer kernel (one grid step == `tb` timesteps)."""
    nd = n_nodes * dim

    def kernel(a_ref, x_ref, gw_ref, asrc_ref, adst_ref, qinit_ref,
               spread_ref, nmask_ref, rhs_ref, uhbd_ref, bias_ref,
               out_ref, q_scr):
        @pl.when(pl.program_id(0) == 0)
        def _():
            q_scr[...] = qinit_ref[...]

        gw = gw_ref[...]          # (F_in, H*Fh)   fused head projection
        asrc = asrc_ref[...]      # (H*Fh, H)      block-diag a_src columns
        adst = adst_ref[...]      # (H, H*Fh)      block-diag a_dst rows
        spread = spread_ref[...]  # (Dim, N*Dim)   eye(Dim) tiled N times
        nmask = nmask_ref[...]    # (N, N*Dim)     node-block mask
        rhs_big = rhs_ref[...]    # (2*N*Dim, 3*N*Dim) block-diag [Wz Wr Wh; Uz Ur 0]
        uh_bd = uhbd_ref[...]     # (N*Dim, N*Dim)     block-diag Uh
        bias = bias_ref[...]      # (1, 3*N*Dim)       [bz | br | bh]

        q_flat = q_scr[...]       # (1, N*Dim) lane-dense hidden state

        for t in range(tb):                         # static unroll over the time block
            adj = a_ref[t]                          # (N, N)
            x = x_ref[t]                            # (N, F_in)

            # ---- fused multi-head GAT ----
            wh_all = jnp.dot(x, gw, preferred_element_type=jnp.float32)        # (N, H*Fh)
            f_src = jnp.dot(wh_all, asrc, preferred_element_type=jnp.float32)  # (N, H)
            f_dst = lax.dot_general(adst, wh_all,
                                    dimension_numbers=(((1,), (1,)), ((), ())),
                                    preferred_element_type=jnp.float32)        # (H, N)

            heads = []
            acc = None
            for h in range(nheads):                 # static; only softmax + 1 small dot
                e = f_src[:, h:h + 1] + f_dst[h:h + 1, :]                      # (N, N)
                e = jnp.where(e > 0, e, alpha * e)                             # LeakyReLU
                e = jnp.where(adj > 0, e, jnp.float32(-9e15))
                m = jnp.max(e, axis=-1, keepdims=True)
                p = jnp.exp(e - m)
                attn = p * pl.reciprocal(jnp.sum(p, axis=-1, keepdims=True),
                                         approx=True)
                h_out = jnp.dot(attn, wh_all[:, h * f_head:(h + 1) * f_head],
                                preferred_element_type=jnp.float32)            # (N, Fh)
                if concat:
                    heads.append(h_out)
                else:
                    acc = h_out if acc is None else acc + h_out

            if concat:
                z = jnp.concatenate(heads, axis=-1)                            # (N, Dim)
                # ELU once on the full slab; untaken exp branch may overflow to +inf
                # but is selected away by where (benign in f32).
                z = jnp.where(z > 0, z, jnp.exp(z) - 1.0)
            else:
                z = acc * jnp.float32(1.0 / nheads)                            # (N, Dim)

            # ---- flatten (N, Dim) -> (1, N*Dim) without a sublane->lane reshape ----
            z_flat = jnp.sum(
                jnp.dot(z, spread, preferred_element_type=jnp.float32) * nmask,
                axis=0, keepdims=True)                                         # (1, N*Dim)

            # ---- batched per-node matrix GRU (block-diagonal weights) ----
            lhs = jnp.concatenate([z_flat, q_flat], axis=1)                    # (1, 2*N*Dim)
            res = jnp.dot(lhs, rhs_big, preferred_element_type=jnp.float32) + bias
            upd = _sigmoid_via_tanh(res[:, 0:nd])
            rst = _sigmoid_via_tanh(res[:, nd:2 * nd])
            hcap = jnp.tanh(res[:, 2 * nd:3 * nd]
                            + jnp.dot(rst * q_flat, uh_bd,
                                      preferred_element_type=jnp.float32))
            q_flat = (1.0 - upd) * q_flat + upd * hcap                         # (1, N*Dim)

            out_ref[pl.ds(t, 1), :] = q_flat                                   # lane-dense store

        q_scr[...] = q_flat

    return kernel


def _block_diag_T(W):
    """(N, D, D) per-node matrices -> (N*D, N*D) block-diagonal with blocks W[n].T.

    Row-vector convention: (x_flat @ bd)[0, n*D + j] == (W[n] @ x_n)[j]."""
    n, d, _ = W.shape
    eye = jnp.eye(n, dtype=W.dtype)
    wt = jnp.transpose(W, (0, 2, 1))
    bd = eye[:, None, :, None] * wt[:, :, None, :]          # (N, D, N, D)
    return bd.reshape(n * d, n * d)


def _const_spec(shape):
    ndim = len(shape)
    return pl.BlockSpec(shape, lambda t, _n=ndim: (0,) * _n)


def grcu_layer(A, X, params, *, alpha, nheads, concat, time_block=8):
    """One GRCU layer over the whole time sequence. Returns (T, N, Dim)."""
    T, N, _ = A.shape
    f_in = X.shape[-1]
    gat_W = params["gat_W"]                                   # (H, F_in, Fh)
    H, _, f_head = gat_W.shape
    dim = params["q_init"].shape[-1]
    nd = N * dim

    # ---- host-side packing of time-invariant operands ----
    gw_fused = jnp.transpose(gat_W, (1, 0, 2)).reshape(f_in, H * f_head)
    asrc_cols = (params["a_src"][:, :, None]
                 * jnp.eye(H, dtype=jnp.float32)[:, None, :]).reshape(H * f_head, H)
    adst_rows = (jnp.eye(H, dtype=jnp.float32)[:, :, None]
                 * params["a_dst"][:, None, :]).reshape(H, H * f_head)

    spread = jnp.tile(jnp.eye(dim, dtype=jnp.float32), (1, N))        # (Dim, N*Dim)
    nmask = jnp.repeat(jnp.eye(N, dtype=jnp.float32), dim, axis=1)    # (N, N*Dim)

    wz_bd = _block_diag_T(params["Wz"])
    wr_bd = _block_diag_T(params["Wr"])
    wh_bd = _block_diag_T(params["Wh"])
    uz_bd = _block_diag_T(params["Uz"])
    ur_bd = _block_diag_T(params["Ur"])
    uh_bd = _block_diag_T(params["Uh"])
    rhs_big = jnp.concatenate(
        [jnp.concatenate([wz_bd, wr_bd, wh_bd], axis=1),
         jnp.concatenate([uz_bd, ur_bd, jnp.zeros_like(uz_bd)], axis=1)], axis=0)
    bias_cat = jnp.concatenate([params["bz"].reshape(1, nd),
                                params["br"].reshape(1, nd),
                                params["bh"].reshape(1, nd)], axis=1)  # (1, 3*N*Dim)
    q_init_flat = params["q_init"].reshape(1, nd)

    # ---- time blocking: TB timesteps per grid step ----
    tb = min(T, time_block)
    n_blocks = -(-T // tb)
    t_pad = n_blocks * tb
    if t_pad != T:
        # zero padding is numerically safe (fully-masked softmax -> uniform, finite);
        # padded rows are sliced off below and never feed valid timesteps.
        A = jnp.pad(A, ((0, t_pad - T), (0, 0), (0, 0)))
        X = jnp.pad(X, ((0, t_pad - T), (0, 0), (0, 0)))

    kernel = _make_grcu_kernel(H, f_head, dim, float(alpha), bool(concat), tb, N)

    in_specs = [
        pl.BlockSpec((tb, N, N), lambda t: (t, 0, 0)),        # A block
        pl.BlockSpec((tb, N, f_in), lambda t: (t, 0, 0)),     # X block
        _const_spec((f_in, H * f_head)),                      # fused GAT W
        _const_spec((H * f_head, H)),                         # a_src columns
        _const_spec((H, H * f_head)),                         # a_dst rows
        _const_spec((1, nd)),                                 # q_init (flat)
        _const_spec((dim, nd)),                               # spread
        _const_spec((N, nd)),                                 # node mask
        _const_spec((2 * nd, 3 * nd)),                        # [Wz Wr Wh; Uz Ur 0]
        _const_spec((nd, nd)),                                # Uh block-diag
        _const_spec((1, 3 * nd)),                             # [bz | br | bh]
    ]

    grid_spec = pltpu.PrefetchScalarGridSpec(
        num_scalar_prefetch=0,
        grid=(n_blocks,),
        in_specs=in_specs,
        out_specs=pl.BlockSpec((tb, nd), lambda t: (t, 0)),   # lane-dense output
        scratch_shapes=[pltpu.VMEM((1, nd), jnp.float32)],
    )

    out_flat = pl.pallas_call(
        kernel,
        out_shape=jax.ShapeDtypeStruct((t_pad, nd), jnp.float32),
        grid_spec=grid_spec,
        compiler_params=pltpu.CompilerParams(dimension_semantics=("arbitrary",)),
    )(A, X, gw_fused, asrc_cols, adst_rows, q_init_flat,
      spread, nmask, rhs_big, uh_bd, bias_cat)

    return out_flat[:T].reshape(T, N, dim)


def dglr_forward(A, X, params_l1, params_l2, *, alpha, nheads):
    """DGLR: layer 1 (concat=True) -> layer 2 (concat=False) -> cat over time."""
    seq1 = grcu_layer(A, X, params_l1, alpha=alpha, nheads=nheads, concat=True)
    seq2 = grcu_layer(A, seq1, params_l2, alpha=alpha, nheads=nheads, concat=False)
    T, N, D = seq2.shape
    return seq2.reshape(T * N, D)   # torch.cat(out_seq, dim=0)


# ---------------- pure-JAX reference (same math, no Pallas) ----------------
def grcu_reference(A, X, params, *, alpha, nheads, concat):
    q = params["q_init"]
    outs = []
    for t in range(A.shape[0]):
        adj, x = A[t], X[t]
        heads, acc = [], None
        for h in range(nheads):
            whm = x @ params["gat_W"][h]
            f_src = (whm * params["a_src"][h]).sum(-1, keepdims=True)
            f_dst = (whm * params["a_dst"][h]).sum(-1, keepdims=True)
            e = f_src + f_dst.T
            e = jnp.where(e > 0, e, alpha * e)
            e = jnp.where(adj > 0, e, -9e15)
            m = jnp.max(e, axis=-1, keepdims=True)
            p = jnp.exp(e - m)
            attn = p / jnp.sum(p, axis=-1, keepdims=True)
            ho = attn @ whm
            if concat:
                heads.append(jnp.where(ho > 0, ho, jnp.exp(ho) - 1.0))
            else:
                acc = ho if acc is None else acc + ho
        z = jnp.concatenate(heads, -1) if concat else acc / float(nheads)

        def gate(W, U, b, xg, hg, act):
            return act(jnp.einsum('nij,nj->ni', W, xg)
                       + jnp.einsum('nij,nj->ni', U, hg) + b)

        upd = gate(params["Wz"], params["Uz"], params["bz"], z, q, _sigmoid)
        rst = gate(params["Wr"], params["Ur"], params["br"], z, q, _sigmoid)
        hc = gate(params["Wh"], params["Uh"], params["bh"], z, rst * q, jnp.tanh)
        q = (1.0 - upd) * q + upd * hc
        outs.append(q)
    return jnp.stack(outs, 0)


def dglr_reference(A, X, p1, p2, *, alpha, nheads):
    s1 = grcu_reference(A, X, p1, alpha=alpha, nheads=nheads, concat=True)
    s2 = grcu_reference(A, s1, p2, alpha=alpha, nheads=nheads, concat=False)
    T, N, D = s2.shape
    return s2.reshape(T * N, D)


# ---------------- deterministic parameter init ----------------
def _normal(key, shape, std):
    return (std * jax.random.normal(key, shape)).astype(jnp.float32)


def init_grcu_params(key, nodes, f_in, f_head, dim, nheads):
    ks = jax.random.split(key, 10)
    xav2 = lambda k, s: _normal(k, s, float(np.sqrt(2.0 / (s[-2] + s[-1]))))
    a_std = float(np.sqrt(2.0 / (2 * f_head + 1)))
    return {
        "gat_W": xav2(ks[0], (nheads, f_in, f_head)),
        "a_src": _normal(ks[1], (nheads, f_head), a_std),
        "a_dst": _normal(ks[2], (nheads, f_head), a_std),
        "q_init": xav2(ks[3], (nodes, dim)),           # GAT_init_features
        "Wz": xav2(ks[4], (nodes, dim, dim)),
        "Uz": xav2(ks[5], (nodes, dim, dim)),
        "bz": jnp.zeros((nodes, dim), jnp.float32),
        "Wr": xav2(ks[6], (nodes, dim, dim)),
        "Ur": xav2(ks[7], (nodes, dim, dim)),
        "br": jnp.zeros((nodes, dim), jnp.float32),
        "Wh": xav2(ks[8], (nodes, dim, dim)),
        "Uh": xav2(ks[9], (nodes, dim, dim)),
        "bh": jnp.zeros((nodes, dim), jnp.float32),
    }


if __name__ == "__main__":
    # DGLR(nodes, infeat, outfeat, hiddenfeat, device, alpha, nheads)
    nodes, infeat, outfeat, hiddenfeat = 8, 4, 4, 8
    alpha, nheads, T = 0.2, 2, 3

    key = jax.random.PRNGKey(0)
    k_a, k_x, k_p1, k_p2 = jax.random.split(key, 4)

    # adjacency with self-loops, (T, N, N)
    A = (jax.random.uniform(k_a, (T, nodes, nodes)) > 0.5).astype(jnp.float32)
    A = jnp.clip(A + jnp.eye(nodes, dtype=jnp.float32)[None], 0.0, 1.0)
    # node feature sequence, (T, N, infeat)
    X = jax.random.normal(k_x, (T, nodes, infeat), dtype=jnp.float32)

    # layer 1: GRCU(nodes, infeat, hiddenfeat, hiddenfeat*nheads), concat=True
    p1 = init_grcu_params(k_p1, nodes, infeat, hiddenfeat, hiddenfeat * nheads, nheads)
    # layer 2: GRCU(nodes, hiddenfeat*nheads, outfeat, outfeat), concat=False
    p2 = init_grcu_params(k_p2, nodes, hiddenfeat * nheads, outfeat, outfeat, nheads)

    out = dglr_forward(A, X, p1, p2, alpha=alpha, nheads=nheads)
    out = jax.block_until_ready(out)

    ref = jax.block_until_ready(dglr_reference(A, X, p1, p2, alpha=alpha, nheads=nheads))

    assert out.shape == (T * nodes, outfeat), out.shape
    assert np.allclose(np.asarray(out), np.asarray(ref), rtol=5e-2, atol=5e-2), (
        "Pallas kernel result diverges from pure-JAX reference")

    print("KERNEL_OK")
</pallas_src>

<mosaic_0001>
module attributes {stable_mosaic.version = 11 : i64} {
  func.func @kernel(%arg0: i32, %arg1: memref<3x8x8xf32, #tpu.memory_space<vmem>>, %arg2: memref<3x8x4xf32, #tpu.memory_space<vmem>>, %arg3: memref<4x16xf32, #tpu.memory_space<vmem>>, %arg4: memref<16x2xf32, #tpu.memory_space<vmem>>, %arg5: memref<2x16xf32, #tpu.memory_space<vmem>>, %arg6: memref<1x128xf32, #tpu.memory_space<vmem>>, %arg7: memref<16x128xf32, #tpu.memory_space<vmem>>, %arg8: memref<8x128xf32, #tpu.memory_space<vmem>>, %arg9: memref<256x384xf32, #tpu.memory_space<vmem>>, %arg10: memref<128x128xf32, #tpu.memory_space<vmem>>, %arg11: memref<1x384xf32, #tpu.memory_space<vmem>>, %arg12: memref<3x128xf32, #tpu.memory_space<vmem>>, %arg13: memref<1x128xf32, #tpu.memory_space<vmem>>) attributes {dimension_semantics = [#tpu.dimension_semantics<arbitrary>], iteration_bounds = array<i64: 1>, scalar_prefetch = 0 : i64, scratch_operands = 1 : i64, tpu.core_type = #tpu.core_type<tc>, window_params = [{transform_indices = @transform_0, window_bounds = array<i64: 3, 8, 8>}, {transform_indices = @transform_1, window_bounds = array<i64: 3, 8, 4>}, {pipeline_mode = #tpu.pipeline_mode<synchronous>, transform_indices = @transform_2, window_bounds = array<i64: 4, 16>}, {pipeline_mode = #tpu.pipeline_mode<synchronous>, transform_indices = @transform_3, window_bounds = array<i64: 16, 2>}, {pipeline_mode = #tpu.pipeline_mode<synchronous>, transform_indices = @transform_4, window_bounds = array<i64: 2, 16>}, {pipeline_mode = #tpu.pipeline_mode<synchronous>, transform_indices = @transform_5, window_bounds = array<i64: 1, 128>}, {pipeline_mode = #tpu.pipeline_mode<synchronous>, transform_indices = @transform_6, window_bounds = array<i64: 16, 128>}, {pipeline_mode = #tpu.pipeline_mode<synchronous>, transform_indices = @transform_7, window_bounds = array<i64: 8, 128>}, {pipeline_mode = #tpu.pipeline_mode<synchronous>, transform_indices = @transform_8, window_bounds = array<i64: 256, 384>}, {pipeline_mode = #tpu.pipeline_mode<synchronous>, transform_indices = @transform_9, window_bounds = array<i64: 128, 128>}, {pipeline_mode = #tpu.pipeline_mode<synchronous>, transform_indices = @transform_10, window_bounds = array<i64: 1, 384>}, {transform_indices = @transform_11, window_bounds = array<i64: 3, 128>}]} {
    %c0_i32 = arith.constant 0 : i32
    %0 = arith.cmpi eq, %arg0, %c0_i32 : i32
    %1 = arith.extui %0 : i1 to i32
    %c0_i32_0 = arith.constant 0 : i32
    %2 = arith.cmpi ne, %1, %c0_i32_0 : i32
    scf.if %2 {
      %c0_131 = arith.constant 0 : index
      %c0_132 = arith.constant 0 : index
      %313 = vector.load %arg6[%c0_131, %c0_132] : memref<1x128xf32, #tpu.memory_space<vmem>>, vector<1x128xf32>
      %c0_133 = arith.constant 0 : index
      %c0_134 = arith.constant 0 : index
      %314 = vector.load %arg13[%c0_133, %c0_134] : memref<1x128xf32, #tpu.memory_space<vmem>>, vector<1x128xf32>
      tpu.vector_store %arg13[%c0_133, %c0_134], %313 {strides = array<i32>} : memref<1x128xf32, #tpu.memory_space<vmem>>, vector<1x128xf32>,
    } else {
    }
    %c0 = arith.constant 0 : index
    %c0_1 = arith.constant 0 : index
    %3 = vector.load %arg3[%c0, %c0_1] : memref<4x16xf32, #tpu.memory_space<vmem>>, vector<4x16xf32>
    %c0_2 = arith.constant 0 : index
    %c0_3 = arith.constant 0 : index
    %4 = vector.load %arg4[%c0_2, %c0_3] : memref<16x2xf32, #tpu.memory_space<vmem>>, vector<16x2xf32>
    %c0_4 = arith.constant 0 : index
    %c0_5 = arith.constant 0 : index
    %5 = vector.load %arg5[%c0_4, %c0_5] : memref<2x16xf32, #tpu.memory_space<vmem>>, vector<2x16xf32>
    %c0_6 = arith.constant 0 : index
    %c0_7 = arith.constant 0 : index
    %6 = vector.load %arg7[%c0_6, %c0_7] : memref<16x128xf32, #tpu.memory_space<vmem>>, vector<16x128xf32>
    %c0_8 = arith.constant 0 : index
    %c0_9 = arith.constant 0 : index
    %7 = vector.load %arg8[%c0_8, %c0_9] : memref<8x128xf32, #tpu.memory_space<vmem>>, vector<8x128xf32>
    %c0_10 = arith.constant 0 : index
    %c0_11 = arith.constant 0 : index
    %8 = vector.load %arg9[%c0_10, %c0_11] : memref<256x384xf32, #tpu.memory_space<vmem>>, vector<256x384xf32>
    %c0_12 = arith.constant 0 : index
    %c0_13 = arith.constant 0 : index
    %9 = vector.load %arg10[%c0_12, %c0_13] : memref<128x128xf32, #tpu.memory_space<vmem>>, vector<128x128xf32>
    %c0_14 = arith.constant 0 : index
    %c0_15 = arith.constant 0 : index
    %10 = vector.load %arg11[%c0_14, %c0_15] : memref<1x384xf32, #tpu.memory_space<vmem>>, vector<1x384xf32>
    %c0_16 = arith.constant 0 : index
    %c0_17 = arith.constant 0 : index
    %11 = vector.load %arg13[%c0_16, %c0_17] : memref<1x128xf32, #tpu.memory_space<vmem>>, vector<1x128xf32>
    %c0_18 = arith.constant 0 : index
    %c0_19 = arith.constant 0 : index
    %c0_20 = arith.constant 0 : index
    %12 = vector.load %arg1[%c0_18, %c0_19, %c0_20] : memref<3x8x8xf32, #tpu.memory_space<vmem>>, vector<1x8x8xf32>
    %13 = vector.shape_cast %12 : vector<1x8x8xf32> to vector<8x8xf32>
    %c0_21 = arith.constant 0 : index
    %c0_22 = arith.constant 0 : index
    %c0_23 = arith.constant 0 : index
    %14 = vector.load %arg2[%c0_21, %c0_22, %c0_23] : memref<3x8x4xf32, #tpu.memory_space<vmem>>, vector<1x8x4xf32>
    %15 = vector.shape_cast %14 : vector<1x8x4xf32> to vector<8x4xf32>
    %cst = arith.constant dense<0.000000e+00> : vector<8x16xf32>
    %16 = tpu.matmul %15, %3, %cst {dimension_numbers = #tpu.dot_dimension_numbers<[1], [0], [0], [1], [0, 0, 1, 1], [], []>} : vector<8x4xf32>, vector<4x16xf32>, vector<8x16xf32> -> vector<8x16xf32>
    %cst_24 = arith.constant dense<0.000000e+00> : vector<8x2xf32>
    %17 = tpu.matmul %16, %4, %cst_24 {dimension_numbers = #tpu.dot_dimension_numbers<[1], [0], [0], [1], [0, 0, 1, 1], [], []>} : vector<8x16xf32>, vector<16x2xf32>, vector<8x2xf32> -> vector<8x2xf32>
    %cst_25 = arith.constant dense<0.000000e+00> : vector<2x8xf32>
    %18 = tpu.matmul %5, %16, %cst_25 {dimension_numbers = #tpu.dot_dimension_numbers<[1], [1], [0], [0], [0, 0, 1, 0], [], []>} : vector<2x16xf32>, vector<8x16xf32>, vector<2x8xf32> -> vector<2x8xf32>
    %19 = vector.extract_strided_slice %17 {offsets = [0, 0], sizes = [8, 1], strides = [1, 1]} : vector<8x2xf32> to vector<8x1xf32>
    %20 = vector.extract_strided_slice %18 {offsets = [0, 0], sizes = [1, 8], strides = [1, 1]} : vector<2x8xf32> to vector<1x8xf32>
    %21 = vector.broadcast %19 : vector<8x1xf32> to vector<8x8xf32>
    %22 = vector.broadcast %20 : vector<1x8xf32> to vector<8x8xf32>
    %23 = arith.addf %21, %22 : vector<8x8xf32>
    %cst_26 = arith.constant 0.000000e+00 : f32
    %24 = vector.broadcast %cst_26 : f32 to vector<8x8xf32>
    %25 = arith.cmpf ogt, %23, %24 : vector<8x8xf32>
    %cst_27 = arith.constant 2.000000e-01 : f32
    %26 = vector.broadcast %cst_27 : f32 to vector<8x8xf32>
    %27 = arith.mulf %26, %23 : vector<8x8xf32>
    %28 = arith.select %25, %23, %27 : vector<8x8xi1>, vector<8x8xf32>
    %cst_28 = arith.constant 0.000000e+00 : f32
    %29 = vector.broadcast %cst_28 : f32 to vector<8x8xf32>
    %30 = arith.cmpf ogt, %13, %29 : vector<8x8xf32>
    %cst_29 = arith.constant -9.000000e+15 : f32
    %31 = vector.broadcast %cst_29 : f32 to vector<8x8xf32>
    %32 = arith.select %30, %28, %31 : vector<8x8xi1>, vector<8x8xf32>
    %cst_30 = arith.constant dense<0xFF800000> : vector<8xf32>
    %33 = vector.multi_reduction <maximumf>, %32, %cst_30 [1] : vector<8x8xf32> to vector<8xf32>
    %34 = vector.shape_cast %33 : vector<8xf32> to vector<8x1xf32>
    %35 = vector.broadcast %34 : vector<8x1xf32> to vector<8x8xf32>
    %36 = arith.subf %32, %35 : vector<8x8xf32>
    %37 = math.exp %36 : vector<8x8xf32>
    %cst_31 = arith.constant dense<0.000000e+00> : vector<8xf32>
    %38 = vector.multi_reduction <add>, %37, %cst_31 [1] : vector<8x8xf32> to vector<8xf32>
    %39 = vector.shape_cast %38 : vector<8xf32> to vector<8x1xf32>
    %40 = tpu.reciprocal %39 {approx = true} : vector<8x1xf32> -> vector<8x1xf32>
    %41 = vector.broadcast %40 : vector<8x1xf32> to vector<8x8xf32>
    %42 = arith.mulf %37, %41 : vector<8x8xf32>
    %43 = vector.extract_strided_slice %16 {offsets = [0, 0], sizes = [8, 8], strides = [1, 1]} : vector<8x16xf32> to vector<8x8xf32>
    %cst_32 = arith.constant dense<0.000000e+00> : vector<8x8xf32>
    %44 = tpu.matmul %42, %43, %cst_32 {dimension_numbers = #tpu.dot_dimension_numbers<[1], [0], [0], [1], [0, 0, 1, 1], [], []>} : vector<8x8xf32>, vector<8x8xf32>, vector<8x8xf32> -> vector<8x8xf32>
    %45 = vector.extract_strided_slice %17 {offsets = [0, 1], sizes = [8, 1], strides = [1, 1]} : vector<8x2xf32> to vector<8x1xf32>
    %46 = vector.extract_strided_slice %18 {offsets = [1, 0], sizes = [1, 8], strides = [1, 1]} : vector<2x8xf32> to vector<1x8xf32>
    %47 = vector.broadcast %45 : vector<8x1xf32> to vector<8x8xf32>
    %48 = vector.broadcast %46 : vector<1x8xf32> to vector<8x8xf32>
    %49 = arith.addf %47, %48 : vector<8x8xf32>
    %cst_33 = arith.constant 0.000000e+00 : f32
    %50 = vector.broadcast %cst_33 : f32 to vector<8x8xf32>
    %51 = arith.cmpf ogt, %49, %50 : vector<8x8xf32>
    %cst_34 = arith.constant 2.000000e-01 : f32
    %52 = vector.broadcast %cst_34 : f32 to vector<8x8xf32>
    %53 = arith.mulf %52, %49 : vector<8x8xf32>
    %54 = arith.select %51, %49, %53 : vector<8x8xi1>, vector<8x8xf32>
    %cst_35 = arith.constant 0.000000e+00 : f32
    %55 = vector.broadcast %cst_35 : f32 to vector<8x8xf32>
    %56 = arith.cmpf ogt, %13, %55 : vector<8x8xf32>
    %cst_36 = arith.constant -9.000000e+15 : f32
    %57 = vector.broadcast %cst_36 : f32 to vector<8x8xf32>
    %58 = arith.select %56, %54, %57 : vector<8x8xi1>, vector<8x8xf32>
    %cst_37 = arith.constant dense<0xFF800000> : vector<8xf32>
    %59 = vector.multi_reduction <maximumf>, %58, %cst_37 [1] : vector<8x8xf32> to vector<8xf32>
    %60 = vector.shape_cast %59 : vector<8xf32> to vector<8x1xf32>
    %61 = vector.broadcast %60 : vector<8x1xf32> to vector<8x8xf32>
    %62 = arith.subf %58, %61 : vector<8x8xf32>
    %63 = math.exp %62 : vector<8x8xf32>
    %cst_38 = arith.constant dense<0.000000e+00> : vector<8xf32>
    %64 = vector.multi_reduction <add>, %63, %cst_38 [1] : vector<8x8xf32> to vector<8xf32>
    %65 = vector.shape_cast %64 : vector<8xf32> to vector<8x1xf32>
    %66 = tpu.reciprocal %65 {approx = true} : vector<8x1xf32> -> vector<8x1xf32>
    %67 = vector.broadcast %66 : vector<8x1xf32> to vector<8x8xf32>
    %68 = arith.mulf %63, %67 : vector<8x8xf32>
    %69 = vector.extract_strided_slice %16 {offsets = [0, 8], sizes = [8, 8], strides = [1, 1]} : vector<8x16xf32> to vector<8x8xf32>
    %cst_39 = arith.constant dense<0.000000e+00> : vector<8x8xf32>
    %70 = tpu.matmul %68, %69, %cst_39 {dimension_numbers = #tpu.dot_dimension_numbers<[1], [0], [0], [1], [0, 0, 1, 1], [], []>} : vector<8x8xf32>, vector<8x8xf32>, vector<8x8xf32> -> vector<8x8xf32>
    %71 = tpu.concatenate %44, %70 in 1 : vector<8x8xf32>, vector<8x8xf32> -> vector<8x16xf32>
    %cst_40 = arith.constant 0.000000e+00 : f32
    %72 = vector.broadcast %cst_40 : f32 to vector<8x16xf32>
    %73 = arith.cmpf ogt, %71, %72 : vector<8x16xf32>
    %74 = math.exp %71 : vector<8x16xf32>
    %cst_41 = arith.constant 1.000000e+00 : f32
    %75 = vector.broadcast %cst_41 : f32 to vector<8x16xf32>
    %76 = arith.subf %74, %75 : vector<8x16xf32>
    %77 = arith.select %73, %71, %76 : vector<8x16xi1>, vector<8x16xf32>
    %cst_42 = arith.constant dense<0.000000e+00> : vector<8x128xf32>
    %78 = tpu.matmul %77, %6, %cst_42 {dimension_numbers = #tpu.dot_dimension_numbers<[1], [0], [0], [1], [0, 0, 1, 1], [], []>} : vector<8x16xf32>, vector<16x128xf32>, vector<8x128xf32> -> vector<8x128xf32>
    %79 = arith.mulf %78, %7 : vector<8x128xf32>
    %cst_43 = arith.constant dense<0.000000e+00> : vector<128xf32>
    %80 = vector.multi_reduction <add>, %79, %cst_43 [0] : vector<8x128xf32> to vector<128xf32>
    %81 = vector.shape_cast %80 : vector<128xf32> to vector<1x128xf32>
    %82 = tpu.concatenate %81, %11 in 1 : vector<1x128xf32>, vector<1x128xf32> -> vector<1x256xf32>
    %cst_44 = arith.constant dense<0.000000e+00> : vector<1x384xf32>
    %83 = tpu.matmul %82, %8, %cst_44 {dimension_numbers = #tpu.dot_dimension_numbers<[1], [0], [0], [1], [0, 0, 1, 1], [], []>} : vector<1x256xf32>, vector<256x384xf32>, vector<1x384xf32> -> vector<1x384xf32>
    %84 = arith.addf %83, %10 : vector<1x384xf32>
    %85 = vector.extract_strided_slice %84 {offsets = [0, 0], sizes = [1, 128], strides = [1, 1]} : vector<1x384xf32> to vector<1x128xf32>
    %cst_45 = arith.constant 5.000000e-01 : f32
    %86 = vector.broadcast %cst_45 : f32 to vector<1x128xf32>
    %87 = arith.mulf %86, %85 : vector<1x128xf32>
    %88 = math.tanh %87 : vector<1x128xf32>
    %cst_46 = arith.constant 1.000000e+00 : f32
    %89 = vector.broadcast %cst_46 : f32 to vector<1x128xf32>
    %90 = arith.addf %88, %89 : vector<1x128xf32>
    %cst_47 = arith.constant 5.000000e-01 : f32
    %91 = vector.broadcast %cst_47 : f32 to vector<1x128xf32>
    %92 = arith.mulf %91, %90 : vector<1x128xf32>
    %93 = vector.extract_strided_slice %84 {offsets = [0, 128], sizes = [1, 128], strides = [1, 1]} : vector<1x384xf32> to vector<1x128xf32>
    %cst_48 = arith.constant 5.000000e-01 : f32
    %94 = vector.broadcast %cst_48 : f32 to vector<1x128xf32>
    %95 = arith.mulf %94, %93 : vector<1x128xf32>
    %96 = math.tanh %95 : vector<1x128xf32>
    %cst_49 = arith.constant 1.000000e+00 : f32
    %97 = vector.broadcast %cst_49 : f32 to vector<1x128xf32>
    %98 = arith.addf %96, %97 : vector<1x128xf32>
    %cst_50 = arith.constant 5.000000e-01 : f32
    %99 = vector.broadcast %cst_50 : f32 to vector<1x128xf32>
    %100 = arith.mulf %99, %98 : vector<1x128xf32>
    %101 = vector.extract_strided_slice %84 {offsets = [0, 256], sizes = [1, 128], strides = [1, 1]} : vector<1x384xf32> to vector<1x128xf32>
    %102 = arith.mulf %100, %11 : vector<1x128xf32>
    %cst_51 = arith.constant dense<0.000000e+00> : vector<1x128xf32>
    %103 = tpu.matmul %102, %9, %cst_51 {dimension_numbers = #tpu.dot_dimension_numbers<[1], [0], [0], [1], [0, 0, 1, 1], [], []>} : vector<1x128xf32>, vector<128x128xf32>, vector<1x128xf32> -> vector<1x128xf32>
    %104 = arith.addf %101, %103 : vector<1x128xf32>
    %105 = math.tanh %104 : vector<1x128xf32>
    %cst_52 = arith.constant 1.000000e+00 : f32
    %106 = vector.broadcast %cst_52 : f32 to vector<1x128xf32>
    %107 = arith.subf %106, %92 : vector<1x128xf32>
    %108 = arith.mulf %107, %11 : vector<1x128xf32>
    %109 = arith.mulf %92, %105 : vector<1x128xf32>
    %110 = arith.addf %108, %109 : vector<1x128xf32>
    %c0_53 = arith.constant 0 : index
    %c0_54 = arith.constant 0 : index
    %111 = vector.load %arg12[%c0_53, %c0_54] : memref<3x128xf32, #tpu.memory_space<vmem>>, vector<1x128xf32>
    tpu.vector_store %arg12[%c0_53, %c0_54], %110 {strides = array<i32>} : memref<3x128xf32, #tpu.memory_space<vmem>>, vector<1x128xf32>,
    %c1 = arith.constant 1 : index
    %c0_55 = arith.constant 0 : index
    %c0_56 = arith.constant 0 : index
    %112 = vector.load %arg1[%c1, %c0_55, %c0_56] : memref<3x8x8xf32, #tpu.memory_space<vmem>>, vector<1x8x8xf32>
    %113 = vector.shape_cast %112 : vector<1x8x8xf32> to vector<8x8xf32>
    %c1_57 = arith.constant 1 : index
    %c0_58 = arith.constant 0 : index
    %c0_59 = arith.constant 0 : index
    %114 = vector.load %arg2[%c1_57, %c0_58, %c0_59] : memref<3x8x4xf32, #tpu.memory_space<vmem>>, vector<1x8x4xf32>
    %115 = vector.shape_cast %114 : vector<1x8x4xf32> to vector<8x4xf32>
    %cst_60 = arith.constant dense<0.000000e+00> : vector<8x16xf32>
    %116 = tpu.matmul %115, %3, %cst_60 {dimension_numbers = #tpu.dot_dimension_numbers<[1], [0], [0], [1], [0, 0, 1, 1], [], []>} : vector<8x4xf32>, vector<4x16xf32>, vector<8x16xf32> -> vector<8x16xf32>
    %cst_61 = arith.constant dense<0.000000e+00> : vector<8x2xf32>
    %117 = tpu.matmul %116, %4, %cst_61 {dimension_numbers = #tpu.dot_dimension_numbers<[1], [0], [0], [1], [0, 0, 1, 1], [], []>} : vector<8x16xf32>, vector<16x2xf32>, vector<8x2xf32> -> vector<8x2xf32>
    %cst_62 = arith.constant dense<0.000000e+00> : vector<2x8xf32>
    %118 = tpu.matmul %5, %116, %cst_62 {dimension_numbers = #tpu.dot_dimension_numbers<[1], [1], [0], [0], [0, 0, 1, 0], [], []>} : vector<2x16xf32>, vector<8x16xf32>, vector<2x8xf32> -> vector<2x8xf32>
    %119 = vector.extract_strided_slice %117 {offsets = [0, 0], sizes = [8, 1], strides = [1, 1]} : vector<8x2xf32> to vector<8x1xf32>
    %120 = vector.extract_strided_slice %118 {offsets = [0, 0], sizes = [1, 8], strides = [1, 1]} : vector<2x8xf32> to vector<1x8xf32>
    %121 = vector.broadcast %119 : vector<8x1xf32> to vector<8x8xf32>
    %122 = vector.broadcast %120 : vector<1x8xf32> to vector<8x8xf32>
    %123 = arith.addf %121, %122 : vector<8x8xf32>
    %cst_63 = arith.constant 0.000000e+00 : f32
    %124 = vector.broadcast %cst_63 : f32 to vector<8x8xf32>
    %125 = arith.cmpf ogt, %123, %124 : vector<8x8xf32>
    %cst_64 = arith.constant 2.000000e-01 : f32
    %126 = vector.broadcast %cst_64 : f32 to vector<8x8xf32>
    %127 = arith.mulf %126, %123 : vector<8x8xf32>
    %128 = arith.select %125, %123, %127 : vector<8x8xi1>, vector<8x8xf32>
    %cst_65 = arith.constant 0.000000e+00 : f32
    %129 = vector.broadcast %cst_65 : f32 to vector<8x8xf32>
    %130 = arith.cmpf ogt, %113, %129 : vector<8x8xf32>
    %cst_66 = arith.constant -9.000000e+15 : f32
    %131 = vector.broadcast %cst_66 : f32 to vector<8x8xf32>
    %132 = arith.select %130, %128, %131 : vector<8x8xi1>, vector<8x8xf32>
    %cst_67 = arith.constant dense<0xFF800000> : vector<8xf32>
    %133 = vector.multi_reduction <maximumf>, %132, %cst_67 [1] : vector<8x8xf32> to vector<8xf32>
    %134 = vector.shape_cast %133 : vector<8xf32> to vector<8x1xf32>
    %135 = vector.broadcast %134 : vector<8x1xf32> to vector<8x8xf32>
    %136 = arith.subf %132, %135 : vector<8x8xf32>
    %137 = math.exp %136 : vector<8x8xf32>
    %cst_68 = arith.constant dense<0.000000e+00> : vector<8xf32>
    %138 = vector.multi_reduction <add>, %137, %cst_68 [1] : vector<8x8xf32> to vector<8xf32>
    %139 = vector.shape_cast %138 : vector<8xf32> to vector<8x1xf32>
    %140 = tpu.reciprocal %139 {approx = true} : vector<8x1xf32> -> vector<8x1xf32>
    %141 = vector.broadcast %140 : vector<8x1xf32> to vector<8x8xf32>
    %142 = arith.mulf %137, %141 : vector<8x8xf32>
    %143 = vector.extract_strided_slice %116 {offsets = [0, 0], sizes = [8, 8], strides = [1, 1]} : vector<8x16xf32> to vector<8x8xf32>
    %cst_69 = arith.constant dense<0.000000e+00> : vector<8x8xf32>
    %144 = tpu.matmul %142, %143, %cst_69 {dimension_numbers = #tpu.dot_dimension_numbers<[1], [0], [0], [1], [0, 0, 1, 1], [], []>} : vector<8x8xf32>, vector<8x8xf32>, vector<8x8xf32> -> vector<8x8xf32>
    %145 = vector.extract_strided_slice %117 {offsets = [0, 1], sizes = [8, 1], strides = [1, 1]} : vector<8x2xf32> to vector<8x1xf32>
    %146 = vector.extract_strided_slice %118 {offsets = [1, 0], sizes = [1, 8], strides = [1, 1]} : vector<2x8xf32> to vector<1x8xf32>
    %147 = vector.broadcast %145 : vector<8x1xf32> to vector<8x8xf32>
    %148 = vector.broadcast %146 : vector<1x8xf32> to vector<8x8xf32>
    %149 = arith.addf %147, %148 : vector<8x8xf32>
    %cst_70 = arith.constant 0.000000e+00 : f32
    %150 = vector.broadcast %cst_70 : f32 to vector<8x8xf32>
    %151 = arith.cmpf ogt, %149, %150 : vector<8x8xf32>
    %cst_71 = arith.constant 2.000000e-01 : f32
    %152 = vector.broadcast %cst_71 : f32 to vector<8x8xf32>
    %153 = arith.mulf %152, %149 : vector<8x8xf32>
    %154 = arith.select %151, %149, %153 : vector<8x8xi1>, vector<8x8xf32>
    %cst_72 = arith.constant 0.000000e+00 : f32
    %155 = vector.broadcast %cst_72 : f32 to vector<8x8xf32>
    %156 = arith.cmpf ogt, %113, %155 : vector<8x8xf32>
    %cst_73 = arith.constant -9.000000e+15 : f32
    %157 = vector.broadcast %cst_73 : f32 to vector<8x8xf32>
    %158 = arith.select %156, %154, %157 : vector<8x8xi1>, vector<8x8xf32>
    %cst_74 = arith.constant dense<0xFF800000> : vector<8xf32>
    %159 = vector.multi_reduction <maximumf>, %158, %cst_74 [1] : vector<8x8xf32> to vector<8xf32>
    %160 = vector.shape_cast %159 : vector<8xf32> to vector<8x1xf32>
    %161 = vector.broadcast %160 : vector<8x1xf32> to vector<8x8xf32>
    %162 = arith.subf %158, %161 : vector<8x8xf32>
    %163 = math.exp %162 : vector<8x8xf32>
    %cst_75 = arith.constant dense<0.000000e+00> : vector<8xf32>
    %164 = vector.multi_reduction <add>, %163, %cst_75 [1] : vector<8x8xf32> to vector<8xf32>
    %165 = vector.shape_cast %164 : vector<8xf32> to vector<8x1xf32>
    %166 = tpu.reciprocal %165 {approx = true} : vector<8x1xf32> -> vector<8x1xf32>
    %167 = vector.broadcast %166 : vector<8x1xf32> to vector<8x8xf32>
    %168 = arith.mulf %163, %167 : vector<8x8xf32>
    %169 = vector.extract_strided_slice %116 {offsets = [0, 8], sizes = [8, 8], strides = [1, 1]} : vector<8x16xf32> to vector<8x8xf32>
    %cst_76 = arith.constant dense<0.000000e+00> : vector<8x8xf32>
    %170 = tpu.matmul %168, %169, %cst_76 {dimension_numbers = #tpu.dot_dimension_numbers<[1], [0], [0], [1], [0, 0, 1, 1], [], []>} : vector<8x8xf32>, vector<8x8xf32>, vector<8x8xf32> -> vector<8x8xf32>
    %171 = tpu.concatenate %144, %170 in 1 : vector<8x8xf32>, vector<8x8xf32> -> vector<8x16xf32>
    %cst_77 = arith.constant 0.000000e+00 : f32
    %172 = vector.broadcast %cst_77 : f32 to vector<8x16xf32>
    %173 = arith.cmpf ogt, %171, %172 : vector<8x16xf32>
    %174 = math.exp %171 : vector<8x16xf32>
    %cst_78 = arith.constant 1.000000e+00 : f32
    %175 = vector.broadcast %cst_78 : f32 to vector<8x16xf32>
    %176 = arith.subf %174, %175 : vector<8x16xf32>
    %177 = arith.select %173, %171, %176 : vector<8x16xi1>, vector<8x16xf32>
    %cst_79 = arith.constant dense<0.000000e+00> : vector<8x128xf32>
    %178 = tpu.matmul %177, %6, %cst_79 {dimension_numbers = #tpu.dot_dimension_numbers<[1], [0], [0], [1], [0, 0, 1, 1], [], []>} : vector<8x16xf32>, vector<16x128xf32>, vector<8x128xf32> -> vector<8x128xf32>
    %179 = arith.mulf %178, %7 : vector<8x128xf32>
    %cst_80 = arith.constant dense<0.000000e+00> : vector<128xf32>
    %180 = vector.multi_reduction <add>, %179, %cst_80 [0] : vector<8x128xf32> to vector<128xf32>
    %181 = vector.shape_cast %180 : vector<128xf32> to vector<1x128xf32>
    %182 = tpu.concatenate %181, %110 in 1 : vector<1x128xf32>, vector<1x128xf32> -> vector<1x256xf32>
    %cst_81 = arith.constant dense<0.000000e+00> : vector<1x384xf32>
    %183 = tpu.matmul %182, %8, %cst_81 {dimension_numbers = #tpu.dot_dimension_numbers<[1], [0], [0], [1], [0, 0, 1, 1], [], []>} : vector<1x256xf32>, vector<256x384xf32>, vector<1x384xf32> -> vector<1x384xf32>
    %184 = arith.addf %183, %10 : vector<1x384xf32>
    %185 = vector.extract_strided_slice %184 {offsets = [0, 0], sizes = [1, 128], strides = [1, 1]} : vector<1x384xf32> to vector<1x128xf32>
    %cst_82 = arith.constant 5.000000e-01 : f32
    %186 = vector.broadcast %cst_82 : f32 to vector<1x128xf32>
    %187 = arith.mulf %186, %185 : vector<1x128xf32>
    %188 = math.tanh %187 : vector<1x128xf32>
    %cst_83 = arith.constant 1.000000e+00 : f32
    %189 = vector.broadcast %cst_83 : f32 to vector<1x128xf32>
    %190 = arith.addf %188, %189 : vector<1x128xf32>
    %cst_84 = arith.constant 5.000000e-01 : f32
    %191 = vector.broadcast %cst_84 : f32 to vector<1x128xf32>
    %192 = arith.mulf %191, %190 : vector<1x128xf32>
    %193 = vector.extract_strided_slice %184 {offsets = [0, 128], sizes = [1, 128], strides = [1, 1]} : vector<1x384xf32> to vector<1x128xf32>
    %cst_85 = arith.constant 5.000000e-01 : f32
    %194 = vector.broadcast %cst_85 : f32 to vector<1x128xf32>
    %195 = arith.mulf %194, %193 : vector<1x128xf32>
    %196 = math.tanh %195 : vector<1x128xf32>
    %cst_86 = arith.constant 1.000000e+00 : f32
    %197 = vector.broadcast %cst_86 : f32 to vector<1x128xf32>
    %198 = arith.addf %196, %197 : vector<1x128xf32>
    %cst_87 = arith.constant 5.000000e-01 : f32
    %199 = vector.broadcast %cst_87 : f32 to vector<1x128xf32>
    %200 = arith.mulf %199, %198 : vector<1x128xf32>
    %201 = vector.extract_strided_slice %184 {offsets = [0, 256], sizes = [1, 128], strides = [1, 1]} : vector<1x384xf32> to vector<1x128xf32>
    %202 = arith.mulf %200, %110 : vector<1x128xf32>
    %cst_88 = arith.constant dense<0.000000e+00> : vector<1x128xf32>
    %203 = tpu.matmul %202, %9, %cst_88 {dimension_numbers = #tpu.dot_dimension_numbers<[1], [0], [0], [1], [0, 0, 1, 1], [], []>} : vector<1x128xf32>, vector<128x128xf32>, vector<1x128xf32> -> vector<1x128xf32>
    %204 = arith.addf %201, %203 : vector<1x128xf32>
    %205 = math.tanh %204 : vector<1x128xf32>
    %cst_89 = arith.constant 1.000000e+00 : f32
    %206 = vector.broadcast %cst_89 : f32 to vector<1x128xf32>
    %207 = arith.subf %206, %192 : vector<1x128xf32>
    %208 = arith.mulf %207, %110 : vector<1x128xf32>
    %209 = arith.mulf %192, %205 : vector<1x128xf32>
    %210 = arith.addf %208, %209 : vector<1x128xf32>
    %c1_90 = arith.constant 1 : index
    %c0_91 = arith.constant 0 : index
    %211 = vector.load %arg12[%c1_90, %c0_91] : memref<3x128xf32, #tpu.memory_space<vmem>>, vector<1x128xf32>
    tpu.vector_store %arg12[%c1_90, %c0_91], %210 {strides = array<i32>} : memref<3x128xf32, #tpu.memory_space<vmem>>, vector<1x128xf32>,
    %c2 = arith.constant 2 : index
    %c0_92 = arith.constant 0 : index
    %c0_93 = arith.constant 0 : index
    %212 = vector.load %arg1[%c2, %c0_92, %c0_93] : memref<3x8x8xf32, #tpu.memory_space<vmem>>, vector<1x8x8xf32>
    %213 = vector.shape_cast %212 : vector<1x8x8xf32> to vector<8x8xf32>
    %c2_94 = arith.constant 2 : index
    %c0_95 = arith.constant 0 : index
    %c0_96 = arith.constant 0 : index
    %214 = vector.load %arg2[%c2_94, %c0_95, %c0_96] : memref<3x8x4xf32, #tpu.memory_space<vmem>>, vector<1x8x4xf32>
    %215 = vector.shape_cast %214 : vector<1x8x4xf32> to vector<8x4xf32>
    %cst_97 = arith.constant dense<0.000000e+00> : vector<8x16xf32>
    %216 = tpu.matmul %215, %3, %cst_97 {dimension_numbers = #tpu.dot_dimension_numbers<[1], [0], [0], [1], [0, 0, 1, 1], [], []>} : vector<8x4xf32>, vector<4x16xf32>, vector<8x16xf32> -> vector<8x16xf32>
    %cst_98 = arith.constant dense<0.000000e+00> : vector<8x2xf32>
    %217 = tpu.matmul %216, %4, %cst_98 {dimension_numbers = #tpu.dot_dimension_numbers<[1], [0], [0], [1], [0, 0, 1, 1], [], []>} : vector<8x16xf32>, vector<16x2xf32>, vector<8x2xf32> -> vector<8x2xf32>
    %cst_99 = arith.constant dense<0.000000e+00> : vector<2x8xf32>
    %218 = tpu.matmul %5, %216, %cst_99 {dimension_numbers = #tpu.dot_dimension_numbers<[1], [1], [0], [0], [0, 0, 1, 0], [], []>} : vector<2x16xf32>, vector<8x16xf32>, vector<2x8xf32> -> vector<2x8xf32>
    %219 = vector.extract_strided_slice %217 {offsets = [0, 0], sizes = [8, 1], strides = [1, 1]} : vector<8x2xf32> to vector<8x1xf32>
    %220 = vector.extract_strided_slice %218 {offsets = [0, 0], sizes = [1, 8], strides = [1, 1]} : vector<2x8xf32> to vector<1x8xf32>
    %221 = vector.broadcast %219 : vector<8x1xf32> to vector<8x8xf32>
    %222 = vector.broadcast %220 : vector<1x8xf32> to vector<8x8xf32>
    %223 = arith.addf %221, %222 : vector<8x8xf32>
    %cst_100 = arith.constant 0.000000e+00 : f32
    %224 = vector.broadcast %cst_100 : f32 to vector<8x8xf32>
    %225 = arith.cmpf ogt, %223, %224 : vector<8x8xf32>
    %cst_101 = arith.constant 2.000000e-01 : f32
    %226 = vector.broadcast %cst_101 : f32 to vector<8x8xf32>
    %227 = arith.mulf %226, %223 : vector<8x8xf32>
    %228 = arith.select %225, %223, %227 : vector<8x8xi1>, vector<8x8xf32>
    %cst_102 = arith.constant 0.000000e+00 : f32
    %229 = vector.broadcast %cst_102 : f32 to vector<8x8xf32>
    %230 = arith.cmpf ogt, %213, %229 : vector<8x8xf32>
    %cst_103 = arith.constant -9.000000e+15 : f32
    %231 = vector.broadcast %cst_103 : f32 to vector<8x8xf32>
    %232 = arith.select %230, %228, %231 : vector<8x8xi1>, vector<8x8xf32>
    %cst_104 = arith.constant dense<0xFF800000> : vector<8xf32>
    %233 = vector.multi_reduction <maximumf>, %232, %cst_104 [1] : vector<8x8xf32> to vector<8xf32>
    %234 = vector.shape_cast %233 : vector<8xf32> to vector<8x1xf32>
    %235 = vector.broadcast %234 : vector<8x1xf32> to vector<8x8xf32>
    %236 = arith.subf %232, %235 : vector<8x8xf32>
    %237 = math.exp %236 : vector<8x8xf32>
    %cst_105 = arith.constant dense<0.000000e+00> : vector<8xf32>
    %238 = vector.multi_reduction <add>, %237, %cst_105 [1] : vector<8x8xf32> to vector<8xf32>
    %239 = vector.shape_cast %238 : vector<8xf32> to vector<8x1xf32>
    %240 = tpu.reciprocal %239 {approx = true} : vector<8x1xf32> -> vector<8x1xf32>
    %241 = vector.broadcast %240 : vector<8x1xf32> to vector<8x8xf32>
    %242 = arith.mulf %237, %241 : vector<8x8xf32>
    %243 = vector.extract_strided_slice %216 {offsets = [0, 0], sizes = [8, 8], strides = [1, 1]} : vector<8x16xf32> to vector<8x8xf32>
    %cst_106 = arith.constant dense<0.000000e+00> : vector<8x8xf32>
    %244 = tpu.matmul %242, %243, %cst_106 {dimension_numbers = #tpu.dot_dimension_numbers<[1], [0], [0], [1], [0, 0, 1, 1], [], []>} : vector<8x8xf32>, vector<8x8xf32>, vector<8x8xf32> -> vector<8x8xf32>
    %245 = vector.extract_strided_slice %217 {offsets = [0, 1], sizes = [8, 1], strides = [1, 1]} : vector<8x2xf32> to vector<8x1xf32>
    %246 = vector.extract_strided_slice %218 {offsets = [1, 0], sizes = [1, 8], strides = [1, 1]} : vector<2x8xf32> to vector<1x8xf32>
    %247 = vector.broadcast %245 : vector<8x1xf32> to vector<8x8xf32>
    %248 = vector.broadcast %246 : vector<1x8xf32> to vector<8x8xf32>
    %249 = arith.addf %247, %248 : vector<8x8xf32>
    %cst_107 = arith.constant 0.000000e+00 : f32
    %250 = vector.broadcast %cst_107 : f32 to vector<8x8xf32>
    %251 = arith.cmpf ogt, %249, %250 : vector<8x8xf32>
    %cst_108 = arith.constant 2.000000e-01 : f32
    %252 = vector.broadcast %cst_108 : f32 to vector<8x8xf32>
    %253 = arith.mulf %252, %249 : vector<8x8xf32>
    %254 = arith.select %251, %249, %253 : vector<8x8xi1>, vector<8x8xf32>
    %cst_109 = arith.constant 0.000000e+00 : f32
    %255 = vector.broadcast %cst_109 : f32 to vector<8x8xf32>
    %256 = arith.cmpf ogt, %213, %255 : vector<8x8xf32>
    %cst_110 = arith.constant -9.000000e+15 : f32
    %257 = vector.broadcast %cst_110 : f32 to vector<8x8xf32>
    %258 = arith.select %256, %254, %257 : vector<8x8xi1>, vector<8x8xf32>
    %cst_111 = arith.constant dense<0xFF800000> : vector<8xf32>
    %259 = vector.multi_reduction <maximumf>, %258, %cst_111 [1] : vector<8x8xf32> to vector<8xf32>
    %260 = vector.shape_cast %259 : vector<8xf32> to vector<8x1xf32>
    %261 = vector.broadcast %260 : vector<8x1xf32> to vector<8x8xf32>
    %262 = arith.subf %258, %261 : vector<8x8xf32>
    %263 = math.exp %262 : vector<8x8xf32>
    %cst_112 = arith.constant dense<0.000000e+00> : vector<8xf32>
    %264 = vector.multi_reduction <add>, %263, %cst_112 [1] : vector<8x8xf32> to vector<8xf32>
    %265 = vector.shape_cast %264 : vector<8xf32> to vector<8x1xf32>
    %266 = tpu.reciprocal %265 {approx = true} : vector<8x1xf32> -> vector<8x1xf32>
    %267 = vector.broadcast %266 : vector<8x1xf32> to vector<8x8xf32>
    %268 = arith.mulf %263, %267 : vector<8x8xf32>
    %269 = vector.extract_strided_slice %216 {offsets = [0, 8], sizes = [8, 8], strides = [1, 1]} : vector<8x16xf32> to vector<8x8xf32>
    %cst_113 = arith.constant dense<0.000000e+00> : vector<8x8xf32>
    %270 = tpu.matmul %268, %269, %cst_113 {dimension_numbers = #tpu.dot_dimension_numbers<[1], [0], [0], [1], [0, 0, 1, 1], [], []>} : vector<8x8xf32>, vector<8x8xf32>, vector<8x8xf32> -> vector<8x8xf32>
    %271 = tpu.concatenate %244, %270 in 1 : vector<8x8xf32>, vector<8x8xf32> -> vector<8x16xf32>
    %cst_114 = arith.constant 0.000000e+00 : f32
    %272 = vector.broadcast %cst_114 : f32 to vector<8x16xf32>
    %273 = arith.cmpf ogt, %271, %272 : vector<8x16xf32>
    %274 = math.exp %271 : vector<8x16xf32>
    %cst_115 = arith.constant 1.000000e+00 : f32
    %275 = vector.broadcast %cst_115 : f32 to vector<8x16xf32>
    %276 = arith.subf %274, %275 : vector<8x16xf32>
    %277 = arith.select %273, %271, %276 : vector<8x16xi1>, vector<8x16xf32>
    %cst_116 = arith.constant dense<0.000000e+00> : vector<8x128xf32>
    %278 = tpu.matmul %277, %6, %cst_116 {dimension_numbers = #tpu.dot_dimension_numbers<[1], [0], [0], [1], [0, 0, 1, 1], [], []>} : vector<8x16xf32>, vector<16x128xf32>, vector<8x128xf32> -> vector<8x128xf32>
    %279 = arith.mulf %278, %7 : vector<8x128xf32>
    %cst_117 = arith.constant dense<0.000000e+00> : vector<128xf32>
    %280 = vector.multi_reduction <add>, %279, %cst_117 [0] : vector<8x128xf32> to vector<128xf32>
    %281 = vector.shape_cast %280 : vector<128xf32> to vector<1x128xf32>
    %282 = tpu.concatenate %281, %210 in 1 : vector<1x128xf32>, vector<1x128xf32> -> vector<1x256xf32>
    %cst_118 = arith.constant dense<0.000000e+00> : vector<1x384xf32>
    %283 = tpu.matmul %282, %8, %cst_118 {dimension_numbers = #tpu.dot_dimension_numbers<[1], [0], [0], [1], [0, 0, 1, 1], [], []>} : vector<1x256xf32>, vector<256x384xf32>, vector<1x384xf32> -> vector<1x384xf32>
    %284 = arith.addf %283, %10 : vector<1x384xf32>
    %285 = vector.extract_strided_slice %284 {offsets = [0, 0], sizes = [1, 128], strides = [1, 1]} : vector<1x384xf32> to vector<1x128xf32>
    %cst_119 = arith.constant 5.000000e-01 : f32
    %286 = vector.broadcast %cst_119 : f32 to vector<1x128xf32>
    %287 = arith.mulf %286, %285 : vector<1x128xf32>
    %288 = math.tanh %287 : vector<1x128xf32>
    %cst_120 = arith.constant 1.000000e+00 : f32
    %289 = vector.broadcast %cst_120 : f32 to vector<1x128xf32>
    %290 = arith.addf %288, %289 : vector<1x128xf32>
    %cst_121 = arith.constant 5.000000e-01 : f32
    %291 = vector.broadcast %cst_121 : f32 to vector<1x128xf32>
    %292 = arith.mulf %291, %290 : vector<1x128xf32>
    %293 = vector.extract_strided_slice %284 {offsets = [0, 128], sizes = [1, 128], strides = [1, 1]} : vector<1x384xf32> to vector<1x128xf32>
    %cst_122 = arith.constant 5.000000e-01 : f32
    %294 = vector.broadcast %cst_122 : f32 to vector<1x128xf32>
    %295 = arith.mulf %294, %293 : vector<1x128xf32>
    %296 = math.tanh %295 : vector<1x128xf32>
    %cst_123 = arith.constant 1.000000e+00 : f32
    %297 = vector.broadcast %cst_123 : f32 to vector<1x128xf32>
    %298 = arith.addf %296, %297 : vector<1x128xf32>
    %cst_124 = arith.constant 5.000000e-01 : f32
    %299 = vector.broadcast %cst_124 : f32 to vector<1x128xf32>
    %300 = arith.mulf %299, %298 : vector<1x128xf32>
    %301 = vector.extract_strided_slice %284 {offsets = [0, 256], sizes = [1, 128], strides = [1, 1]} : vector<1x384xf32> to vector<1x128xf32>
    %302 = arith.mulf %300, %210 : vector<1x128xf32>
    %cst_125 = arith.constant dense<0.000000e+00> : vector<1x128xf32>
    %303 = tpu.matmul %302, %9, %cst_125 {dimension_numbers = #tpu.dot_dimension_numbers<[1], [0], [0], [1], [0, 0, 1, 1], [], []>} : vector<1x128xf32>, vector<128x128xf32>, vector<1x128xf32> -> vector<1x128xf32>
    %304 = arith.addf %301, %303 : vector<1x128xf32>
    %305 = math.tanh %304 : vector<1x128xf32>
    %cst_126 = arith.constant 1.000000e+00 : f32
    %306 = vector.broadcast %cst_126 : f32 to vector<1x128xf32>
    %307 = arith.subf %306, %292 : vector<1x128xf32>
    %308 = arith.mulf %307, %210 : vector<1x128xf32>
    %309 = arith.mulf %292, %305 : vector<1x128xf32>
    %310 = arith.addf %308, %309 : vector<1x128xf32>
    %c2_127 = arith.constant 2 : index
    %c0_128 = arith.constant 0 : index
    %311 = vector.load %arg12[%c2_127, %c0_128] : memref<3x128xf32, #tpu.memory_space<vmem>>, vector<1x128xf32>
    tpu.vector_store %arg12[%c2_127, %c0_128], %310 {strides = array<i32>} : memref<3x128xf32, #tpu.memory_space<vmem>>, vector<1x128xf32>,
    %c0_129 = arith.constant 0 : index
    %c0_130 = arith.constant 0 : index
    %312 = vector.load %arg13[%c0_129, %c0_130] : memref<1x128xf32, #tpu.memory_space<vmem>>, vector<1x128xf32>
    tpu.vector_store %arg13[%c0_129, %c0_130], %310 {strides = array<i32>} : memref<1x128xf32, #tpu.memory_space<vmem>>, vector<1x128xf32>,
    return
  }
  func.func @transform_0(%arg0: i32) -> (i32, i32, i32) {
    %c0_i32 = arith.constant 0 : i32
    %c0_i32_0 = arith.constant 0 : i32
    %c0_i32_1 = arith.constant 0 : i32
    return %arg0, %c0_i32, %c0_i32_0 : i32, i32, i32
  }
  func.func @transform_1(%arg0: i32) -> (i32, i32, i32) {
    %c0_i32 = arith.constant 0 : i32
    %c0_i32_0 = arith.constant 0 : i32
    %c0_i32_1 = arith.constant 0 : i32
    return %arg0, %c0_i32, %c0_i32_0 : i32, i32, i32
  }
  func.func @transform_2(%arg0: i32) -> (i32, i32) {
    %c0_i32 = arith.constant 0 : i32
    %c0_i32_0 = arith.constant 0 : i32
    %c0_i32_1 = arith.constant 0 : i32
    return %c0_i32, %c0_i32_0 : i32, i32
  }
  func.func @transform_3(%arg0: i32) -> (i32, i32) {
    %c0_i32 = arith.constant 0 : i32
    %c0_i32_0 = arith.constant 0 : i32
    %c0_i32_1 = arith.constant 0 : i32
    return %c0_i32, %c0_i32_0 : i32, i32
  }
  func.func @transform_4(%arg0: i32) -> (i32, i32) {
    %c0_i32 = arith.constant 0 : i32
    %c0_i32_0 = arith.constant 0 : i32
    %c0_i32_1 = arith.constant 0 : i32
    return %c0_i32, %c0_i32_0 : i32, i32
  }
  func.func @transform_5(%arg0: i32) -> (i32, i32) {
    %c0_i32 = arith.constant 0 : i32
    %c0_i32_0 = arith.constant 0 : i32
    %c0_i32_1 = arith.constant 0 : i32
    return %c0_i32, %c0_i32_0 : i32, i32
  }
  func.func @transform_6(%arg0: i32) -> (i32, i32) {
    %c0_i32 = arith.constant 0 : i32
    %c0_i32_0 = arith.constant 0 : i32
    %c0_i32_1 = arith.constant 0 : i32
    return %c0_i32, %c0_i32_0 : i32, i32
  }
  func.func @transform_7(%arg0: i32) -> (i32, i32) {
    %c0_i32 = arith.constant 0 : i32
    %c0_i32_0 = arith.constant 0 : i32
    %c0_i32_1 = arith.constant 0 : i32
    return %c0_i32, %c0_i32_0 : i32, i32
  }
  func.func @transform_8(%arg0: i32) -> (i32, i32) {
    %c0_i32 = arith.constant 0 : i32
    %c0_i32_0 = arith.constant 0 : i32
    %c0_i32_1 = arith.constant 0 : i32
    return %c0_i32, %c0_i32_0 : i32, i32
  }
  func.func @transform_9(%arg0: i32) -> (i32, i32) {
    %c0_i32 = arith.constant 0 : i32
    %c0_i32_0 = arith.constant 0 : i32
    %c0_i32_1 = arith.constant 0 : i32
    return %c0_i32, %c0_i32_0 : i32, i32
  }
  func.func @transform_10(%arg0: i32) -> (i32, i32) {
    %c0_i32 = arith.constant 0 : i32
    %c0_i32_0 = arith.constant 0 : i32
    %c0_i32_1 = arith.constant 0 : i32
    return %c0_i32, %c0_i32_0 : i32, i32
  }
  func.func @transform_11(%arg0: i32) -> (i32, i32) {
    %c0_i32 = arith.constant 0 : i32
    %c0_i32_0 = arith.constant 0 : i32
    return %arg0, %c0_i32 : i32, i32
  }
}

</mosaic_0001>

<llo_original>
// kernel: tpu_custom_call.1
$region0: #{tpu_custom_call.1}
  #allocation0 [shape = 'u32[]', space=smem, size = 0x4, offset = 0x4, fixed_abs, tag = 'smem constant byte address 0x4 - core index']
  #allocation1 [shape = 'u32[144,128]{1,0:T(1,128)}', space=vmem, size = 0x12000, scoped, tag = 'internal scratch']
  #allocation2 [shape = 'f32[1,128]{1,0:T(1,128)}', space=vmem, size = 0x200, scoped, tag = 'scratch operand']
  %s0 = inlined_call_operand.vmem [shape: f32[3,8,8], index: 0, kind: input, shape index: {}]
  %s1 = inlined_call_operand.vmem [shape: f32[3,8,4], index: 1, kind: input, shape index: {}]
  %s2 = inlined_call_operand.hbm [shape: f32[4,16], index: 2, kind: input, shape index: {}]
  %s3 = inlined_call_operand.vmem [shape: f32[16,2], index: 3, kind: input, shape index: {}]
  %s4 = inlined_call_operand.hbm [shape: f32[2,16], index: 4, kind: input, shape index: {}]
  %s5 = inlined_call_operand.hbm [shape: f32[1,128], index: 5, kind: input, shape index: {}]
  %s6 = inlined_call_operand.vmem [shape: f32[16,128], index: 6, kind: input, shape index: {}]
  %s7 = inlined_call_operand.vmem [shape: f32[8,128], index: 7, kind: input, shape index: {}]
  %s8 = inlined_call_operand.hbm [shape: f32[256,384], index: 8, kind: input, shape index: {}]
  %s9 = inlined_call_operand.hbm [shape: f32[128,128], index: 9, kind: input, shape index: {}]
  %s10 = inlined_call_operand.vmem [shape: f32[1,384], index: 10, kind: input, shape index: {}]
  %s11 = inlined_call_operand.hbm [shape: f32[3,128], index: 11, kind: output, shape index: {}]
  %s12 = sld [smem:[#allocation0]]
  $region78: #{tpu_custom_call.1} parent=0
    _
  %s14 = ssub.s32 1, %s12
  %s15 = scalar_select 0, %s14, %s12
  $region1: #{tpu_custom_call.1} parent=0
    #allocation3 [shape = 'u8[2048]{0}', space=vmem, size = 0x800, scoped, tag = 'input window, operand 2, single buffered']
    #allocation4 [shape = 's32[1]{0}', space=sflag, size = 0x4, scoped, tag = 'scoped memory for tpu_custom_call.1']
    #allocation5 [shape = 's32[1]{0}', space=sflag, size = 0x4, scoped, tag = 'scoped memory for tpu_custom_call.1']
    #allocation6 [shape = 'u8[1024]{0}', space=vmem, size = 0x400, scoped, tag = 'input window, operand 4, single buffered']
    #allocation7 [shape = 's32[1]{0}', space=sflag, size = 0x4, scoped, tag = 'scoped memory for tpu_custom_call.1']
    #allocation8 [shape = 'u8[512]{0}', space=vmem, size = 0x400, scoped, tag = 'input window, operand 5, single buffered']
    #allocation9 [shape = 'u8[393216]{0}', space=vmem, size = 0x60000, scoped, tag = 'input window, operand 8, single buffered']
    #allocation10 [shape = 's32[1]{0}', space=sflag, size = 0x4, scoped, tag = 'scoped memory for tpu_custom_call.1']
    #allocation11 [shape = 'u8[65536]{0}', space=vmem, size = 0x10000, scoped, tag = 'input window, operand 9, single buffered']
    #allocation12 [shape = 'u8[2048]{0}', space=vmem, size = 0x800, scoped, tag = 'output window, operand 0, single buffered']
    %16 = vsyncpa [#allocation4], 0
    %17 = vsyncpa [#allocation7], 0
    %18 = vsyncpa [#allocation10], 0
    %19 = vsyncpa [#allocation5], 0
    // Predicated region
    $region2: #{tpu_custom_call.1} parent=1 // pred_check
      _
    $region3: #{tpu_custom_call.1} parent=1 // pred_check_branch
      %21 = sbr.rel (0) target = $region5
    $region4: #{tpu_custom_call.1} parent=1 // pred_region
      _
    $region5: #{tpu_custom_call.1} parent=1 // pred_fallthru
      _
    // Predicated region
    $region6: #{tpu_custom_call.1} parent=1 // pred_check
      _
    $region7: #{tpu_custom_call.1} parent=1 // pred_check_branch
      %23 = sbr.rel (0) target = $region9
    $region8: #{tpu_custom_call.1} parent=1 // pred_region
      _
    $region9: #{tpu_custom_call.1} parent=1 // pred_fallthru
      _
    // Predicated region
    $region10: #{tpu_custom_call.1} parent=1 // pred_check
      _
    $region11: #{tpu_custom_call.1} parent=1 // pred_check_branch
      %25 = sbr.rel (0) target = $region13
    $region12: #{tpu_custom_call.1} parent=1 // pred_region
      %s27 = ssub.s32 64, 64
      %28 = vsyncadd [#allocation4], %s27
      %s30 = sshll.u32 [#allocation3], 4
      %s31 = int_to_ptr.vmem [resolvable:$true] %s30
      %33 = dma.hbm_to_vmem [thread:$0]  %s2, 64, %s31, [#allocation4]
    $region13: #{tpu_custom_call.1} parent=1 // pred_fallthru
      _
    // Predicated region
    $region14: #{tpu_custom_call.1} parent=1 // pred_check
      _
    $region15: #{tpu_custom_call.1} parent=1 // pred_check_branch
      %35 = sbr.rel (0) target = $region17
    $region16: #{tpu_custom_call.1} parent=1 // pred_region
      _
    $region17: #{tpu_custom_call.1} parent=1 // pred_fallthru
      _
    // Predicated region
    $region18: #{tpu_custom_call.1} parent=1 // pred_check
      _
    $region19: #{tpu_custom_call.1} parent=1 // pred_check_branch
      %37 = sbr.rel (0) target = $region21
    $region20: #{tpu_custom_call.1} parent=1 // pred_region
      %s39 = ssub.s32 32, 32
      %40 = vsyncadd [#allocation7], %s39
      %s42 = sshll.u32 [#allocation6], 4
      %s43 = int_to_ptr.vmem [resolvable:$true] %s42
      %45 = dma.hbm_to_vmem [thread:$0]  %s4, 32, %s43, [#allocation7]
    $region21: #{tpu_custom_call.1} parent=1 // pred_fallthru
      _
    // Predicated region
    $region22: #{tpu_custom_call.1} parent=1 // pred_check
      _
    $region23: #{tpu_custom_call.1} parent=1 // pred_check_branch
      %47 = sbr.rel (0) target = $region25
    $region24: #{tpu_custom_call.1} parent=1 // pred_region
      %s49 = ssub.s32 16, 16
      %50 = vsyncadd [#allocation7], %s49
      %s52 = sshll.u32 [#allocation8], 4
      %s53 = int_to_ptr.vmem [resolvable:$true] %s52
      %55 = dma.hbm_to_vmem [thread:$0]  %s5, 16, %s53, [#allocation7]
    $region25: #{tpu_custom_call.1} parent=1 // pred_fallthru
      _
    // Predicated region
    $region26: #{tpu_custom_call.1} parent=1 // pred_check
      _
    $region27: #{tpu_custom_call.1} parent=1 // pred_check_branch
      %57 = sbr.rel (0) target = $region29
    $region28: #{tpu_custom_call.1} parent=1 // pred_region
      _
    $region29: #{tpu_custom_call.1} parent=1 // pred_fallthru
      _
    // Predicated region
    $region30: #{tpu_custom_call.1} parent=1 // pred_check
      _
    $region31: #{tpu_custom_call.1} parent=1 // pred_check_branch
      %59 = sbr.rel (0) target = $region33
    $region32: #{tpu_custom_call.1} parent=1 // pred_region
      _
    $region33: #{tpu_custom_call.1} parent=1 // pred_fallthru
      _
    // Predicated region
    $region34: #{tpu_custom_call.1} parent=1 // pred_check
      _
    $region35: #{tpu_custom_call.1} parent=1 // pred_check_branch
      %61 = sbr.rel (0) target = $region37
    $region36: #{tpu_custom_call.1} parent=1 // pred_region
      %s63 = ssub.s32 12288, 12288
      %64 = vsyncadd [#allocation10], %s63
      %s65 = sshll.u32 [#allocation9], 4
      %s66 = int_to_ptr.vmem [resolvable:$true] %s65
      %71 = dma.hbm_to_vmem [thread:$0]  %s8, 12288, %s66, [#allocation10], 384, 384, 24
    $region37: #{tpu_custom_call.1} parent=1 // pred_fallthru
      _
    // Predicated region
    $region38: #{tpu_custom_call.1} parent=1 // pred_check
      _
    $region39: #{tpu_custom_call.1} parent=1 // pred_check_branch
      %73 = sbr.rel (0) target = $region41
    $region40: #{tpu_custom_call.1} parent=1 // pred_region
      %s75 = ssub.s32 2048, 2048
      %76 = vsyncadd [#allocation10], %s75
      %s77 = sshll.u32 [#allocation11], 4
      %s78 = int_to_ptr.vmem [resolvable:$true] %s77
      %83 = dma.hbm_to_vmem [thread:$0]  %s9, 2048, %s78, [#allocation10], 128, 128, 8
    $region41: #{tpu_custom_call.1} parent=1 // pred_fallthru
      _
    // Predicated region
    $region42: #{tpu_custom_call.1} parent=1 // pred_check
      _
    $region43: #{tpu_custom_call.1} parent=1 // pred_check_branch
      %85 = sbr.rel (0) target = $region45
    $region44: #{tpu_custom_call.1} parent=1 // pred_region
      _
    $region45: #{tpu_custom_call.1} parent=1 // pred_fallthru
      _
    // Predicated region
    $region46: #{tpu_custom_call.1} parent=1 // pred_check
      _
    $region47: #{tpu_custom_call.1} parent=1 // pred_check_branch
      %87 = sbr.rel (0) target = $region49
    $region48: #{tpu_custom_call.1} parent=1 // pred_region
      %88 = dma.done [#allocation4], 64
    $region49: #{tpu_custom_call.1} parent=1 // pred_fallthru
      _
    // Predicated region
    $region50: #{tpu_custom_call.1} parent=1 // pred_check
      _
    $region51: #{tpu_custom_call.1} parent=1 // pred_check_branch
      %90 = sbr.rel (0) target = $region53
    $region52: #{tpu_custom_call.1} parent=1 // pred_region
      %91 = dma.done [#allocation7], 32
    $region53: #{tpu_custom_call.1} parent=1 // pred_fallthru
      _
    // Predicated region
    $region54: #{tpu_custom_call.1} parent=1 // pred_check
      _
    $region55: #{tpu_custom_call.1} parent=1 // pred_check_branch
      %93 = sbr.rel (0) target = $region57
    $region56: #{tpu_custom_call.1} parent=1 // pred_region
      %94 = dma.done [#allocation7], 16
    $region57: #{tpu_custom_call.1} parent=1 // pred_fallthru
      _
    // Predicated region
    $region58: #{tpu_custom_call.1} parent=1 // pred_check
      _
    $region59: #{tpu_custom_call.1} parent=1 // pred_check_branch
      %96 = sbr.rel (0) target = $region61
    $region60: #{tpu_custom_call.1} parent=1 // pred_region
      %97 = dma.done [#allocation10], 12288
    $region61: #{tpu_custom_call.1} parent=1 // pred_fallthru
      _
    // Predicated region
    $region62: #{tpu_custom_call.1} parent=1 // pred_check
      _
    $region63: #{tpu_custom_call.1} parent=1 // pred_check_branch
      %99 = sbr.rel (0) target = $region65
    $region64: #{tpu_custom_call.1} parent=1 // pred_region
      %100 = dma.done [#allocation10], 2048
    $region65: #{tpu_custom_call.1} parent=1 // pred_fallthru
      _
    %p101 = scmp.eq.s32.totalorder 0, 0
    // Predicated region
    $region66: #{tpu_custom_call.1} parent=1 // pred_check
      %p102 = pneg %p101
    $region67: #{tpu_custom_call.1} parent=1 // pred_check_branch
      %104 = sbr.rel (%p102) target = $region69
    $region68: #{tpu_custom_call.1} parent=1 // pred_region
      %v105 = vld [vmem:[#allocation8] sm:$0x1]
      %106 = vst [vmem:[#allocation2] sm:$0x1] %v105
    $region69: #{tpu_custom_call.1} parent=1 // pred_fallthru
      _
    %v107 = vld [vmem:[#allocation3] sm:$0xf]
    %v108 = vld [vmem:[%s3] sm:$0xff]
    %v109 = vld [vmem:[%s3 + $0x8] sm:$0xff]
    %v110 = vld [vmem:[#allocation6] sm:$0x3]
    %v111 = vld [vmem:[%s6] sm:$0xff]
    %v112 = vld [vmem:[%s6 + $0x8] sm:$0xff]
    %v113 = vld [vmem:[%s7] sm:$0xff]
    %v114 = vld [vmem:[#allocation9] sm:$0xff]
    %v115 = vld [vmem:[#allocation9 + $0x8] sm:$0xff]
    %v116 = vld [vmem:[#allocation9 + $0x10] sm:$0xff]
    %v117 = vld [vmem:[#allocation9 + $0x18] sm:$0xff]
    %v118 = vld [vmem:[#allocation9 + $0x20] sm:$0xff]
    %v119 = vld [vmem:[#allocation9 + $0x28] sm:$0xff]
    %v120 = vld [vmem:[#allocation9 + $0x30] sm:$0xff]
    %v121 = vld [vmem:[#allocation9 + $0x38] sm:$0xff]
    %v122 = vld [vmem:[#allocation9 + $0x40] sm:$0xff]
    %v123 = vld [vmem:[#allocation9 + $0x48] sm:$0xff]
    %v124 = vld [vmem:[#allocation9 + $0x50] sm:$0xff]
    %v125 = vld [vmem:[#allocation9 + $0x58] sm:$0xff]
    %v126 = vld [vmem:[#allocation9 + $0x60] sm:$0xff]
    %v127 = vld [vmem:[#allocation9 + $0x68] sm:$0xff]
    %v128 = vld [vmem:[#allocation9 + $0x70] sm:$0xff]
    %v129 = vld [vmem:[#allocation9 + $0x78] sm:$0xff]
    %v130 = vld [vmem:[#allocation9 + $0x80] sm:$0xff]
    %v131 = vld [vmem:[#allocation9 + $0x88] sm:$0xff]
    %v132 = vld [vmem:[#allocation9 + $0x90] sm:$0xff]
    %v133 = vld [vmem:[#allocation9 + $0x98] sm:$0xff]
    %v134 = vld [vmem:[#allocation9 + $0xa0] sm:$0xff]
    %v135 = vld [vmem:[#allocation9 + $0xa8] sm:$0xff]
    %v136 = vld [vmem:[#allocation9 + $0xb0] sm:$0xff]
    %v137 = vld [vmem:[#allocation9 + $0xb8] sm:$0xff]
    %v138 = vld [vmem:[#allocation9 + $0xc0] sm:$0xff]
    %v139 = vld [vmem:[#allocation9 + $0xc8] sm:$0xff]
    %v140 = vld [vmem:[#allocation9 + $0xd0] sm:$0xff]
    %v141 = vld [vmem:[#allocation9 + $0xd8] sm:$0xff]
    %v142 = vld [vmem:[#allocation9 + $0xe0] sm:$0xff]
    %v143 = vld [vmem:[#allocation9 + $0xe8] sm:$0xff]
    %v144 = vld [vmem:[#allocation9 + $0xf0] sm:$0xff]
    %v145 = vld [vmem:[#allocation9 + $0xf8] sm:$0xff]
    %v146 = vld [vmem:[#allocation9 + $0x100] sm:$0xff]
    %v147 = vld [vmem:[#allocation9 + $0x108] sm:$0xff]
    %v148 = vld [vmem:[#allocation9 + $0x110] sm:$0xff]
    %v149 = vld [vmem:[#allocation9 + $0x118] sm:$0xff]
    %v150 = vld [vmem:[#allocation9 + $0x120] sm:$0xff]
    %v151 = vld [vmem:[#allocation9 + $0x128] sm:$0xff]
    %v152 = vld [vmem:[#allocation9 + $0x130] sm:$0xff]
    %v153 = vld [vmem:[#allocation9 + $0x138] sm:$0xff]
    %v154 = vld [vmem:[#allocation9 + $0x140] sm:$0xff]
    %v155 = vld [vmem:[#allocation9 + $0x148] sm:$0xff]
    %v156 = vld [vmem:[#allocation9 + $0x150] sm:$0xff]
    %v157 = vld [vmem:[#allocation9 + $0x158] sm:$0xff]
    %v158 = vld [vmem:[#allocation9 + $0x160] sm:$0xff]
    %v159 = vld [vmem:[#allocation9 + $0x168] sm:$0xff]
    %v160 = vld [vmem:[#allocation9 + $0x170] sm:$0xff]
    %v161 = vld [vmem:[#allocation9 + $0x178] sm:$0xff]
    %v162 = vld [vmem:[#allocation9 + $0x180] sm:$0xff]
    %v163 = vld [vmem:[#allocation9 + $0x188] sm:$0xff]
    %v164 = vld [vmem:[#allocation9 + $0x190] sm:$0xff]
    %v165 = vld [vmem:[#allocation9 + $0x198] sm:$0xff]
    %v166 = vld [vmem:[#allocation9 + $0x1a0] sm:$0xff]
    %v167 = vld [vmem:[#allocation9 + $0x1a8] sm:$0xff]
    %v168 = vld [vmem:[#allocation9 + $0x1b0] sm:$0xff]
    %v169 = vld [vmem:[#allocation9 + $0x1b8] sm:$0xff]
    %v170 = vld [vmem:[#allocation9 + $0x1c0] sm:$0xff]
    %v171 = vld [vmem:[#allocation9 + $0x1c8] sm:$0xff]
    %v172 = vld [vmem:[#allocation9 + $0x1d0] sm:$0xff]
    %v173 = vld [vmem:[#allocation9 + $0x1d8] sm:$0xff]
    %v174 = vld [vmem:[#allocation9 + $0x1e0] sm:$0xff]
    %v175 = vld [vmem:[#allocation9 + $0x1e8] sm:$0xff]
    %v176 = vld [vmem:[#allocation9 + $0x1f0] sm:$0xff]
    %v177 = vld [vmem:[#allocation9 + $0x1f8] sm:$0xff]
    %v178 = vld [vmem:[#allocation9 + $0x200] sm:$0xff]
    %v179 = vld [vmem:[#allocation9 + $0x208] sm:$0xff]
    %v180 = vld [vmem:[#allocation9 + $0x210] sm:$0xff]
    %v181 = vld [vmem:[#allocation9 + $0x218] sm:$0xff]
    %v182 = vld [vmem:[#allocation9 + $0x220] sm:$0xff]
    %v183 = vld [vmem:[#allocation9 + $0x228] sm:$0xff]
    %v184 = vld [vmem:[#allocation9 + $0x230] sm:$0xff]
    %v185 = vld [vmem:[#allocation9 + $0x238] sm:$0xff]
    %v186 = vld [vmem:[#allocation9 + $0x240] sm:$0xff]
    %v187 = vld [vmem:[#allocation9 + $0x248] sm:$0xff]
    %v188 = vld [vmem:[#allocation9 + $0x250] sm:$0xff]
    %v189 = vld [vmem:[#allocation9 + $0x258] sm:$0xff]
    %v190 = vld [vmem:[#allocation9 + $0x260] sm:$0xff]
    %v191 = vld [vmem:[#allocation9 + $0x268] sm:$0xff]
    %v192 = vld [vmem:[#allocation9 + $0x270] sm:$0xff]
    %v193 = vld [vmem:[#allocation9 + $0x278] sm:$0xff]
    %v194 = vld [vmem:[#allocation9 + $0x280] sm:$0xff]
    %v195 = vld [vmem:[#allocation9 + $0x288] sm:$0xff]
    %v196 = vld [vmem:[#allocation9 + $0x290] sm:$0xff]
    %v197 = vld [vmem:[#allocation9 + $0x298] sm:$0xff]
    %v198 = vld [vmem:[#allocation9 + $0x2a0] sm:$0xff]
    %v199 = vld [vmem:[#allocation9 + $0x2a8] sm:$0xff]
    %v200 = vld [vmem:[#allocation9 + $0x2b0] sm:$0xff]
    %v201 = vld [vmem:[#allocation9 + $0x2b8] sm:$0xff]
    %v202 = vld [vmem:[#allocation9 + $0x2c0] sm:$0xff]
    %v203 = vld [vmem:[#allocation9 + $0x2c8] sm:$0xff]
    %v204 = vld [vmem:[#allocation9 + $0x2d0] sm:$0xff]
    %v205 = vld [vmem:[#allocation9 + $0x2d8] sm:$0xff]
    %v206 = vld [vmem:[#allocation9 + $0x2e0] sm:$0xff]
    %v207 = vld [vmem:[#allocation9 + $0x2e8] sm:$0xff]
    %v208 = vld [vmem:[#allocation9 + $0x2f0] sm:$0xff]
    %v209 = vld [vmem:[#allocation9 + $0x2f8] sm:$0xff]
    %v210 = vld [vmem:[#allocation11] sm:$0xff]
    %v211 = vld [vmem:[#allocation11 + $0x8] sm:$0xff]
    %v212 = vld [vmem:[#allocation11 + $0x10] sm:$0xff]
    %v213 = vld [vmem:[#allocation11 + $0x18] sm:$0xff]
    %v214 = vld [vmem:[#allocation11 + $0x20] sm:$0xff]
    %v215 = vld [vmem:[#allocation11 + $0x28] sm:$0xff]
    %v216 = vld [vmem:[#allocation11 + $0x30] sm:$0xff]
    %v217 = vld [vmem:[#allocation11 + $0x38] sm:$0xff]
    %v218 = vld [vmem:[#allocation11 + $0x40] sm:$0xff]
    %v219 = vld [vmem:[#allocation11 + $0x48] sm:$0xff]
    %v220 = vld [vmem:[#allocation11 + $0x50] sm:$0xff]
    %v221 = vld [vmem:[#allocation11 + $0x58] sm:$0xff]
    %v222 = vld [vmem:[#allocation11 + $0x60] sm:$0xff]
    %v223 = vld [vmem:[#allocation11 + $0x68] sm:$0xff]
    %v224 = vld [vmem:[#allocation11 + $0x70] sm:$0xff]
    %v225 = vld [vmem:[#allocation11 + $0x78] sm:$0xff]
    %v226 = vld [vmem:[%s10] sm:$0x7]
    %v227 = vld [vmem:[#allocation2] sm:$0x1]
    %v228 = vld [vmem:[%s0] sm:$0xff]
    %v229 = vld [vmem:[%s1] sm:$0xff]
    %vm230 = vcmask 31744
    %v232 = vsel %vm230, %v229, 0
    %vm234 = vcmask 1043456
    %v236 = vsel %vm234, %v107, 0
    %238 = vmatprep.subr.mxu0 0.0
    %239 = vmatpush1.msra.mxu0 0.0
    %240 = vmatprep.subr.mxu0 0.0
    %241 = vmatpush1.msra.mxu0 0.0
    %242 = vmatprep.subr.mxu0 0.0
    %243 = vmatpush1.msra.mxu0 0.0
    %244 = vmatprep.subr.mxu0 0.0
    %245 = vmatpush1.msra.mxu0 0.0
    %246 = vmatprep.subr.mxu0 0.0
    %247 = vmatpush1.msra.mxu0 0.0
    %248 = vmatprep.subr.mxu0 0.0
    %249 = vmatpush1.msra.mxu0 0.0
    %250 = vmatprep.subr.mxu0 0.0
    %251 = vmatpush1.msra.mxu0 0.0
    %252 = vmatprep.subr.mxu0 0.0
    %253 = vmatpush1.msra.mxu0 0.0
    %254 = vmatprep.subr.mxu0 0.0
    %255 = vmatpush1.msra.mxu0 0.0
    %256 = vmatprep.subr.mxu0 0.0
    %257 = vmatpush1.msra.mxu0 0.0
    %258 = vmatprep.subr.mxu0 0.0
    %259 = vmatpush1.msra.mxu0 0.0
    %260 = vmatprep.subr.mxu0 0.0
    %261 = vmatpush1.msra.mxu0 0.0
    %262 = vmatprep.subr.mxu0 0.0
    %263 = vmatpush1.msra.mxu0 0.0
    %264 = vmatprep.subr.mxu0 0.0
    %265 = vmatpush1.msra.mxu0 0.0
    %266 = vmatprep.subr.mxu0 0.0
    %267 = vmatpush1.msra.mxu0 0.0
    %268 = vmatprep.subr.mxu0 0.0
    %269 = vmatpush1.msra.mxu0 %v236
    %270 = vmatprep.subr.mxu0 0.0
    %271 = vmatpush2.msra.mxu0 0.0
    %272 = vmatprep.subr.mxu0 0.0
    %273 = vmatpush2.msra.mxu0 0.0
    %274 = vmatprep.subr.mxu0 0.0
    %275 = vmatpush2.msra.mxu0 0.0
    %276 = vmatprep.subr.mxu0 0.0
    %277 = vmatpush2.msra.mxu0 0.0
    %278 = vmatprep.subr.mxu0 0.0
    %279 = vmatpush2.msra.mxu0 0.0
    %280 = vmatprep.subr.mxu0 0.0
    %281 = vmatpush2.msra.mxu0 0.0
    %282 = vmatprep.subr.mxu0 0.0
    %283 = vmatpush2.msra.mxu0 0.0
    %284 = vmatprep.subr.mxu0 0.0
    %285 = vmatpush2.msra.mxu0 0.0
    %286 = vmatprep.subr.mxu0 0.0
    %287 = vmatpush2.msra.mxu0 0.0
    %288 = vmatprep.subr.mxu0 0.0
    %289 = vmatpush2.msra.mxu0 0.0
    %290 = vmatprep.subr.mxu0 0.0
    %291 = vmatpush2.msra.mxu0 0.0
    %292 = vmatprep.subr.mxu0 0.0
    %293 = vmatpush2.msra.mxu0 0.0
    %294 = vmatprep.subr.mxu0 0.0
    %295 = vmatpush2.msra.mxu0 0.0
    %296 = vmatprep.subr.mxu0 0.0
    %297 = vmatpush2.msra.mxu0 0.0
    %298 = vmatprep.subr.mxu0 0.0
    %299 = vmatpush2.msra.mxu0 0.0
    %300 = vmatprep.subr.mxu0 0.0
    %301 = vmatpush2.msra.mxu0 0.0
    %302 = vmatprep.mubr.f32.mxu0 0.0
    %303 = vmatmul.mubr.f32.gmra.mxu0 %v232
    %v304 = vpop.f32.mrf.mxu0
    %v305 = vadd.f32 0.0, %v304
    %v306 = vpop.f32.mrf.mxu0
    %307 = vdwg.mxu0
    %vm308 = vcmask 130048
    %v310 = vsel %vm308, %v305, 0
    %312 = vmatprep.subr.mxu0 0.0
    %313 = vmatpush1.msra.mxu0 0.0
    %314 = vmatprep.subr.mxu0 0.0
    %315 = vmatpush1.msra.mxu0 0.0
    %316 = vmatprep.subr.mxu0 0.0
    %317 = vmatpush1.msra.mxu0 0.0
    %318 = vmatprep.subr.mxu0 0.0
    %319 = vmatpush1.msra.mxu0 0.0
    %320 = vmatprep.subr.mxu0 0.0
    %321 = vmatpush1.msra.mxu0 0.0
    %322 = vmatprep.subr.mxu0 0.0
    %323 = vmatpush1.msra.mxu0 0.0
    %324 = vmatprep.subr.mxu0 0.0
    %325 = vmatpush1.msra.mxu0 0.0
    %326 = vmatprep.subr.mxu0 0.0
    %327 = vmatpush1.msra.mxu0 0.0
    %328 = vmatprep.subr.mxu0 0.0
    %329 = vmatpush1.msra.mxu0 0.0
    %330 = vmatprep.subr.mxu0 0.0
    %331 = vmatpush1.msra.mxu0 0.0
    %332 = vmatprep.subr.mxu0 0.0
    %333 = vmatpush1.msra.mxu0 0.0
    %334 = vmatprep.subr.mxu0 0.0
    %335 = vmatpush1.msra.mxu0 0.0
    %336 = vmatprep.subr.mxu0 0.0
    %337 = vmatpush1.msra.mxu0 0.0
    %338 = vmatprep.subr.mxu0 0.0
    %339 = vmatpush1.msra.mxu0 0.0
    %340 = vmatprep.subr.mxu0 0.0
    %341 = vmatpush1.msra.mxu0 %v109
    %342 = vmatprep.subr.mxu0 0.0
    %343 = vmatpush1.msra.mxu0 %v108
    %344 = vmatprep.subr.mxu0 0.0
    %345 = vmatpush2.msra.mxu0 0.0
    %346 = vmatprep.subr.mxu0 0.0
    %347 = vmatpush2.msra.mxu0 0.0
    %348 = vmatprep.subr.mxu0 0.0
    %349 = vmatpush2.msra.mxu0 0.0
    %350 = vmatprep.subr.mxu0 0.0
    %351 = vmatpush2.msra.mxu0 0.0
    %352 = vmatprep.subr.mxu0 0.0
    %353 = vmatpush2.msra.mxu0 0.0
    %354 = vmatprep.subr.mxu0 0.0
    %355 = vmatpush2.msra.mxu0 0.0
    %356 = vmatprep.subr.mxu0 0.0
    %357 = vmatpush2.msra.mxu0 0.0
    %358 = vmatprep.subr.mxu0 0.0
    %359 = vmatpush2.msra.mxu0 0.0
    %360 = vmatprep.subr.mxu0 0.0
    %361 = vmatpush2.msra.mxu0 0.0
    %362 = vmatprep.subr.mxu0 0.0
    %363 = vmatpush2.msra.mxu0 0.0
    %364 = vmatprep.subr.mxu0 0.0
    %365 = vmatpush2.msra.mxu0 0.0
    %366 = vmatprep.subr.mxu0 0.0
    %367 = vmatpush2.msra.mxu0 0.0
    %368 = vmatprep.subr.mxu0 0.0
    %369 = vmatpush2.msra.mxu0 0.0
    %370 = vmatprep.subr.mxu0 0.0
    %371 = vmatpush2.msra.mxu0 0.0
    %372 = vmatprep.subr.mxu0 0.0
    %373 = vmatpush2.msra.mxu0 0.0
    %374 = vmatprep.subr.mxu0 0.0
    %375 = vmatpush2.msra.mxu0 0.0
    %376 = vmatprep.mubr.f32.mxu0 0.0
    %377 = vmatmul.mubr.f32.gmra.mxu0 %v310
    %v378 = vpop.f32.mrf.mxu0
    %v379 = vadd.f32 0.0, %v378
    %v380 = vpop.f32.mrf.mxu0
    %381 = vdwg.mxu0
    %v383 = vsel %vm308, %v110, 0
    %385 = vmatprep.subr.mxu0 0.0
    %386 = vmatpush1.xpose.msra.mxu0 0.0
    %387 = vmatprep.subr.mxu0 0.0
    %388 = vmatpush1.xpose.msra.mxu0 0.0
    %389 = vmatprep.subr.mxu0 0.0
    %390 = vmatpush1.xpose.msra.mxu0 0.0
    %391 = vmatprep.subr.mxu0 0.0
    %392 = vmatpush1.xpose.msra.mxu0 0.0
    %393 = vmatprep.subr.mxu0 0.0
    %394 = vmatpush1.xpose.msra.mxu0 0.0
    %395 = vmatprep.subr.mxu0 0.0
    %396 = vmatpush1.xpose.msra.mxu0 0.0
    %397 = vmatprep.subr.mxu0 0.0
    %398 = vmatpush1.xpose.msra.mxu0 0.0
    %399 = vmatprep.subr.mxu0 0.0
    %400 = vmatpush1.xpose.msra.mxu0 0.0
    %401 = vmatprep.subr.mxu0 0.0
    %402 = vmatpush1.xpose.msra.mxu0 0.0
    %403 = vmatprep.subr.mxu0 0.0
    %404 = vmatpush1.xpose.msra.mxu0 0.0
    %405 = vmatprep.subr.mxu0 0.0
    %406 = vmatpush1.xpose.msra.mxu0 0.0
    %407 = vmatprep.subr.mxu0 0.0
    %408 = vmatpush1.xpose.msra.mxu0 0.0
    %409 = vmatprep.subr.mxu0 0.0
    %410 = vmatpush1.xpose.msra.mxu0 0.0
    %411 = vmatprep.subr.mxu0 0.0
    %412 = vmatpush1.xpose.msra.mxu0 0.0
    %413 = vmatprep.subr.mxu0 0.0
    %414 = vmatpush1.xpose.msra.mxu0 0.0
    %415 = vmatprep.subr.mxu0 0.0
    %416 = vmatpush1.xpose.msra.mxu0 %v310
    %417 = vmatprep.subr.mxu0 0.0
    %418 = vmatpush2.xpose.msra.mxu0 0.0
    %419 = vmatprep.subr.mxu0 0.0
    %420 = vmatpush2.xpose.msra.mxu0 0.0
    %421 = vmatprep.subr.mxu0 0.0
    %422 = vmatpush2.xpose.msra.mxu0 0.0
    %423 = vmatprep.subr.mxu0 0.0
    %424 = vmatpush2.xpose.msra.mxu0 0.0
    %425 = vmatprep.subr.mxu0 0.0
    %426 = vmatpush2.xpose.msra.mxu0 0.0
    %427 = vmatprep.subr.mxu0 0.0
    %428 = vmatpush2.xpose.msra.mxu0 0.0
    %429 = vmatprep.subr.mxu0 0.0
    %430 = vmatpush2.xpose.msra.mxu0 0.0
    %431 = vmatprep.subr.mxu0 0.0
    %432 = vmatpush2.xpose.msra.mxu0 0.0
    %433 = vmatprep.subr.mxu0 0.0
    %434 = vmatpush2.xpose.msra.mxu0 0.0
    %435 = vmatprep.subr.mxu0 0.0
    %436 = vmatpush2.xpose.msra.mxu0 0.0
    %437 = vmatprep.subr.mxu0 0.0
    %438 = vmatpush2.xpose.msra.mxu0 0.0
    %439 = vmatprep.subr.mxu0 0.0
    %440 = vmatpush2.xpose.msra.mxu0 0.0
    %441 = vmatprep.subr.mxu0 0.0
    %442 = vmatpush2.xpose.msra.mxu0 0.0
    %443 = vmatprep.subr.mxu0 0.0
    %444 = vmatpush2.xpose.msra.mxu0 0.0
    %445 = vmatprep.subr.mxu0 0.0
    %446 = vmatpush2.xpose.msra.mxu0 0.0
    %447 = vmatprep.subr.mxu0 0.0
    %448 = vmatpush2.xpose.msra.mxu0 0.0
    %449 = vmatprep.mubr.f32.mxu0 0.0
    %450 = vmatmul.mubr.f32.gmra.mxu0 %v383
    %v451 = vpop.f32.mrf.mxu0
    %v452 = vadd.f32 0.0, %v451
    %v453 = vpop.f32.mrf.mxu0
    %454 = vdwg.mxu0
    %456 = vset.pattern.permute.xlu0 0
    %457 = vperm.xlu0 %456, %v379
    %v458 = vpop.permute.xlu0 %457
    %v460 = vlaneseq
    %v461 = vshrl.u32 %v460, 7
    %v462 = vsub.s32 0, %v461
    %v463 = vrot.slane %v452, %v462
    %v464 = vadd.f32 %v458, %v463
    %vm465 = vcmp.gt.f32.partialorder %v464, 0.0
    %v466 = vmul.f32 %v464, 0.2
    %v467 = vsel %vm465, %v464, %v466
    %vm468 = vcmp.gt.f32.partialorder %v228, 0.0
    %v469 = vsel %vm468, %v467, -9e+15
    %vm470 = vcmask 64512
    %v471 = vsel %vm470, %v469, -inf
    %472 = vmax.xlane.f32.xlu0 %v471
    %v473 = vpop.xlane.xlu0 %472
    %v474 = vsub.f32 %v469, %v473
    %v475 = vmul.f32 %v474, 1.442695
    %v476 = vpow.pop %v475
    %v477 = vsel %vm470, %v476, 0.0
    %478 = vadd.xlane.f32.xlu0 %v477
    %v479 = vpop.xlane.xlu0 %478
    %v480 = vrcp.pop %v479
    %v481 = vmul.f32 %v476, %v480
    %v483 = vsel %vm470, %v481, 0
    %485 = vmatprep.subr.mxu0 0.0
    %486 = vmatpush1.msra.mxu0 0.0
    %487 = vmatprep.subr.mxu0 0.0
    %488 = vmatpush1.msra.mxu0 0.0
    %489 = vmatprep.subr.mxu0 0.0
    %490 = vmatpush1.msra.mxu0 0.0
    %491 = vmatprep.subr.mxu0 0.0
    %492 = vmatpush1.msra.mxu0 0.0
    %493 = vmatprep.subr.mxu0 0.0
    %494 = vmatpush1.msra.mxu0 0.0
    %495 = vmatprep.subr.mxu0 0.0
    %496 = vmatpush1.msra.mxu0 0.0
    %497 = vmatprep.subr.mxu0 0.0
    %498 = vmatpush1.msra.mxu0 0.0
    %499 = vmatprep.subr.mxu0 0.0
    %500 = vmatpush1.msra.mxu0 0.0
    %501 = vmatprep.subr.mxu0 0.0
    %502 = vmatpush1.msra.mxu0 0.0
    %503 = vmatprep.subr.mxu0 0.0
    %504 = vmatpush1.msra.mxu0 0.0
    %505 = vmatprep.subr.mxu0 0.0
    %506 = vmatpush1.msra.mxu0 0.0
    %507 = vmatprep.subr.mxu0 0.0
    %508 = vmatpush1.msra.mxu0 0.0
    %509 = vmatprep.subr.mxu0 0.0
    %510 = vmatpush1.msra.mxu0 0.0
    %511 = vmatprep.subr.mxu0 0.0
    %512 = vmatpush1.msra.mxu0 0.0
    %513 = vmatprep.subr.mxu0 0.0
    %514 = vmatpush1.msra.mxu0 0.0
    %515 = vmatprep.subr.mxu0 0.0
    %516 = vmatpush1.msra.mxu0 %v305
    %517 = vmatprep.subr.mxu0 0.0
    %518 = vmatpush2.msra.mxu0 0.0
    %519 = vmatprep.subr.mxu0 0.0
    %520 = vmatpush2.msra.mxu0 0.0
    %521 = vmatprep.subr.mxu0 0.0
    %522 = vmatpush2.msra.mxu0 0.0
    %523 = vmatprep.subr.mxu0 0.0
    %524 = vmatpush2.msra.mxu0 0.0
    %525 = vmatprep.subr.mxu0 0.0
    %526 = vmatpush2.msra.mxu0 0.0
    %527 = vmatprep.subr.mxu0 0.0
    %528 = vmatpush2.msra.mxu0 0.0
    %529 = vmatprep.subr.mxu0 0.0
    %530 = vmatpush2.msra.mxu0 0.0
    %531 = vmatprep.subr.mxu0 0.0
    %532 = vmatpush2.msra.mxu0 0.0
    %533 = vmatprep.subr.mxu0 0.0
    %534 = vmatpush2.msra.mxu0 0.0
    %535 = vmatprep.subr.mxu0 0.0
    %536 = vmatpush2.msra.mxu0 0.0
    %537 = vmatprep.subr.mxu0 0.0
    %538 = vmatpush2.msra.mxu0 0.0
    %539 = vmatprep.subr.mxu0 0.0
    %540 = vmatpush2.msra.mxu0 0.0
    %541 = vmatprep.subr.mxu0 0.0
    %542 = vmatpush2.msra.mxu0 0.0
    %543 = vmatprep.subr.mxu0 0.0
    %544 = vmatpush2.msra.mxu0 0.0
    %545 = vmatprep.subr.mxu0 0.0
    %546 = vmatpush2.msra.mxu0 0.0
    %547 = vmatprep.subr.mxu0 0.0
    %548 = vmatpush2.msra.mxu0 0.0
    %549 = vmatprep.mubr.f32.mxu0 0.0
    %550 = vmatmul.mubr.f32.gmra.mxu0 %v483
    %v551 = vpop.f32.mrf.mxu0
    %v552 = vadd.f32 0.0, %v551
    %v553 = vpop.f32.mrf.mxu0
    %554 = vdwg.mxu0
    %555 = vset.pattern.permute.xlu0 1
    %556 = vperm.xlu0 %555, %v379
    %v557 = vpop.permute.xlu0 %556
    %v559 = vlaneseq
    %v560 = vshrl.u32 %v559, 7
    %v561 = vsub.s32 1, %v560
    %v562 = vrot.slane %v452, %v561
    %v563 = vadd.f32 %v557, %v562
    %vm564 = vcmp.gt.f32.partialorder %v563, 0.0
    %v565 = vmul.f32 %v563, 0.2
    %v566 = vsel %vm564, %v563, %v565
    %v567 = vsel %vm468, %v566, -9e+15
    %v568 = vsel %vm470, %v567, -inf
    %569 = vmax.xlane.f32.xlu0 %v568
    %v570 = vpop.xlane.xlu0 %569
    %v571 = vsub.f32 %v567, %v570
    %v572 = vmul.f32 %v571, 1.442695
    %v573 = vpow.pop %v572
    %v574 = vsel %vm470, %v573, 0.0
    %575 = vadd.xlane.f32.xlu0 %v574
    %v576 = vpop.xlane.xlu0 %575
    %v577 = vrcp.pop %v576
    %v578 = vmul.f32 %v573, %v577
    %579 = vrot.lane.b32.xlu0 %v305, 120
    %v580 = vpop.permute.xlu0 %579
    %v583 = vsel %vm470, %v578, 0
    %585 = vmatprep.subr.mxu0 0.0
    %586 = vmatpush1.msra.mxu0 0.0
    %587 = vmatprep.subr.mxu0 0.0
    %588 = vmatpush1.msra.mxu0 0.0
    %589 = vmatprep.subr.mxu0 0.0
    %590 = vmatpush1.msra.mxu0 0.0
    %591 = vmatprep.subr.mxu0 0.0
    %592 = vmatpush1.msra.mxu0 0.0
    %593 = vmatprep.subr.mxu0 0.0
    %594 = vmatpush1.msra.mxu0 0.0
    %595 = vmatprep.subr.mxu0 0.0
    %596 = vmatpush1.msra.mxu0 0.0
    %597 = vmatprep.subr.mxu0 0.0
    %598 = vmatpush1.msra.mxu0 0.0
    %599 = vmatprep.subr.mxu0 0.0
    %600 = vmatpush1.msra.mxu0 0.0
    %601 = vmatprep.subr.mxu0 0.0
    %602 = vmatpush1.msra.mxu0 0.0
    %603 = vmatprep.subr.mxu0 0.0
    %604 = vmatpush1.msra.mxu0 0.0
    %605 = vmatprep.subr.mxu0 0.0
    %606 = vmatpush1.msra.mxu0 0.0
    %607 = vmatprep.subr.mxu0 0.0
    %608 = vmatpush1.msra.mxu0 0.0
    %609 = vmatprep.subr.mxu0 0.0
    %610 = vmatpush1.msra.mxu0 0.0
    %611 = vmatprep.subr.mxu0 0.0
    %612 = vmatpush1.msra.mxu0 0.0
    %613 = vmatprep.subr.mxu0 0.0
    %614 = vmatpush1.msra.mxu0 0.0
    %615 = vmatprep.subr.mxu0 0.0
    %616 = vmatpush1.msra.mxu0 %v580
    %617 = vmatprep.subr.mxu0 0.0
    %618 = vmatpush2.msra.mxu0 0.0
    %619 = vmatprep.subr.mxu0 0.0
    %620 = vmatpush2.msra.mxu0 0.0
    %621 = vmatprep.subr.mxu0 0.0
    %622 = vmatpush2.msra.mxu0 0.0
    %623 = vmatprep.subr.mxu0 0.0
    %624 = vmatpush2.msra.mxu0 0.0
    %625 = vmatprep.subr.mxu0 0.0
    %626 = vmatpush2.msra.mxu0 0.0
    %627 = vmatprep.subr.mxu0 0.0
    %628 = vmatpush2.msra.mxu0 0.0
    %629 = vmatprep.subr.mxu0 0.0
    %630 = vmatpush2.msra.mxu0 0.0
    %631 = vmatprep.subr.mxu0 0.0
    %632 = vmatpush2.msra.mxu0 0.0
    %633 = vmatprep.subr.mxu0 0.0
    %634 = vmatpush2.msra.mxu0 0.0
    %635 = vmatprep.subr.mxu0 0.0
    %636 = vmatpush2.msra.mxu0 0.0
    %637 = vmatprep.subr.mxu0 0.0
    %638 = vmatpush2.msra.mxu0 0.0
    %639 = vmatprep.subr.mxu0 0.0
    %640 = vmatpush2.msra.mxu0 0.0
    %641 = vmatprep.subr.mxu0 0.0
    %642 = vmatpush2.msra.mxu0 0.0
    %643 = vmatprep.subr.mxu0 0.0
    %644 = vmatpush2.msra.mxu0 0.0
    %645 = vmatprep.subr.mxu0 0.0
    %646 = vmatpush2.msra.mxu0 0.0
    %647 = vmatprep.subr.mxu0 0.0
    %648 = vmatpush2.msra.mxu0 0.0
    %649 = vmatprep.mubr.f32.mxu0 0.0
    %650 = vmatmul.mubr.f32.gmra.mxu0 %v583
    %v651 = vpop.f32.mrf.mxu0
    %v652 = vadd.f32 0.0, %v651
    %v653 = vpop.f32.mrf.mxu0
    %654 = vdwg.mxu0
    %656 = vrot.lane.b32.xlu0 %v652, 8
    %v657 = vpop.permute.xlu0 %656
    %v659 = vsel %vm470, %v552, %v657
    %vm660 = vcmp.gt.f32.partialorder %v659, 0.0
    %v661 = vmul.f32 %v659, 1.442695
    %v662 = vpow.pop %v661
    %v663 = vsub.f32 %v662, 1.0
    %v664 = vsel %vm660, %v659, %v663
    %v666 = vsel %vm308, %v664, 0
    %668 = vmatprep.subr.mxu0 0.0
    %669 = vmatpush1.msra.mxu0 0.0
    %670 = vmatprep.subr.mxu0 0.0
    %671 = vmatpush1.msra.mxu0 0.0
    %672 = vmatprep.subr.mxu0 0.0
    %673 = vmatpush1.msra.mxu0 0.0
    %674 = vmatprep.subr.mxu0 0.0
    %675 = vmatpush1.msra.mxu0 0.0
    %676 = vmatprep.subr.mxu0 0.0
    %677 = vmatpush1.msra.mxu0 0.0
    %678 = vmatprep.subr.mxu0 0.0
    %679 = vmatpush1.msra.mxu0 0.0
    %680 = vmatprep.subr.mxu0 0.0
    %681 = vmatpush1.msra.mxu0 0.0
    %682 = vmatprep.subr.mxu0 0.0
    %683 = vmatpush1.msra.mxu0 0.0
    %684 = vmatprep.subr.mxu0 0.0
    %685 = vmatpush1.msra.mxu0 0.0
    %686 = vmatprep.subr.mxu0 0.0
    %687 = vmatpush1.msra.mxu0 0.0
    %688 = vmatprep.subr.mxu0 0.0
    %689 = vmatpush1.msra.mxu0 0.0
    %690 = vmatprep.subr.mxu0 0.0
    %691 = vmatpush1.msra.mxu0 0.0
    %692 = vmatprep.subr.mxu0 0.0
    %693 = vmatpush1.msra.mxu0 0.0
    %694 = vmatprep.subr.mxu0 0.0
    %695 = vmatpush1.msra.mxu0 0.0
    %696 = vmatprep.subr.mxu0 0.0
    %697 = vmatpush1.msra.mxu0 %v112
    %698 = vmatprep.subr.mxu0 0.0
    %699 = vmatpush1.msra.mxu0 %v111
    %700 = vmatprep.subr.mxu0 0.0
    %701 = vmatpush2.msra.mxu0 0.0
    %702 = vmatprep.subr.mxu0 0.0
    %703 = vmatpush2.msra.mxu0 0.0
    %704 = vmatprep.subr.mxu0 0.0
    %705 = vmatpush2.msra.mxu0 0.0
    %706 = vmatprep.subr.mxu0 0.0
    %707 = vmatpush2.msra.mxu0 0.0
    %708 = vmatprep.subr.mxu0 0.0
    %709 = vmatpush2.msra.mxu0 0.0
    %710 = vmatprep.subr.mxu0 0.0
    %711 = vmatpush2.msra.mxu0 0.0
    %712 = vmatprep.subr.mxu0 0.0
    %713 = vmatpush2.msra.mxu0 0.0
    %714 = vmatprep.subr.mxu0 0.0
    %715 = vmatpush2.msra.mxu0 0.0
    %716 = vmatprep.subr.mxu0 0.0
    %717 = vmatpush2.msra.mxu0 0.0
    %718 = vmatprep.subr.mxu0 0.0
    %719 = vmatpush2.msra.mxu0 0.0
    %720 = vmatprep.subr.mxu0 0.0
    %721 = vmatpush2.msra.mxu0 0.0
    %722 = vmatprep.subr.mxu0 0.0
    %723 = vmatpush2.msra.mxu0 0.0
    %724 = vmatprep.subr.mxu0 0.0
    %725 = vmatpush2.msra.mxu0 0.0
    %726 = vmatprep.subr.mxu0 0.0
    %727 = vmatpush2.msra.mxu0 0.0
    %728 = vmatprep.subr.mxu0 0.0
    %729 = vmatpush2.msra.mxu0 0.0
    %730 = vmatprep.subr.mxu0 0.0
    %731 = vmatpush2.msra.mxu0 0.0
    %732 = vmatprep.mubr.f32.mxu0 0.0
    %733 = vmatmul.mubr.f32.gmra.mxu0 %v666
    %v734 = vpop.f32.mrf.mxu0
    %v735 = vadd.f32 0.0, %v734
    %v736 = vpop.f32.mrf.mxu0
    %737 = vdwg.mxu0
    %v738 = vmul.f32 %v735, %v113
    %v739 = vrot.slane %v738, 4
    %v740 = vadd.f32 %v738, %v739
    %v741 = vrot.slane %v740, 2
    %v742 = vadd.f32 %v740, %v741
    %v743 = vrot.slane %v742, 1
    %v744 = vadd.f32 %v742, %v743
    %v746 = vlaneseq
    %v747 = vshrl.u32 %v746, 7
    %v748 = vsub.s32 0, %v747
    %v749 = vrot.slane %v226, %v748
    %v750 = vlaneseq
    %v751 = vshrl.u32 %v750, 7
    %v752 = vsub.s32 1, %v751
    %v753 = vrot.slane %v226, %v752
    %v754 = vlaneseq
    %v755 = vshrl.u32 %v754, 7
    %v756 = vsub.s32 2, %v755
    %v757 = vrot.slane %v226, %v756
    %761 = vmatprep.subr.mxu0 %v160
    %762 = vmatpush1.msra.mxu0 %v159
    %763 = vmatprep.subr.mxu0 %v157
    %764 = vmatpush1.msra.mxu0 %v156
    %765 = vmatprep.subr.mxu0 %v154
    %766 = vmatpush1.msra.mxu0 %v153
    %767 = vmatprep.subr.mxu0 %v151
    %768 = vmatpush1.msra.mxu0 %v150
    %769 = vmatprep.subr.mxu0 %v148
    %770 = vmatpush1.msra.mxu0 %v147
    %771 = vmatprep.subr.mxu0 %v145
    %772 = vmatpush1.msra.mxu0 %v144
    %773 = vmatprep.subr.mxu0 %v142
    %774 = vmatpush1.msra.mxu0 %v141
    %775 = vmatprep.subr.mxu0 %v139
    %776 = vmatpush1.msra.mxu0 %v138
    %777 = vmatprep.subr.mxu0 %v136
    %778 = vmatpush1.msra.mxu0 %v135
    %779 = vmatprep.subr.mxu0 %v133
    %780 = vmatpush1.msra.mxu0 %v132
    %781 = vmatprep.subr.mxu0 %v130
    %782 = vmatpush1.msra.mxu0 %v129
    %783 = vmatprep.subr.mxu0 %v127
    %784 = vmatpush1.msra.mxu0 %v126
    %785 = vmatprep.subr.mxu0 %v124
    %786 = vmatpush1.msra.mxu0 %v123
    %787 = vmatprep.subr.mxu0 %v121
    %788 = vmatpush1.msra.mxu0 %v120
    %789 = vmatprep.subr.mxu0 %v118
    %790 = vmatpush1.msra.mxu0 %v117
    %791 = vmatprep.subr.mxu0 %v115
    %792 = vmatpush1.msra.mxu0 %v114
    %793 = vmatprep.subr.mxu0 %v208
    %794 = vmatpush2.msra.mxu0 %v207
    %795 = vmatprep.subr.mxu0 %v205
    %796 = vmatpush2.msra.mxu0 %v204
    %797 = vmatprep.subr.mxu0 %v202
    %798 = vmatpush2.msra.mxu0 %v201
    %799 = vmatprep.subr.mxu0 %v199
    %800 = vmatpush2.msra.mxu0 %v198
    %801 = vmatprep.subr.mxu0 %v196
    %802 = vmatpush2.msra.mxu0 %v195
    %803 = vmatprep.subr.mxu0 %v193
    %804 = vmatpush2.msra.mxu0 %v192
    %805 = vmatprep.subr.mxu0 %v190
    %806 = vmatpush2.msra.mxu0 %v189
    %807 = vmatprep.subr.mxu0 %v187
    %808 = vmatpush2.msra.mxu0 %v186
    %809 = vmatprep.subr.mxu0 %v184
    %810 = vmatpush2.msra.mxu0 %v183
    %811 = vmatprep.subr.mxu0 %v181
    %812 = vmatpush2.msra.mxu0 %v180
    %813 = vmatprep.subr.mxu0 %v178
    %814 = vmatpush2.msra.mxu0 %v177
    %815 = vmatprep.subr.mxu0 %v175
    %816 = vmatpush2.msra.mxu0 %v174
    %817 = vmatprep.subr.mxu0 %v172
    %818 = vmatpush2.msra.mxu0 %v171
    %819 = vmatprep.subr.mxu0 %v169
    %820 = vmatpush2.msra.mxu0 %v168
    %821 = vmatprep.subr.mxu0 %v166
    %822 = vmatpush2.msra.mxu0 %v165
    %823 = vmatprep.subr.mxu0 %v163
    %824 = vmatpush2.msra.mxu0 %v162
    %825 = vmatprep.mubr.f32.mxu0 %v227
    %826 = vmatmul.mubr.f32.gmra.mxu0 %v744
    %v827 = vpop.f32.mrf.mxu0
    %v828 = vadd.f32 %v749, %v827
    %v829 = vpop.f32.mrf.mxu0
    %v830 = vadd.f32 %v753, %v829
    %831 = vdwg.mxu0
    %832 = vmatprep.subr.mxu0 0.0
    %833 = vmatpush1.msra.mxu0 %v161
    %834 = vmatprep.subr.mxu0 0.0
    %835 = vmatpush1.msra.mxu0 %v158
    %836 = vmatprep.subr.mxu0 0.0
    %837 = vmatpush1.msra.mxu0 %v155
    %838 = vmatprep.subr.mxu0 0.0
    %839 = vmatpush1.msra.mxu0 %v152
    %840 = vmatprep.subr.mxu0 0.0
    %841 = vmatpush1.msra.mxu0 %v149
    %842 = vmatprep.subr.mxu0 0.0
    %843 = vmatpush1.msra.mxu0 %v146
    %844 = vmatprep.subr.mxu0 0.0
    %845 = vmatpush1.msra.mxu0 %v143
    %846 = vmatprep.subr.mxu0 0.0
    %847 = vmatpush1.msra.mxu0 %v140
    %848 = vmatprep.subr.mxu0 0.0
    %849 = vmatpush1.msra.mxu0 %v137
    %850 = vmatprep.subr.mxu0 0.0
    %851 = vmatpush1.msra.mxu0 %v134
    %852 = vmatprep.subr.mxu0 0.0
    %853 = vmatpush1.msra.mxu0 %v131
    %854 = vmatprep.subr.mxu0 0.0
    %855 = vmatpush1.msra.mxu0 %v128
    %856 = vmatprep.subr.mxu0 0.0
    %857 = vmatpush1.msra.mxu0 %v125
    %858 = vmatprep.subr.mxu0 0.0
    %859 = vmatpush1.msra.mxu0 %v122
    %860 = vmatprep.subr.mxu0 0.0
    %861 = vmatpush1.msra.mxu0 %v119
    %862 = vmatprep.subr.mxu0 0.0
    %863 = vmatpush1.msra.mxu0 %v116
    %864 = vmatprep.subr.mxu0 0.0
    %865 = vmatpush2.msra.mxu0 %v209
    %866 = vmatprep.subr.mxu0 0.0
    %867 = vmatpush2.msra.mxu0 %v206
    %868 = vmatprep.subr.mxu0 0.0
    %869 = vmatpush2.msra.mxu0 %v203
    %870 = vmatprep.subr.mxu0 0.0
    %871 = vmatpush2.msra.mxu0 %v200
    %872 = vmatprep.subr.mxu0 0.0
    %873 = vmatpush2.msra.mxu0 %v197
    %874 = vmatprep.subr.mxu0 0.0
    %875 = vmatpush2.msra.mxu0 %v194
    %876 = vmatprep.subr.mxu0 0.0
    %877 = vmatpush2.msra.mxu0 %v191
    %878 = vmatprep.subr.mxu0 0.0
    %879 = vmatpush2.msra.mxu0 %v188
    %880 = vmatprep.subr.mxu0 0.0
    %881 = vmatpush2.msra.mxu0 %v185
    %882 = vmatprep.subr.mxu0 0.0
    %883 = vmatpush2.msra.mxu0 %v182
    %884 = vmatprep.subr.mxu0 0.0
    %885 = vmatpush2.msra.mxu0 %v179
    %886 = vmatprep.subr.mxu0 0.0
    %887 = vmatpush2.msra.mxu0 %v176
    %888 = vmatprep.subr.mxu0 0.0
    %889 = vmatpush2.msra.mxu0 %v173
    %890 = vmatprep.subr.mxu0 0.0
    %891 = vmatpush2.msra.mxu0 %v170
    %892 = vmatprep.subr.mxu0 0.0
    %893 = vmatpush2.msra.mxu0 %v167
    %894 = vmatprep.subr.mxu0 0.0
    %895 = vmatpush2.msra.mxu0 %v164
    %896 = vmatprep.mubr.f32.mxu0 %v227
    %897 = vmatmul.mubr.f32.gmra.mxu0 %v744
    %v898 = vpop.f32.mrf.mxu0
    %v899 = vadd.f32 %v757, %v898
    %v900 = vpop.f32.mrf.mxu0
    %901 = vdwg.mxu0
    %v902 = vmul.f32 %v828, 0.5
    %v903 = vtanh.pop %v902
    %v904 = vadd.f32 %v903, 1.0
    %v905 = vmul.f32 %v904, 0.5
    %v906 = vmul.f32 %v830, 0.5
    %v907 = vtanh.pop %v906
    %v908 = vadd.f32 %v907, 1.0
    %v909 = vmul.f32 %v908, 0.5
    %v910 = vmul.f32 %v909, %v227
    %911 = vmatprep.subr.mxu0 0.0
    %912 = vmatpush1.msra.mxu0 %v225
    %913 = vmatprep.subr.mxu0 0.0
    %914 = vmatpush1.msra.mxu0 %v224
    %915 = vmatprep.subr.mxu0 0.0
    %916 = vmatpush1.msra.mxu0 %v223
    %917 = vmatprep.subr.mxu0 0.0
    %918 = vmatpush1.msra.mxu0 %v222
    %919 = vmatprep.subr.mxu0 0.0
    %920 = vmatpush1.msra.mxu0 %v221
    %921 = vmatprep.subr.mxu0 0.0
    %922 = vmatpush1.msra.mxu0 %v220
    %923 = vmatprep.subr.mxu0 0.0
    %924 = vmatpush1.msra.mxu0 %v219
    %925 = vmatprep.subr.mxu0 0.0
    %926 = vmatpush1.msra.mxu0 %v218
    %927 = vmatprep.subr.mxu0 0.0
    %928 = vmatpush1.msra.mxu0 %v217
    %929 = vmatprep.subr.mxu0 0.0
    %930 = vmatpush1.msra.mxu0 %v216
    %931 = vmatprep.subr.mxu0 0.0
    %932 = vmatpush1.msra.mxu0 %v215
    %933 = vmatprep.subr.mxu0 0.0
    %934 = vmatpush1.msra.mxu0 %v214
    %935 = vmatprep.subr.mxu0 0.0
    %936 = vmatpush1.msra.mxu0 %v213
    %937 = vmatprep.subr.mxu0 0.0
    %938 = vmatpush1.msra.mxu0 %v212
    %939 = vmatprep.subr.mxu0 0.0
    %940 = vmatpush1.msra.mxu0 %v211
    %941 = vmatprep.subr.mxu0 0.0
    %942 = vmatpush1.msra.mxu0 %v210
    %943 = vmatprep.subr.mxu0 0.0
    %944 = vmatpush2.msra.mxu0 0.0
    %945 = vmatprep.subr.mxu0 0.0
    %946 = vmatpush2.msra.mxu0 0.0
    %947 = vmatprep.subr.mxu0 0.0
    %948 = vmatpush2.msra.mxu0 0.0
    %949 = vmatprep.subr.mxu0 0.0
    %950 = vmatpush2.msra.mxu0 0.0
    %951 = vmatprep.subr.mxu0 0.0
    %952 = vmatpush2.msra.mxu0 0.0
    %953 = vmatprep.subr.mxu0 0.0
    %954 = vmatpush2.msra.mxu0 0.0
    %955 = vmatprep.subr.mxu0 0.0
    %956 = vmatpush2.msra.mxu0 0.0
    %957 = vmatprep.subr.mxu0 0.0
    %958 = vmatpush2.msra.mxu0 0.0
    %959 = vmatprep.subr.mxu0 0.0
    %960 = vmatpush2.msra.mxu0 0.0
    %961 = vmatprep.subr.mxu0 0.0
    %962 = vmatpush2.msra.mxu0 0.0
    %963 = vmatprep.subr.mxu0 0.0
    %964 = vmatpush2.msra.mxu0 0.0
    %965 = vmatprep.subr.mxu0 0.0
    %966 = vmatpush2.msra.mxu0 0.0
    %967 = vmatprep.subr.mxu0 0.0
    %968 = vmatpush2.msra.mxu0 0.0
    %969 = vmatprep.subr.mxu0 0.0
    %970 = vmatpush2.msra.mxu0 0.0
    %971 = vmatprep.subr.mxu0 0.0
    %972 = vmatpush2.msra.mxu0 0.0
    %973 = vmatprep.subr.mxu0 0.0
    %974 = vmatpush2.msra.mxu0 0.0
    %975 = vmatprep.mubr.f32.mxu0 0.0
    %976 = vmatmul.mubr.f32.gmra.mxu0 %v910
    %v977 = vpop.f32.mrf.mxu0
    %v978 = vadd.f32 0.0, %v977
    %v979 = vpop.f32.mrf.mxu0
    %980 = vdwg.mxu0
    %v981 = vadd.f32 %v899, %v978
    %v982 = vtanh.pop %v981
    %v983 = vsub.f32 1.0, %v905
    %v984 = vmul.f32 %v983, %v227
    %v985 = vmul.f32 %v905, %v982
    %v986 = vadd.f32 %v984, %v985
    %987 = vst [vmem:[#allocation12] sm:$0x1] %v986
    %s988 = scalar_lea.vmem %s0, 8
    %v989 = vld [vmem:[%s988] sm:$0xff]
    %s990 = scalar_lea.vmem %s1, 8
    %v991 = vld [vmem:[%s990] sm:$0xff]
    %v993 = vsel %vm230, %v991, 0
    %995 = vmatprep.subr.mxu0 0.0
    %996 = vmatpush1.msra.mxu0 0.0
    %997 = vmatprep.subr.mxu0 0.0
    %998 = vmatpush1.msra.mxu0 0.0
    %999 = vmatprep.subr.mxu0 0.0
    %1000 = vmatpush1.msra.mxu0 0.0
    %1001 = vmatprep.subr.mxu0 0.0
    %1002 = vmatpush1.msra.mxu0 0.0
    %1003 = vmatprep.subr.mxu0 0.0
    %1004 = vmatpush1.msra.mxu0 0.0
    %1005 = vmatprep.subr.mxu0 0.0
    %1006 = vmatpush1.msra.mxu0 0.0
    %1007 = vmatprep.subr.mxu0 0.0
    %1008 = vmatpush1.msra.mxu0 0.0
    %1009 = vmatprep.subr.mxu0 0.0
    %1010 = vmatpush1.msra.mxu0 0.0
    %1011 = vmatprep.subr.mxu0 0.0
    %1012 = vmatpush1.msra.mxu0 0.0
    %1013 = vmatprep.subr.mxu0 0.0
    %1014 = vmatpush1.msra.mxu0 0.0
    %1015 = vmatprep.subr.mxu0 0.0
    %1016 = vmatpush1.msra.mxu0 0.0
    %1017 = vmatprep.subr.mxu0 0.0
    %1018 = vmatpush1.msra.mxu0 0.0
    %1019 = vmatprep.subr.mxu0 0.0
    %1020 = vmatpush1.msra.mxu0 0.0
    %1021 = vmatprep.subr.mxu0 0.0
    %1022 = vmatpush1.msra.mxu0 0.0
    %1023 = vmatprep.subr.mxu0 0.0
    %1024 = vmatpush1.msra.mxu0 0.0
    %1025 = vmatprep.subr.mxu0 0.0
    %1026 = vmatpush1.msra.mxu0 %v236
    %1027 = vmatprep.subr.mxu0 0.0
    %1028 = vmatpush2.msra.mxu0 0.0
    %1029 = vmatprep.subr.mxu0 0.0
    %1030 = vmatpush2.msra.mxu0 0.0
    %1031 = vmatprep.subr.mxu0 0.0
    %1032 = vmatpush2.msra.mxu0 0.0
    %1033 = vmatprep.subr.mxu0 0.0
    %1034 = vmatpush2.msra.mxu0 0.0
    %1035 = vmatprep.subr.mxu0 0.0
    %1036 = vmatpush2.msra.mxu0 0.0
    %1037 = vmatprep.subr.mxu0 0.0
    %1038 = vmatpush2.msra.mxu0 0.0
    %1039 = vmatprep.subr.mxu0 0.0
    %1040 = vmatpush2.msra.mxu0 0.0
    %1041 = vmatprep.subr.mxu0 0.0
    %1042 = vmatpush2.msra.mxu0 0.0
    %1043 = vmatprep.subr.mxu0 0.0
    %1044 = vmatpush2.msra.mxu0 0.0
    %1045 = vmatprep.subr.mxu0 0.0
    %1046 = vmatpush2.msra.mxu0 0.0
    %1047 = vmatprep.subr.mxu0 0.0
    %1048 = vmatpush2.msra.mxu0 0.0
    %1049 = vmatprep.subr.mxu0 0.0
    %1050 = vmatpush2.msra.mxu0 0.0
    %1051 = vmatprep.subr.mxu0 0.0
    %1052 = vmatpush2.msra.mxu0 0.0
    %1053 = vmatprep.subr.mxu0 0.0
    %1054 = vmatpush2.msra.mxu0 0.0
    %1055 = vmatprep.subr.mxu0 0.0
    %1056 = vmatpush2.msra.mxu0 0.0
    %1057 = vmatprep.subr.mxu0 0.0
    %1058 = vmatpush2.msra.mxu0 0.0
    %1059 = vmatprep.mubr.f32.mxu0 0.0
    %1060 = vmatmul.mubr.f32.gmra.mxu0 %v993
    %v1061 = vpop.f32.mrf.mxu0
    %v1062 = vadd.f32 0.0, %v1061
    %v1063 = vpop.f32.mrf.mxu0
    %1064 = vdwg.mxu0
    %v1066 = vsel %vm308, %v1062, 0
    %1068 = vmatprep.subr.mxu0 0.0
    %1069 = vmatpush1.msra.mxu0 0.0
    %1070 = vmatprep.subr.mxu0 0.0
    %1071 = vmatpush1.msra.mxu0 0.0
    %1072 = vmatprep.subr.mxu0 0.0
    %1073 = vmatpush1.msra.mxu0 0.0
    %1074 = vmatprep.subr.mxu0 0.0
    %1075 = vmatpush1.msra.mxu0 0.0
    %1076 = vmatprep.subr.mxu0 0.0
    %1077 = vmatpush1.msra.mxu0 0.0
    %1078 = vmatprep.subr.mxu0 0.0
    %1079 = vmatpush1.msra.mxu0 0.0
    %1080 = vmatprep.subr.mxu0 0.0
    %1081 = vmatpush1.msra.mxu0 0.0
    %1082 = vmatprep.subr.mxu0 0.0
    %1083 = vmatpush1.msra.mxu0 0.0
    %1084 = vmatprep.subr.mxu0 0.0
    %1085 = vmatpush1.msra.mxu0 0.0
    %1086 = vmatprep.subr.mxu0 0.0
    %1087 = vmatpush1.msra.mxu0 0.0
    %1088 = vmatprep.subr.mxu0 0.0
    %1089 = vmatpush1.msra.mxu0 0.0
    %1090 = vmatprep.subr.mxu0 0.0
    %1091 = vmatpush1.msra.mxu0 0.0
    %1092 = vmatprep.subr.mxu0 0.0
    %1093 = vmatpush1.msra.mxu0 0.0
    %1094 = vmatprep.subr.mxu0 0.0
    %1095 = vmatpush1.msra.mxu0 0.0
    %1096 = vmatprep.subr.mxu0 0.0
    %1097 = vmatpush1.msra.mxu0 %v109
    %1098 = vmatprep.subr.mxu0 0.0
    %1099 = vmatpush1.msra.mxu0 %v108
    %1100 = vmatprep.subr.mxu0 0.0
    %1101 = vmatpush2.msra.mxu0 0.0
    %1102 = vmatprep.subr.mxu0 0.0
    %1103 = vmatpush2.msra.mxu0 0.0
    %1104 = vmatprep.subr.mxu0 0.0
    %1105 = vmatpush2.msra.mxu0 0.0
    %1106 = vmatprep.subr.mxu0 0.0
    %1107 = vmatpush2.msra.mxu0 0.0
    %1108 = vmatprep.subr.mxu0 0.0
    %1109 = vmatpush2.msra.mxu0 0.0
    %1110 = vmatprep.subr.mxu0 0.0
    %1111 = vmatpush2.msra.mxu0 0.0
    %1112 = vmatprep.subr.mxu0 0.0
    %1113 = vmatpush2.msra.mxu0 0.0
    %1114 = vmatprep.subr.mxu0 0.0
    %1115 = vmatpush2.msra.mxu0 0.0
    %1116 = vmatprep.subr.mxu0 0.0
    %1117 = vmatpush2.msra.mxu0 0.0
    %1118 = vmatprep.subr.mxu0 0.0
    %1119 = vmatpush2.msra.mxu0 0.0
    %1120 = vmatprep.subr.mxu0 0.0
    %1121 = vmatpush2.msra.mxu0 0.0
    %1122 = vmatprep.subr.mxu0 0.0
    %1123 = vmatpush2.msra.mxu0 0.0
    %1124 = vmatprep.subr.mxu0 0.0
    %1125 = vmatpush2.msra.mxu0 0.0
    %1126 = vmatprep.subr.mxu0 0.0
    %1127 = vmatpush2.msra.mxu0 0.0
    %1128 = vmatprep.subr.mxu0 0.0
    %1129 = vmatpush2.msra.mxu0 0.0
    %1130 = vmatprep.subr.mxu0 0.0
    %1131 = vmatpush2.msra.mxu0 0.0
    %1132 = vmatprep.mubr.f32.mxu0 0.0
    %1133 = vmatmul.mubr.f32.gmra.mxu0 %v1066
    %v1134 = vpop.f32.mrf.mxu0
    %v1135 = vadd.f32 0.0, %v1134
    %v1136 = vpop.f32.mrf.mxu0
    %1137 = vdwg.mxu0
    %1138 = vmatprep.subr.mxu0 0.0
    %1139 = vmatpush1.xpose.msra.mxu0 0.0
    %1140 = vmatprep.subr.mxu0 0.0
    %1141 = vmatpush1.xpose.msra.mxu0 0.0
    %1142 = vmatprep.subr.mxu0 0.0
    %1143 = vmatpush1.xpose.msra.mxu0 0.0
    %1144 = vmatprep.subr.mxu0 0.0
    %1145 = vmatpush1.xpose.msra.mxu0 0.0
    %1146 = vmatprep.subr.mxu0 0.0
    %1147 = vmatpush1.xpose.msra.mxu0 0.0
    %1148 = vmatprep.subr.mxu0 0.0
    %1149 = vmatpush1.xpose.msra.mxu0 0.0
    %1150 = vmatprep.subr.mxu0 0.0
    %1151 = vmatpush1.xpose.msra.mxu0 0.0
    %1152 = vmatprep.subr.mxu0 0.0
    %1153 = vmatpush1.xpose.msra.mxu0 0.0
    %1154 = vmatprep.subr.mxu0 0.0
    %1155 = vmatpush1.xpose.msra.mxu0 0.0
    %1156 = vmatprep.subr.mxu0 0.0
    %1157 = vmatpush1.xpose.msra.mxu0 0.0
    %1158 = vmatprep.subr.mxu0 0.0
    %1159 = vmatpush1.xpose.msra.mxu0 0.0
    %1160 = vmatprep.subr.mxu0 0.0
    %1161 = vmatpush1.xpose.msra.mxu0 0.0
    %1162 = vmatprep.subr.mxu0 0.0
    %1163 = vmatpush1.xpose.msra.mxu0 0.0
    %1164 = vmatprep.subr.mxu0 0.0
    %1165 = vmatpush1.xpose.msra.mxu0 0.0
    %1166 = vmatprep.subr.mxu0 0.0
    %1167 = vmatpush1.xpose.msra.mxu0 0.0
    %1168 = vmatprep.subr.mxu0 0.0
    %1169 = vmatpush1.xpose.msra.mxu0 %v1066
    %1170 = vmatprep.subr.mxu0 0.0
    %1171 = vmatpush2.xpose.msra.mxu0 0.0
    %1172 = vmatprep.subr.mxu0 0.0
    %1173 = vmatpush2.xpose.msra.mxu0 0.0
    %1174 = vmatprep.subr.mxu0 0.0
    %1175 = vmatpush2.xpose.msra.mxu0 0.0
    %1176 = vmatprep.subr.mxu0 0.0
    %1177 = vmatpush2.xpose.msra.mxu0 0.0
    %1178 = vmatprep.subr.mxu0 0.0
    %1179 = vmatpush2.xpose.msra.mxu0 0.0
    %1180 = vmatprep.subr.mxu0 0.0
    %1181 = vmatpush2.xpose.msra.mxu0 0.0
    %1182 = vmatprep.subr.mxu0 0.0
    %1183 = vmatpush2.xpose.msra.mxu0 0.0
    %1184 = vmatprep.subr.mxu0 0.0
    %1185 = vmatpush2.xpose.msra.mxu0 0.0
    %1186 = vmatprep.subr.mxu0 0.0
    %1187 = vmatpush2.xpose.msra.mxu0 0.0
    %1188 = vmatprep.subr.mxu0 0.0
    %1189 = vmatpush2.xpose.msra.mxu0 0.0
    %1190 = vmatprep.subr.mxu0 0.0
    %1191 = vmatpush2.xpose.msra.mxu0 0.0
    %1192 = vmatprep.subr.mxu0 0.0
    %1193 = vmatpush2.xpose.msra.mxu0 0.0
    %1194 = vmatprep.subr.mxu0 0.0
    %1195 = vmatpush2.xpose.msra.mxu0 0.0
    %1196 = vmatprep.subr.mxu0 0.0
    %1197 = vmatpush2.xpose.msra.mxu0 0.0
    %1198 = vmatprep.subr.mxu0 0.0
    %1199 = vmatpush2.xpose.msra.mxu0 0.0
    %1200 = vmatprep.subr.mxu0 0.0
    %1201 = vmatpush2.xpose.msra.mxu0 0.0
    %1202 = vmatprep.mubr.f32.mxu0 0.0
    %1203 = vmatmul.mubr.f32.gmra.mxu0 %v383
    %v1204 = vpop.f32.mrf.mxu0
    %v1205 = vadd.f32 0.0, %v1204
    %v1206 = vpop.f32.mrf.mxu0
    %1207 = vdwg.mxu0
    %1209 = vset.pattern.permute.xlu0 0
    %1210 = vperm.xlu0 %1209, %v1135
    %v1211 = vpop.permute.xlu0 %1210
    %v1213 = vlaneseq
    %v1214 = vshrl.u32 %v1213, 7
    %v1215 = vsub.s32 0, %v1214
    %v1216 = vrot.slane %v1205, %v1215
    %v1217 = vadd.f32 %v1211, %v1216
    %vm1218 = vcmp.gt.f32.partialorder %v1217, 0.0
    %v1219 = vmul.f32 %v1217, 0.2
    %v1220 = vsel %vm1218, %v1217, %v1219
    %vm1221 = vcmp.gt.f32.partialorder %v989, 0.0
    %v1222 = vsel %vm1221, %v1220, -9e+15
    %v1223 = vsel %vm470, %v1222, -inf
    %1224 = vmax.xlane.f32.xlu0 %v1223
    %v1225 = vpop.xlane.xlu0 %1224
    %v1226 = vsub.f32 %v1222, %v1225
    %v1227 = vmul.f32 %v1226, 1.442695
    %v1228 = vpow.pop %v1227
    %v1229 = vsel %vm470, %v1228, 0.0
    %1230 = vadd.xlane.f32.xlu0 %v1229
    %v1231 = vpop.xlane.xlu0 %1230
    %v1232 = vrcp.pop %v1231
    %v1233 = vmul.f32 %v1228, %v1232
    %v1235 = vsel %vm470, %v1233, 0
    %1237 = vmatprep.subr.mxu0 0.0
    %1238 = vmatpush1.msra.mxu0 0.0
    %1239 = vmatprep.subr.mxu0 0.0
    %1240 = vmatpush1.msra.mxu0 0.0
    %1241 = vmatprep.subr.mxu0 0.0
    %1242 = vmatpush1.msra.mxu0 0.0
    %1243 = vmatprep.subr.mxu0 0.0
    %1244 = vmatpush1.msra.mxu0 0.0
    %1245 = vmatprep.subr.mxu0 0.0
    %1246 = vmatpush1.msra.mxu0 0.0
    %1247 = vmatprep.subr.mxu0 0.0
    %1248 = vmatpush1.msra.mxu0 0.0
    %1249 = vmatprep.subr.mxu0 0.0
    %1250 = vmatpush1.msra.mxu0 0.0
    %1251 = vmatprep.subr.mxu0 0.0
    %1252 = vmatpush1.msra.mxu0 0.0
    %1253 = vmatprep.subr.mxu0 0.0
    %1254 = vmatpush1.msra.mxu0 0.0
    %1255 = vmatprep.subr.mxu0 0.0
    %1256 = vmatpush1.msra.mxu0 0.0
    %1257 = vmatprep.subr.mxu0 0.0
    %1258 = vmatpush1.msra.mxu0 0.0
    %1259 = vmatprep.subr.mxu0 0.0
    %1260 = vmatpush1.msra.mxu0 0.0
    %1261 = vmatprep.subr.mxu0 0.0
    %1262 = vmatpush1.msra.mxu0 0.0
    %1263 = vmatprep.subr.mxu0 0.0
    %1264 = vmatpush1.msra.mxu0 0.0
    %1265 = vmatprep.subr.mxu0 0.0
    %1266 = vmatpush1.msra.mxu0 0.0
    %1267 = vmatprep.subr.mxu0 0.0
    %1268 = vmatpush1.msra.mxu0 %v1062
    %1269 = vmatprep.subr.mxu0 0.0
    %1270 = vmatpush2.msra.mxu0 0.0
    %1271 = vmatprep.subr.mxu0 0.0
    %1272 = vmatpush2.msra.mxu0 0.0
    %1273 = vmatprep.subr.mxu0 0.0
    %1274 = vmatpush2.msra.mxu0 0.0
    %1275 = vmatprep.subr.mxu0 0.0
    %1276 = vmatpush2.msra.mxu0 0.0
    %1277 = vmatprep.subr.mxu0 0.0
    %1278 = vmatpush2.msra.mxu0 0.0
    %1279 = vmatprep.subr.mxu0 0.0
    %1280 = vmatpush2.msra.mxu0 0.0
    %1281 = vmatprep.subr.mxu0 0.0
    %1282 = vmatpush2.msra.mxu0 0.0
    %1283 = vmatprep.subr.mxu0 0.0
    %1284 = vmatpush2.msra.mxu0 0.0
    %1285 = vmatprep.subr.mxu0 0.0
    %1286 = vmatpush2.msra.mxu0 0.0
    %1287 = vmatprep.subr.mxu0 0.0
    %1288 = vmatpush2.msra.mxu0 0.0
    %1289 = vmatprep.subr.mxu0 0.0
    %1290 = vmatpush2.msra.mxu0 0.0
    %1291 = vmatprep.subr.mxu0 0.0
    %1292 = vmatpush2.msra.mxu0 0.0
    %1293 = vmatprep.subr.mxu0 0.0
    %1294 = vmatpush2.msra.mxu0 0.0
    %1295 = vmatprep.subr.mxu0 0.0
    %1296 = vmatpush2.msra.mxu0 0.0
    %1297 = vmatprep.subr.mxu0 0.0
    %1298 = vmatpush2.msra.mxu0 0.0
    %1299 = vmatprep.subr.mxu0 0.0
    %1300 = vmatpush2.msra.mxu0 0.0
    %1301 = vmatprep.mubr.f32.mxu0 0.0
    %1302 = vmatmul.mubr.f32.gmra.mxu0 %v1235
    %v1303 = vpop.f32.mrf.mxu0
    %v1304 = vadd.f32 0.0, %v1303
    %v1305 = vpop.f32.mrf.mxu0
    %1306 = vdwg.mxu0
    %1307 = vset.pattern.permute.xlu0 1
    %1308 = vperm.xlu0 %1307, %v1135
    %v1309 = vpop.permute.xlu0 %1308
    %v1311 = vlaneseq
    %v1312 = vshrl.u32 %v1311, 7
    %v1313 = vsub.s32 1, %v1312
    %v1314 = vrot.slane %v1205, %v1313
    %v1315 = vadd.f32 %v1309, %v1314
    %vm1316 = vcmp.gt.f32.partialorder %v1315, 0.0
    %v1317 = vmul.f32 %v1315, 0.2
    %v1318 = vsel %vm1316, %v1315, %v1317
    %v1319 = vsel %vm1221, %v1318, -9e+15
    %v1320 = vsel %vm470, %v1319, -inf
    %1321 = vmax.xlane.f32.xlu0 %v1320
    %v1322 = vpop.xlane.xlu0 %1321
    %v1323 = vsub.f32 %v1319, %v1322
    %v1324 = vmul.f32 %v1323, 1.442695
    %v1325 = vpow.pop %v1324
    %v1326 = vsel %vm470, %v1325, 0.0
    %1327 = vadd.xlane.f32.xlu0 %v1326
    %v1328 = vpop.xlane.xlu0 %1327
    %v1329 = vrcp.pop %v1328
    %v1330 = vmul.f32 %v1325, %v1329
    %1331 = vrot.lane.b32.xlu0 %v1062, 120
    %v1332 = vpop.permute.xlu0 %1331
    %v1335 = vsel %vm470, %v1330, 0
    %1337 = vmatprep.subr.mxu0 0.0
    %1338 = vmatpush1.msra.mxu0 0.0
    %1339 = vmatprep.subr.mxu0 0.0
    %1340 = vmatpush1.msra.mxu0 0.0
    %1341 = vmatprep.subr.mxu0 0.0
    %1342 = vmatpush1.msra.mxu0 0.0
    %1343 = vmatprep.subr.mxu0 0.0
    %1344 = vmatpush1.msra.mxu0 0.0
    %1345 = vmatprep.subr.mxu0 0.0
    %1346 = vmatpush1.msra.mxu0 0.0
    %1347 = vmatprep.subr.mxu0 0.0
    %1348 = vmatpush1.msra.mxu0 0.0
    %1349 = vmatprep.subr.mxu0 0.0
    %1350 = vmatpush1.msra.mxu0 0.0
    %1351 = vmatprep.subr.mxu0 0.0
    %1352 = vmatpush1.msra.mxu0 0.0
    %1353 = vmatprep.subr.mxu0 0.0
    %1354 = vmatpush1.msra.mxu0 0.0
    %1355 = vmatprep.subr.mxu0 0.0
    %1356 = vmatpush1.msra.mxu0 0.0
    %1357 = vmatprep.subr.mxu0 0.0
    %1358 = vmatpush1.msra.mxu0 0.0
    %1359 = vmatprep.subr.mxu0 0.0
    %1360 = vmatpush1.msra.mxu0 0.0
    %1361 = vmatprep.subr.mxu0 0.0
    %1362 = vmatpush1.msra.mxu0 0.0
    %1363 = vmatprep.subr.mxu0 0.0
    %1364 = vmatpush1.msra.mxu0 0.0
    %1365 = vmatprep.subr.mxu0 0.0
    %1366 = vmatpush1.msra.mxu0 0.0
    %1367 = vmatprep.subr.mxu0 0.0
    %1368 = vmatpush1.msra.mxu0 %v1332
    %1369 = vmatprep.subr.mxu0 0.0
    %1370 = vmatpush2.msra.mxu0 0.0
    %1371 = vmatprep.subr.mxu0 0.0
    %1372 = vmatpush2.msra.mxu0 0.0
    %1373 = vmatprep.subr.mxu0 0.0
    %1374 = vmatpush2.msra.mxu0 0.0
    %1375 = vmatprep.subr.mxu0 0.0
    %1376 = vmatpush2.msra.mxu0 0.0
    %1377 = vmatprep.subr.mxu0 0.0
    %1378 = vmatpush2.msra.mxu0 0.0
    %1379 = vmatprep.subr.mxu0 0.0
    %1380 = vmatpush2.msra.mxu0 0.0
    %1381 = vmatprep.subr.mxu0 0.0
    %1382 = vmatpush2.msra.mxu0 0.0
    %1383 = vmatprep.subr.mxu0 0.0
    %1384 = vmatpush2.msra.mxu0 0.0
    %1385 = vmatprep.subr.mxu0 0.0
    %1386 = vmatpush2.msra.mxu0 0.0
    %1387 = vmatprep.subr.mxu0 0.0
    %1388 = vmatpush2.msra.mxu0 0.0
    %1389 = vmatprep.subr.mxu0 0.0
    %1390 = vmatpush2.msra.mxu0 0.0
    %1391 = vmatprep.subr.mxu0 0.0
    %1392 = vmatpush2.msra.mxu0 0.0
    %1393 = vmatprep.subr.mxu0 0.0
    %1394 = vmatpush2.msra.mxu0 0.0
    %1395 = vmatprep.subr.mxu0 0.0
    %1396 = vmatpush2.msra.mxu0 0.0
    %1397 = vmatprep.subr.mxu0 0.0
    %1398 = vmatpush2.msra.mxu0 0.0
    %1399 = vmatprep.subr.mxu0 0.0
    %1400 = vmatpush2.msra.mxu0 0.0
    %1401 = vmatprep.mubr.f32.mxu0 0.0
    %1402 = vmatmul.mubr.f32.gmra.mxu0 %v1335
    %v1403 = vpop.f32.mrf.mxu0
    %v1404 = vadd.f32 0.0, %v1403
    %v1405 = vpop.f32.mrf.mxu0
    %1406 = vdwg.mxu0
    %1408 = vrot.lane.b32.xlu0 %v1404, 8
    %v1409 = vpop.permute.xlu0 %1408
    %v1411 = vsel %vm470, %v1304, %v1409
    %vm1412 = vcmp.gt.f32.partialorder %v1411, 0.0
    %v1413 = vmul.f32 %v1411, 1.442695
    %v1414 = vpow.pop %v1413
    %v1415 = vsub.f32 %v1414, 1.0
    %v1416 = vsel %vm1412, %v1411, %v1415
    %v1418 = vsel %vm308, %v1416, 0
    %1420 = vmatprep.subr.mxu0 0.0
    %1421 = vmatpush1.msra.mxu0 0.0
    %1422 = vmatprep.subr.mxu0 0.0
    %1423 = vmatpush1.msra.mxu0 0.0
    %1424 = vmatprep.subr.mxu0 0.0
    %1425 = vmatpush1.msra.mxu0 0.0
    %1426 = vmatprep.subr.mxu0 0.0
    %1427 = vmatpush1.msra.mxu0 0.0
    %1428 = vmatprep.subr.mxu0 0.0
    %1429 = vmatpush1.msra.mxu0 0.0
    %1430 = vmatprep.subr.mxu0 0.0
    %1431 = vmatpush1.msra.mxu0 0.0
    %1432 = vmatprep.subr.mxu0 0.0
    %1433 = vmatpush1.msra.mxu0 0.0
    %1434 = vmatprep.subr.mxu0 0.0
    %1435 = vmatpush1.msra.mxu0 0.0
    %1436 = vmatprep.subr.mxu0 0.0
    %1437 = vmatpush1.msra.mxu0 0.0
    %1438 = vmatprep.subr.mxu0 0.0
    %1439 = vmatpush1.msra.mxu0 0.0
    %1440 = vmatprep.subr.mxu0 0.0
    %1441 = vmatpush1.msra.mxu0 0.0
    %1442 = vmatprep.subr.mxu0 0.0
    %1443 = vmatpush1.msra.mxu0 0.0
    %1444 = vmatprep.subr.mxu0 0.0
    %1445 = vmatpush1.msra.mxu0 0.0
    %1446 = vmatprep.subr.mxu0 0.0
    %1447 = vmatpush1.msra.mxu0 0.0
    %1448 = vmatprep.subr.mxu0 0.0
    %1449 = vmatpush1.msra.mxu0 %v112
    %1450 = vmatprep.subr.mxu0 0.0
    %1451 = vmatpush1.msra.mxu0 %v111
    %1452 = vmatprep.subr.mxu0 0.0
    %1453 = vmatpush2.msra.mxu0 0.0
    %1454 = vmatprep.subr.mxu0 0.0
    %1455 = vmatpush2.msra.mxu0 0.0
    %1456 = vmatprep.subr.mxu0 0.0
    %1457 = vmatpush2.msra.mxu0 0.0
    %1458 = vmatprep.subr.mxu0 0.0
    %1459 = vmatpush2.msra.mxu0 0.0
    %1460 = vmatprep.subr.mxu0 0.0
    %1461 = vmatpush2.msra.mxu0 0.0
    %1462 = vmatprep.subr.mxu0 0.0
    %1463 = vmatpush2.msra.mxu0 0.0
    %1464 = vmatprep.subr.mxu0 0.0
    %1465 = vmatpush2.msra.mxu0 0.0
    %1466 = vmatprep.subr.mxu0 0.0
    %1467 = vmatpush2.msra.mxu0 0.0
    %1468 = vmatprep.subr.mxu0 0.0
    %1469 = vmatpush2.msra.mxu0 0.0
    %1470 = vmatprep.subr.mxu0 0.0
    %1471 = vmatpush2.msra.mxu0 0.0
    %1472 = vmatprep.subr.mxu0 0.0
    %1473 = vmatpush2.msra.mxu0 0.0
    %1474 = vmatprep.subr.mxu0 0.0
    %1475 = vmatpush2.msra.mxu0 0.0
    %1476 = vmatprep.subr.mxu0 0.0
    %1477 = vmatpush2.msra.mxu0 0.0
    %1478 = vmatprep.subr.mxu0 0.0
    %1479 = vmatpush2.msra.mxu0 0.0
    %1480 = vmatprep.subr.mxu0 0.0
    %1481 = vmatpush2.msra.mxu0 0.0
    %1482 = vmatprep.subr.mxu0 0.0
    %1483 = vmatpush2.msra.mxu0 0.0
    %1484 = vmatprep.mubr.f32.mxu0 0.0
    %1485 = vmatmul.mubr.f32.gmra.mxu0 %v1418
    %v1486 = vpop.f32.mrf.mxu0
    %v1487 = vadd.f32 0.0, %v1486
    %v1488 = vpop.f32.mrf.mxu0
    %1489 = vdwg.mxu0
    %v1490 = vmul.f32 %v1487, %v113
    %v1491 = vrot.slane %v1490, 4
    %v1492 = vadd.f32 %v1490, %v1491
    %v1493 = vrot.slane %v1492, 2
    %v1494 = vadd.f32 %v1492, %v1493
    %v1495 = vrot.slane %v1494, 1
    %v1496 = vadd.f32 %v1494, %v1495
    %1497 = vmatprep.subr.mxu0 %v160
    %1498 = vmatpush1.msra.mxu0 %v159
    %1499 = vmatprep.subr.mxu0 %v157
    %1500 = vmatpush1.msra.mxu0 %v156
    %1501 = vmatprep.subr.mxu0 %v154
    %1502 = vmatpush1.msra.mxu0 %v153
    %1503 = vmatprep.subr.mxu0 %v151
    %1504 = vmatpush1.msra.mxu0 %v150
    %1505 = vmatprep.subr.mxu0 %v148
    %1506 = vmatpush1.msra.mxu0 %v147
    %1507 = vmatprep.subr.mxu0 %v145
    %1508 = vmatpush1.msra.mxu0 %v144
    %1509 = vmatprep.subr.mxu0 %v142
    %1510 = vmatpush1.msra.mxu0 %v141
    %1511 = vmatprep.subr.mxu0 %v139
    %1512 = vmatpush1.msra.mxu0 %v138
    %1513 = vmatprep.subr.mxu0 %v136
    %1514 = vmatpush1.msra.mxu0 %v135
    %1515 = vmatprep.subr.mxu0 %v133
    %1516 = vmatpush1.msra.mxu0 %v132
    %1517 = vmatprep.subr.mxu0 %v130
    %1518 = vmatpush1.msra.mxu0 %v129
    %1519 = vmatprep.subr.mxu0 %v127
    %1520 = vmatpush1.msra.mxu0 %v126
    %1521 = vmatprep.subr.mxu0 %v124
    %1522 = vmatpush1.msra.mxu0 %v123
    %1523 = vmatprep.subr.mxu0 %v121
    %1524 = vmatpush1.msra.mxu0 %v120
    %1525 = vmatprep.subr.mxu0 %v118
    %1526 = vmatpush1.msra.mxu0 %v117
    %1527 = vmatprep.subr.mxu0 %v115
    %1528 = vmatpush1.msra.mxu0 %v114
    %1529 = vmatprep.subr.mxu0 %v208
    %1530 = vmatpush2.msra.mxu0 %v207
    %1531 = vmatprep.subr.mxu0 %v205
    %1532 = vmatpush2.msra.mxu0 %v204
    %1533 = vmatprep.subr.mxu0 %v202
    %1534 = vmatpush2.msra.mxu0 %v201
    %1535 = vmatprep.subr.mxu0 %v199
    %1536 = vmatpush2.msra.mxu0 %v198
    %1537 = vmatprep.subr.mxu0 %v196
    %1538 = vmatpush2.msra.mxu0 %v195
    %1539 = vmatprep.subr.mxu0 %v193
    %1540 = vmatpush2.msra.mxu0 %v192
    %1541 = vmatprep.subr.mxu0 %v190
    %1542 = vmatpush2.msra.mxu0 %v189
    %1543 = vmatprep.subr.mxu0 %v187
    %1544 = vmatpush2.msra.mxu0 %v186
    %1545 = vmatprep.subr.mxu0 %v184
    %1546 = vmatpush2.msra.mxu0 %v183
    %1547 = vmatprep.subr.mxu0 %v181
    %1548 = vmatpush2.msra.mxu0 %v180
    %1549 = vmatprep.subr.mxu0 %v178
    %1550 = vmatpush2.msra.mxu0 %v177
    %1551 = vmatprep.subr.mxu0 %v175
    %1552 = vmatpush2.msra.mxu0 %v174
    %1553 = vmatprep.subr.mxu0 %v172
    %1554 = vmatpush2.msra.mxu0 %v171
    %1555 = vmatprep.subr.mxu0 %v169
    %1556 = vmatpush2.msra.mxu0 %v168
    %1557 = vmatprep.subr.mxu0 %v166
    %1558 = vmatpush2.msra.mxu0 %v165
    %1559 = vmatprep.subr.mxu0 %v163
    %1560 = vmatpush2.msra.mxu0 %v162
    %1561 = vmatprep.mubr.f32.mxu0 %v986
    %1562 = vmatmul.mubr.f32.gmra.mxu0 %v1496
    %v1563 = vpop.f32.mrf.mxu0
    %v1564 = vadd.f32 %v749, %v1563
    %v1565 = vpop.f32.mrf.mxu0
    %v1566 = vadd.f32 %v753, %v1565
    %1567 = vdwg.mxu0
    %1568 = vmatprep.subr.mxu0 0.0
    %1569 = vmatpush1.msra.mxu0 %v161
    %1570 = vmatprep.subr.mxu0 0.0
    %1571 = vmatpush1.msra.mxu0 %v158
    %1572 = vmatprep.subr.mxu0 0.0
    %1573 = vmatpush1.msra.mxu0 %v155
    %1574 = vmatprep.subr.mxu0 0.0
    %1575 = vmatpush1.msra.mxu0 %v152
    %1576 = vmatprep.subr.mxu0 0.0
    %1577 = vmatpush1.msra.mxu0 %v149
    %1578 = vmatprep.subr.mxu0 0.0
    %1579 = vmatpush1.msra.mxu0 %v146
    %1580 = vmatprep.subr.mxu0 0.0
    %1581 = vmatpush1.msra.mxu0 %v143
    %1582 = vmatprep.subr.mxu0 0.0
    %1583 = vmatpush1.msra.mxu0 %v140
    %1584 = vmatprep.subr.mxu0 0.0
    %1585 = vmatpush1.msra.mxu0 %v137
    %1586 = vmatprep.subr.mxu0 0.0
    %1587 = vmatpush1.msra.mxu0 %v134
    %1588 = vmatprep.subr.mxu0 0.0
    %1589 = vmatpush1.msra.mxu0 %v131
    %1590 = vmatprep.subr.mxu0 0.0
    %1591 = vmatpush1.msra.mxu0 %v128
    %1592 = vmatprep.subr.mxu0 0.0
    %1593 = vmatpush1.msra.mxu0 %v125
    %1594 = vmatprep.subr.mxu0 0.0
    %1595 = vmatpush1.msra.mxu0 %v122
    %1596 = vmatprep.subr.mxu0 0.0
    %1597 = vmatpush1.msra.mxu0 %v119
    %1598 = vmatprep.subr.mxu0 0.0
    %1599 = vmatpush1.msra.mxu0 %v116
    %1600 = vmatprep.subr.mxu0 0.0
    %1601 = vmatpush2.msra.mxu0 %v209
    %1602 = vmatprep.subr.mxu0 0.0
    %1603 = vmatpush2.msra.mxu0 %v206
    %1604 = vmatprep.subr.mxu0 0.0
    %1605 = vmatpush2.msra.mxu0 %v203
    %1606 = vmatprep.subr.mxu0 0.0
    %1607 = vmatpush2.msra.mxu0 %v200
    %1608 = vmatprep.subr.mxu0 0.0
    %1609 = vmatpush2.msra.mxu0 %v197
    %1610 = vmatprep.subr.mxu0 0.0
    %1611 = vmatpush2.msra.mxu0 %v194
    %1612 = vmatprep.subr.mxu0 0.0
    %1613 = vmatpush2.msra.mxu0 %v191
    %1614 = vmatprep.subr.mxu0 0.0
    %1615 = vmatpush2.msra.mxu0 %v188
    %1616 = vmatprep.subr.mxu0 0.0
    %1617 = vmatpush2.msra.mxu0 %v185
    %1618 = vmatprep.subr.mxu0 0.0
    %1619 = vmatpush2.msra.mxu0 %v182
    %1620 = vmatprep.subr.mxu0 0.0
    %1621 = vmatpush2.msra.mxu0 %v179
    %1622 = vmatprep.subr.mxu0 0.0
    %1623 = vmatpush2.msra.mxu0 %v176
    %1624 = vmatprep.subr.mxu0 0.0
    %1625 = vmatpush2.msra.mxu0 %v173
    %1626 = vmatprep.subr.mxu0 0.0
    %1627 = vmatpush2.msra.mxu0 %v170
    %1628 = vmatprep.subr.mxu0 0.0
    %1629 = vmatpush2.msra.mxu0 %v167
    %1630 = vmatprep.subr.mxu0 0.0
    %1631 = vmatpush2.msra.mxu0 %v164
    %1632 = vmatprep.mubr.f32.mxu0 %v986
    %1633 = vmatmul.mubr.f32.gmra.mxu0 %v1496
    %v1634 = vpop.f32.mrf.mxu0
    %v1635 = vadd.f32 %v757, %v1634
    %v1636 = vpop.f32.mrf.mxu0
    %1637 = vdwg.mxu0
    %v1638 = vmul.f32 %v1564, 0.5
    %v1639 = vtanh.pop %v1638
    %v1640 = vadd.f32 %v1639, 1.0
    %v1641 = vmul.f32 %v1640, 0.5
    %v1642 = vmul.f32 %v1566, 0.5
    %v1643 = vtanh.pop %v1642
    %v1644 = vadd.f32 %v1643, 1.0
    %v1645 = vmul.f32 %v1644, 0.5
    %v1646 = vmul.f32 %v1645, %v986
    %1647 = vmatprep.subr.mxu0 0.0
    %1648 = vmatpush1.msra.mxu0 %v225
    %1649 = vmatprep.subr.mxu0 0.0
    %1650 = vmatpush1.msra.mxu0 %v224
    %1651 = vmatprep.subr.mxu0 0.0
    %1652 = vmatpush1.msra.mxu0 %v223
    %1653 = vmatprep.subr.mxu0 0.0
    %1654 = vmatpush1.msra.mxu0 %v222
    %1655 = vmatprep.subr.mxu0 0.0
    %1656 = vmatpush1.msra.mxu0 %v221
    %1657 = vmatprep.subr.mxu0 0.0
    %1658 = vmatpush1.msra.mxu0 %v220
    %1659 = vmatprep.subr.mxu0 0.0
    %1660 = vmatpush1.msra.mxu0 %v219
    %1661 = vmatprep.subr.mxu0 0.0
    %1662 = vmatpush1.msra.mxu0 %v218
    %1663 = vmatprep.subr.mxu0 0.0
    %1664 = vmatpush1.msra.mxu0 %v217
    %1665 = vmatprep.subr.mxu0 0.0
    %1666 = vmatpush1.msra.mxu0 %v216
    %1667 = vmatprep.subr.mxu0 0.0
    %1668 = vmatpush1.msra.mxu0 %v215
    %1669 = vmatprep.subr.mxu0 0.0
    %1670 = vmatpush1.msra.mxu0 %v214
    %1671 = vmatprep.subr.mxu0 0.0
    %1672 = vmatpush1.msra.mxu0 %v213
    %1673 = vmatprep.subr.mxu0 0.0
    %1674 = vmatpush1.msra.mxu0 %v212
    %1675 = vmatprep.subr.mxu0 0.0
    %1676 = vmatpush1.msra.mxu0 %v211
    %1677 = vmatprep.subr.mxu0 0.0
    %1678 = vmatpush1.msra.mxu0 %v210
    %1679 = vmatprep.subr.mxu0 0.0
    %1680 = vmatpush2.msra.mxu0 0.0
    %1681 = vmatprep.subr.mxu0 0.0
    %1682 = vmatpush2.msra.mxu0 0.0
    %1683 = vmatprep.subr.mxu0 0.0
    %1684 = vmatpush2.msra.mxu0 0.0
    %1685 = vmatprep.subr.mxu0 0.0
    %1686 = vmatpush2.msra.mxu0 0.0
    %1687 = vmatprep.subr.mxu0 0.0
    %1688 = vmatpush2.msra.mxu0 0.0
    %1689 = vmatprep.subr.mxu0 0.0
    %1690 = vmatpush2.msra.mxu0 0.0
    %1691 = vmatprep.subr.mxu0 0.0
    %1692 = vmatpush2.msra.mxu0 0.0
    %1693 = vmatprep.subr.mxu0 0.0
    %1694 = vmatpush2.msra.mxu0 0.0
    %1695 = vmatprep.subr.mxu0 0.0
    %1696 = vmatpush2.msra.mxu0 0.0
    %1697 = vmatprep.subr.mxu0 0.0
    %1698 = vmatpush2.msra.mxu0 0.0
    %1699 = vmatprep.subr.mxu0 0.0
    %1700 = vmatpush2.msra.mxu0 0.0
    %1701 = vmatprep.subr.mxu0 0.0
    %1702 = vmatpush2.msra.mxu0 0.0
    %1703 = vmatprep.subr.mxu0 0.0
    %1704 = vmatpush2.msra.mxu0 0.0
    %1705 = vmatprep.subr.mxu0 0.0
    %1706 = vmatpush2.msra.mxu0 0.0
    %1707 = vmatprep.subr.mxu0 0.0
    %1708 = vmatpush2.msra.mxu0 0.0
    %1709 = vmatprep.subr.mxu0 0.0
    %1710 = vmatpush2.msra.mxu0 0.0
    %1711 = vmatprep.mubr.f32.mxu0 0.0
    %1712 = vmatmul.mubr.f32.gmra.mxu0 %v1646
    %v1713 = vpop.f32.mrf.mxu0
    %v1714 = vadd.f32 0.0, %v1713
    %v1715 = vpop.f32.mrf.mxu0
    %1716 = vdwg.mxu0
    %v1717 = vadd.f32 %v1635, %v1714
    %v1718 = vtanh.pop %v1717
    %v1719 = vsub.f32 1.0, %v1641
    %v1720 = vmul.f32 %v1719, %v986
    %v1721 = vmul.f32 %v1641, %v1718
    %v1722 = vadd.f32 %v1720, %v1721
    %1723 = vst [vmem:[#allocation12 + $0x1] sm:$0x1] %v1722
    %s1724 = scalar_lea.vmem %s0, 16
    %v1725 = vld [vmem:[%s1724] sm:$0xff]
    %s1726 = scalar_lea.vmem %s1, 16
    %v1727 = vld [vmem:[%s1726] sm:$0xff]
    %v1729 = vsel %vm230, %v1727, 0
    %1731 = vmatprep.subr.mxu0 0.0
    %1732 = vmatpush1.msra.mxu0 0.0
    %1733 = vmatprep.subr.mxu0 0.0
    %1734 = vmatpush1.msra.mxu0 0.0
    %1735 = vmatprep.subr.mxu0 0.0
    %1736 = vmatpush1.msra.mxu0 0.0
    %1737 = vmatprep.subr.mxu0 0.0
    %1738 = vmatpush1.msra.mxu0 0.0
    %1739 = vmatprep.subr.mxu0 0.0
    %1740 = vmatpush1.msra.mxu0 0.0
    %1741 = vmatprep.subr.mxu0 0.0
    %1742 = vmatpush1.msra.mxu0 0.0
    %1743 = vmatprep.subr.mxu0 0.0
    %1744 = vmatpush1.msra.mxu0 0.0
    %1745 = vmatprep.subr.mxu0 0.0
    %1746 = vmatpush1.msra.mxu0 0.0
    %1747 = vmatprep.subr.mxu0 0.0
    %1748 = vmatpush1.msra.mxu0 0.0
    %1749 = vmatprep.subr.mxu0 0.0
    %1750 = vmatpush1.msra.mxu0 0.0
    %1751 = vmatprep.subr.mxu0 0.0
    %1752 = vmatpush1.msra.mxu0 0.0
    %1753 = vmatprep.subr.mxu0 0.0
    %1754 = vmatpush1.msra.mxu0 0.0
    %1755 = vmatprep.subr.mxu0 0.0
    %1756 = vmatpush1.msra.mxu0 0.0
    %1757 = vmatprep.subr.mxu0 0.0
    %1758 = vmatpush1.msra.mxu0 0.0
    %1759 = vmatprep.subr.mxu0 0.0
    %1760 = vmatpush1.msra.mxu0 0.0
    %1761 = vmatprep.subr.mxu0 0.0
    %1762 = vmatpush1.msra.mxu0 %v236
    %1763 = vmatprep.subr.mxu0 0.0
    %1764 = vmatpush2.msra.mxu0 0.0
    %1765 = vmatprep.subr.mxu0 0.0
    %1766 = vmatpush2.msra.mxu0 0.0
    %1767 = vmatprep.subr.mxu0 0.0
    %1768 = vmatpush2.msra.mxu0 0.0
    %1769 = vmatprep.subr.mxu0 0.0
    %1770 = vmatpush2.msra.mxu0 0.0
    %1771 = vmatprep.subr.mxu0 0.0
    %1772 = vmatpush2.msra.mxu0 0.0
    %1773 = vmatprep.subr.mxu0 0.0
    %1774 = vmatpush2.msra.mxu0 0.0
    %1775 = vmatprep.subr.mxu0 0.0
    %1776 = vmatpush2.msra.mxu0 0.0
    %1777 = vmatprep.subr.mxu0 0.0
    %1778 = vmatpush2.msra.mxu0 0.0
    %1779 = vmatprep.subr.mxu0 0.0
    %1780 = vmatpush2.msra.mxu0 0.0
    %1781 = vmatprep.subr.mxu0 0.0
    %1782 = vmatpush2.msra.mxu0 0.0
    %1783 = vmatprep.subr.mxu0 0.0
    %1784 = vmatpush2.msra.mxu0 0.0
    %1785 = vmatprep.subr.mxu0 0.0
    %1786 = vmatpush2.msra.mxu0 0.0
    %1787 = vmatprep.subr.mxu0 0.0
    %1788 = vmatpush2.msra.mxu0 0.0
    %1789 = vmatprep.subr.mxu0 0.0
    %1790 = vmatpush2.msra.mxu0 0.0
    %1791 = vmatprep.subr.mxu0 0.0
    %1792 = vmatpush2.msra.mxu0 0.0
    %1793 = vmatprep.subr.mxu0 0.0
    %1794 = vmatpush2.msra.mxu0 0.0
    %1795 = vmatprep.mubr.f32.mxu0 0.0
    %1796 = vmatmul.mubr.f32.gmra.mxu0 %v1729
    %v1797 = vpop.f32.mrf.mxu0
    %v1798 = vadd.f32 0.0, %v1797
    %v1799 = vpop.f32.mrf.mxu0
    %1800 = vdwg.mxu0
    %v1802 = vsel %vm308, %v1798, 0
    %1804 = vmatprep.subr.mxu0 0.0
    %1805 = vmatpush1.msra.mxu0 0.0
    %1806 = vmatprep.subr.mxu0 0.0
    %1807 = vmatpush1.msra.mxu0 0.0
    %1808 = vmatprep.subr.mxu0 0.0
    %1809 = vmatpush1.msra.mxu0 0.0
    %1810 = vmatprep.subr.mxu0 0.0
    %1811 = vmatpush1.msra.mxu0 0.0
    %1812 = vmatprep.subr.mxu0 0.0
    %1813 = vmatpush1.msra.mxu0 0.0
    %1814 = vmatprep.subr.mxu0 0.0
    %1815 = vmatpush1.msra.mxu0 0.0
    %1816 = vmatprep.subr.mxu0 0.0
    %1817 = vmatpush1.msra.mxu0 0.0
    %1818 = vmatprep.subr.mxu0 0.0
    %1819 = vmatpush1.msra.mxu0 0.0
    %1820 = vmatprep.subr.mxu0 0.0
    %1821 = vmatpush1.msra.mxu0 0.0
    %1822 = vmatprep.subr.mxu0 0.0
    %1823 = vmatpush1.msra.mxu0 0.0
    %1824 = vmatprep.subr.mxu0 0.0
    %1825 = vmatpush1.msra.mxu0 0.0
    %1826 = vmatprep.subr.mxu0 0.0
    %1827 = vmatpush1.msra.mxu0 0.0
    %1828 = vmatprep.subr.mxu0 0.0
    %1829 = vmatpush1.msra.mxu0 0.0
    %1830 = vmatprep.subr.mxu0 0.0
    %1831 = vmatpush1.msra.mxu0 0.0
    %1832 = vmatprep.subr.mxu0 0.0
    %1833 = vmatpush1.msra.mxu0 %v109
    %1834 = vmatprep.subr.mxu0 0.0
    %1835 = vmatpush1.msra.mxu0 %v108
    %1836 = vmatprep.subr.mxu0 0.0
    %1837 = vmatpush2.msra.mxu0 0.0
    %1838 = vmatprep.subr.mxu0 0.0
    %1839 = vmatpush2.msra.mxu0 0.0
    %1840 = vmatprep.subr.mxu0 0.0
    %1841 = vmatpush2.msra.mxu0 0.0
    %1842 = vmatprep.subr.mxu0 0.0
    %1843 = vmatpush2.msra.mxu0 0.0
    %1844 = vmatprep.subr.mxu0 0.0
    %1845 = vmatpush2.msra.mxu0 0.0
    %1846 = vmatprep.subr.mxu0 0.0
    %1847 = vmatpush2.msra.mxu0 0.0
    %1848 = vmatprep.subr.mxu0 0.0
    %1849 = vmatpush2.msra.mxu0 0.0
    %1850 = vmatprep.subr.mxu0 0.0
    %1851 = vmatpush2.msra.mxu0 0.0
    %1852 = vmatprep.subr.mxu0 0.0
    %1853 = vmatpush2.msra.mxu0 0.0
    %1854 = vmatprep.subr.mxu0 0.0
    %1855 = vmatpush2.msra.mxu0 0.0
    %1856 = vmatprep.subr.mxu0 0.0
    %1857 = vmatpush2.msra.mxu0 0.0
    %1858 = vmatprep.subr.mxu0 0.0
    %1859 = vmatpush2.msra.mxu0 0.0
    %1860 = vmatprep.subr.mxu0 0.0
    %1861 = vmatpush2.msra.mxu0 0.0
    %1862 = vmatprep.subr.mxu0 0.0
    %1863 = vmatpush2.msra.mxu0 0.0
    %1864 = vmatprep.subr.mxu0 0.0
    %1865 = vmatpush2.msra.mxu0 0.0
    %1866 = vmatprep.subr.mxu0 0.0
    %1867 = vmatpush2.msra.mxu0 0.0
    %1868 = vmatprep.mubr.f32.mxu0 0.0
    %1869 = vmatmul.mubr.f32.gmra.mxu0 %v1802
    %v1870 = vpop.f32.mrf.mxu0
    %v1871 = vadd.f32 0.0, %v1870
    %v1872 = vpop.f32.mrf.mxu0
    %1873 = vdwg.mxu0
    %1874 = vmatprep.subr.mxu0 0.0
    %1875 = vmatpush1.xpose.msra.mxu0 0.0
    %1876 = vmatprep.subr.mxu0 0.0
    %1877 = vmatpush1.xpose.msra.mxu0 0.0
    %1878 = vmatprep.subr.mxu0 0.0
    %1879 = vmatpush1.xpose.msra.mxu0 0.0
    %1880 = vmatprep.subr.mxu0 0.0
    %1881 = vmatpush1.xpose.msra.mxu0 0.0
    %1882 = vmatprep.subr.mxu0 0.0
    %1883 = vmatpush1.xpose.msra.mxu0 0.0
    %1884 = vmatprep.subr.mxu0 0.0
    %1885 = vmatpush1.xpose.msra.mxu0 0.0
    %1886 = vmatprep.subr.mxu0 0.0
    %1887 = vmatpush1.xpose.msra.mxu0 0.0
    %1888 = vmatprep.subr.mxu0 0.0
    %1889 = vmatpush1.xpose.msra.mxu0 0.0
    %1890 = vmatprep.subr.mxu0 0.0
    %1891 = vmatpush1.xpose.msra.mxu0 0.0
    %1892 = vmatprep.subr.mxu0 0.0
    %1893 = vmatpush1.xpose.msra.mxu0 0.0
    %1894 = vmatprep.subr.mxu0 0.0
    %1895 = vmatpush1.xpose.msra.mxu0 0.0
    %1896 = vmatprep.subr.mxu0 0.0
    %1897 = vmatpush1.xpose.msra.mxu0 0.0
    %1898 = vmatprep.subr.mxu0 0.0
    %1899 = vmatpush1.xpose.msra.mxu0 0.0
    %1900 = vmatprep.subr.mxu0 0.0
    %1901 = vmatpush1.xpose.msra.mxu0 0.0
    %1902 = vmatprep.subr.mxu0 0.0
    %1903 = vmatpush1.xpose.msra.mxu0 0.0
    %1904 = vmatprep.subr.mxu0 0.0
    %1905 = vmatpush1.xpose.msra.mxu0 %v1802
    %1906 = vmatprep.subr.mxu0 0.0
    %1907 = vmatpush2.xpose.msra.mxu0 0.0
    %1908 = vmatprep.subr.mxu0 0.0
    %1909 = vmatpush2.xpose.msra.mxu0 0.0
    %1910 = vmatprep.subr.mxu0 0.0
    %1911 = vmatpush2.xpose.msra.mxu0 0.0
    %1912 = vmatprep.subr.mxu0 0.0
    %1913 = vmatpush2.xpose.msra.mxu0 0.0
    %1914 = vmatprep.subr.mxu0 0.0
    %1915 = vmatpush2.xpose.msra.mxu0 0.0
    %1916 = vmatprep.subr.mxu0 0.0
    %1917 = vmatpush2.xpose.msra.mxu0 0.0
    %1918 = vmatprep.subr.mxu0 0.0
    %1919 = vmatpush2.xpose.msra.mxu0 0.0
    %1920 = vmatprep.subr.mxu0 0.0
    %1921 = vmatpush2.xpose.msra.mxu0 0.0
    %1922 = vmatprep.subr.mxu0 0.0
    %1923 = vmatpush2.xpose.msra.mxu0 0.0
    %1924 = vmatprep.subr.mxu0 0.0
    %1925 = vmatpush2.xpose.msra.mxu0 0.0
    %1926 = vmatprep.subr.mxu0 0.0
    %1927 = vmatpush2.xpose.msra.mxu0 0.0
    %1928 = vmatprep.subr.mxu0 0.0
    %1929 = vmatpush2.xpose.msra.mxu0 0.0
    %1930 = vmatprep.subr.mxu0 0.0
    %1931 = vmatpush2.xpose.msra.mxu0 0.0
    %1932 = vmatprep.subr.mxu0 0.0
    %1933 = vmatpush2.xpose.msra.mxu0 0.0
    %1934 = vmatprep.subr.mxu0 0.0
    %1935 = vmatpush2.xpose.msra.mxu0 0.0
    %1936 = vmatprep.subr.mxu0 0.0
    %1937 = vmatpush2.xpose.msra.mxu0 0.0
    %1938 = vmatprep.mubr.f32.mxu0 0.0
    %1939 = vmatmul.mubr.f32.gmra.mxu0 %v383
    %v1940 = vpop.f32.mrf.mxu0
    %v1941 = vadd.f32 0.0, %v1940
    %v1942 = vpop.f32.mrf.mxu0
    %1943 = vdwg.mxu0
    %1945 = vset.pattern.permute.xlu0 0
    %1946 = vperm.xlu0 %1945, %v1871
    %v1947 = vpop.permute.xlu0 %1946
    %v1949 = vlaneseq
    %v1950 = vshrl.u32 %v1949, 7
    %v1951 = vsub.s32 0, %v1950
    %v1952 = vrot.slane %v1941, %v1951
    %v1953 = vadd.f32 %v1947, %v1952
    %vm1954 = vcmp.gt.f32.partialorder %v1953, 0.0
    %v1955 = vmul.f32 %v1953, 0.2
    %v1956 = vsel %vm1954, %v1953, %v1955
    %vm1957 = vcmp.gt.f32.partialorder %v1725, 0.0
    %v1958 = vsel %vm1957, %v1956, -9e+15
    %v1959 = vsel %vm470, %v1958, -inf
    %1960 = vmax.xlane.f32.xlu0 %v1959
    %v1961 = vpop.xlane.xlu0 %1960
    %v1962 = vsub.f32 %v1958, %v1961
    %v1963 = vmul.f32 %v1962, 1.442695
    %v1964 = vpow.pop %v1963
    %v1965 = vsel %vm470, %v1964, 0.0
    %1966 = vadd.xlane.f32.xlu0 %v1965
    %v1967 = vpop.xlane.xlu0 %1966
    %v1968 = vrcp.pop %v1967
    %v1969 = vmul.f32 %v1964, %v1968
    %v1971 = vsel %vm470, %v1969, 0
    %1973 = vmatprep.subr.mxu0 0.0
    %1974 = vmatpush1.msra.mxu0 0.0
    %1975 = vmatprep.subr.mxu0 0.0
    %1976 = vmatpush1.msra.mxu0 0.0
    %1977 = vmatprep.subr.mxu0 0.0
    %1978 = vmatpush1.msra.mxu0 0.0
    %1979 = vmatprep.subr.mxu0 0.0
    %1980 = vmatpush1.msra.mxu0 0.0
    %1981 = vmatprep.subr.mxu0 0.0
    %1982 = vmatpush1.msra.mxu0 0.0
    %1983 = vmatprep.subr.mxu0 0.0
    %1984 = vmatpush1.msra.mxu0 0.0
    %1985 = vmatprep.subr.mxu0 0.0
    %1986 = vmatpush1.msra.mxu0 0.0
    %1987 = vmatprep.subr.mxu0 0.0
    %1988 = vmatpush1.msra.mxu0 0.0
    %1989 = vmatprep.subr.mxu0 0.0
    %1990 = vmatpush1.msra.mxu0 0.0
    %1991 = vmatprep.subr.mxu0 0.0
    %1992 = vmatpush1.msra.mxu0 0.0
    %1993 = vmatprep.subr.mxu0 0.0
    %1994 = vmatpush1.msra.mxu0 0.0
    %1995 = vmatprep.subr.mxu0 0.0
    %1996 = vmatpush1.msra.mxu0 0.0
    %1997 = vmatprep.subr.mxu0 0.0
    %1998 = vmatpush1.msra.mxu0 0.0
    %1999 = vmatprep.subr.mxu0 0.0
    %2000 = vmatpush1.msra.mxu0 0.0
    %2001 = vmatprep.subr.mxu0 0.0
    %2002 = vmatpush1.msra.mxu0 0.0
    %2003 = vmatprep.subr.mxu0 0.0
    %2004 = vmatpush1.msra.mxu0 %v1798
    %2005 = vmatprep.subr.mxu0 0.0
    %2006 = vmatpush2.msra.mxu0 0.0
    %2007 = vmatprep.subr.mxu0 0.0
    %2008 = vmatpush2.msra.mxu0 0.0
    %2009 = vmatprep.subr.mxu0 0.0
    %2010 = vmatpush2.msra.mxu0 0.0
    %2011 = vmatprep.subr.mxu0 0.0
    %2012 = vmatpush2.msra.mxu0 0.0
    %2013 = vmatprep.subr.mxu0 0.0
    %2014 = vmatpush2.msra.mxu0 0.0
    %2015 = vmatprep.subr.mxu0 0.0
    %2016 = vmatpush2.msra.mxu0 0.0
    %2017 = vmatprep.subr.mxu0 0.0
    %2018 = vmatpush2.msra.mxu0 0.0
    %2019 = vmatprep.subr.mxu0 0.0
    %2020 = vmatpush2.msra.mxu0 0.0
    %2021 = vmatprep.subr.mxu0 0.0
    %2022 = vmatpush2.msra.mxu0 0.0
    %2023 = vmatprep.subr.mxu0 0.0
    %2024 = vmatpush2.msra.mxu0 0.0
    %2025 = vmatprep.subr.mxu0 0.0
    %2026 = vmatpush2.msra.mxu0 0.0
    %2027 = vmatprep.subr.mxu0 0.0
    %2028 = vmatpush2.msra.mxu0 0.0
    %2029 = vmatprep.subr.mxu0 0.0
    %2030 = vmatpush2.msra.mxu0 0.0
    %2031 = vmatprep.subr.mxu0 0.0
    %2032 = vmatpush2.msra.mxu0 0.0
    %2033 = vmatprep.subr.mxu0 0.0
    %2034 = vmatpush2.msra.mxu0 0.0
    %2035 = vmatprep.subr.mxu0 0.0
    %2036 = vmatpush2.msra.mxu0 0.0
    %2037 = vmatprep.mubr.f32.mxu0 0.0
    %2038 = vmatmul.mubr.f32.gmra.mxu0 %v1971
    %v2039 = vpop.f32.mrf.mxu0
    %v2040 = vadd.f32 0.0, %v2039
    %v2041 = vpop.f32.mrf.mxu0
    %2042 = vdwg.mxu0
    %2043 = vset.pattern.permute.xlu0 1
    %2044 = vperm.xlu0 %2043, %v1871
    %v2045 = vpop.permute.xlu0 %2044
    %v2047 = vlaneseq
    %v2048 = vshrl.u32 %v2047, 7
    %v2049 = vsub.s32 1, %v2048
    %v2050 = vrot.slane %v1941, %v2049
    %v2051 = vadd.f32 %v2045, %v2050
    %vm2052 = vcmp.gt.f32.partialorder %v2051, 0.0
    %v2053 = vmul.f32 %v2051, 0.2
    %v2054 = vsel %vm2052, %v2051, %v2053
    %v2055 = vsel %vm1957, %v2054, -9e+15
    %v2056 = vsel %vm470, %v2055, -inf
    %2057 = vmax.xlane.f32.xlu0 %v2056
    %v2058 = vpop.xlane.xlu0 %2057
    %v2059 = vsub.f32 %v2055, %v2058
    %v2060 = vmul.f32 %v2059, 1.442695
    %v2061 = vpow.pop %v2060
    %v2062 = vsel %vm470, %v2061, 0.0
    %2063 = vadd.xlane.f32.xlu0 %v2062
    %v2064 = vpop.xlane.xlu0 %2063
    %v2065 = vrcp.pop %v2064
    %v2066 = vmul.f32 %v2061, %v2065
    %2067 = vrot.lane.b32.xlu0 %v1798, 120
    %v2068 = vpop.permute.xlu0 %2067
    %v2071 = vsel %vm470, %v2066, 0
    %2073 = vmatprep.subr.mxu0 0.0
    %2074 = vmatpush1.msra.mxu0 0.0
    %2075 = vmatprep.subr.mxu0 0.0
    %2076 = vmatpush1.msra.mxu0 0.0
    %2077 = vmatprep.subr.mxu0 0.0
    %2078 = vmatpush1.msra.mxu0 0.0
    %2079 = vmatprep.subr.mxu0 0.0
    %2080 = vmatpush1.msra.mxu0 0.0
    %2081 = vmatprep.subr.mxu0 0.0
    %2082 = vmatpush1.msra.mxu0 0.0
    %2083 = vmatprep.subr.mxu0 0.0
    %2084 = vmatpush1.msra.mxu0 0.0
    %2085 = vmatprep.subr.mxu0 0.0
    %2086 = vmatpush1.msra.mxu0 0.0
    %2087 = vmatprep.subr.mxu0 0.0
    %2088 = vmatpush1.msra.mxu0 0.0
    %2089 = vmatprep.subr.mxu0 0.0
    %2090 = vmatpush1.msra.mxu0 0.0
    %2091 = vmatprep.subr.mxu0 0.0
    %2092 = vmatpush1.msra.mxu0 0.0
    %2093 = vmatprep.subr.mxu0 0.0
    %2094 = vmatpush1.msra.mxu0 0.0
    %2095 = vmatprep.subr.mxu0 0.0
    %2096 = vmatpush1.msra.mxu0 0.0
    %2097 = vmatprep.subr.mxu0 0.0
    %2098 = vmatpush1.msra.mxu0 0.0
    %2099 = vmatprep.subr.mxu0 0.0
    %2100 = vmatpush1.msra.mxu0 0.0
    %2101 = vmatprep.subr.mxu0 0.0
    %2102 = vmatpush1.msra.mxu0 0.0
    %2103 = vmatprep.subr.mxu0 0.0
    %2104 = vmatpush1.msra.mxu0 %v2068
    %2105 = vmatprep.subr.mxu0 0.0
    %2106 = vmatpush2.msra.mxu0 0.0
    %2107 = vmatprep.subr.mxu0 0.0
    %2108 = vmatpush2.msra.mxu0 0.0
    %2109 = vmatprep.subr.mxu0 0.0
    %2110 = vmatpush2.msra.mxu0 0.0
    %2111 = vmatprep.subr.mxu0 0.0
    %2112 = vmatpush2.msra.mxu0 0.0
    %2113 = vmatprep.subr.mxu0 0.0
    %2114 = vmatpush2.msra.mxu0 0.0
    %2115 = vmatprep.subr.mxu0 0.0
    %2116 = vmatpush2.msra.mxu0 0.0
    %2117 = vmatprep.subr.mxu0 0.0
    %2118 = vmatpush2.msra.mxu0 0.0
    %2119 = vmatprep.subr.mxu0 0.0
    %2120 = vmatpush2.msra.mxu0 0.0
    %2121 = vmatprep.subr.mxu0 0.0
    %2122 = vmatpush2.msra.mxu0 0.0
    %2123 = vmatprep.subr.mxu0 0.0
    %2124 = vmatpush2.msra.mxu0 0.0
    %2125 = vmatprep.subr.mxu0 0.0
    %2126 = vmatpush2.msra.mxu0 0.0
    %2127 = vmatprep.subr.mxu0 0.0
    %2128 = vmatpush2.msra.mxu0 0.0
    %2129 = vmatprep.subr.mxu0 0.0
    %2130 = vmatpush2.msra.mxu0 0.0
    %2131 = vmatprep.subr.mxu0 0.0
    %2132 = vmatpush2.msra.mxu0 0.0
    %2133 = vmatprep.subr.mxu0 0.0
    %2134 = vmatpush2.msra.mxu0 0.0
    %2135 = vmatprep.subr.mxu0 0.0
    %2136 = vmatpush2.msra.mxu0 0.0
    %2137 = vmatprep.mubr.f32.mxu0 0.0
    %2138 = vmatmul.mubr.f32.gmra.mxu0 %v2071
    %v2139 = vpop.f32.mrf.mxu0
    %v2140 = vadd.f32 0.0, %v2139
    %v2141 = vpop.f32.mrf.mxu0
    %2142 = vdwg.mxu0
    %2144 = vrot.lane.b32.xlu0 %v2140, 8
    %v2145 = vpop.permute.xlu0 %2144
    %v2147 = vsel %vm470, %v2040, %v2145
    %vm2148 = vcmp.gt.f32.partialorder %v2147, 0.0
    %v2149 = vmul.f32 %v2147, 1.442695
    %v2150 = vpow.pop %v2149
    %v2151 = vsub.f32 %v2150, 1.0
    %v2152 = vsel %vm2148, %v2147, %v2151
    %v2154 = vsel %vm308, %v2152, 0
    %2156 = vmatprep.subr.mxu0 0.0
    %2157 = vmatpush1.msra.mxu0 0.0
    %2158 = vmatprep.subr.mxu0 0.0
    %2159 = vmatpush1.msra.mxu0 0.0
    %2160 = vmatprep.subr.mxu0 0.0
    %2161 = vmatpush1.msra.mxu0 0.0
    %2162 = vmatprep.subr.mxu0 0.0
    %2163 = vmatpush1.msra.mxu0 0.0
    %2164 = vmatprep.subr.mxu0 0.0
    %2165 = vmatpush1.msra.mxu0 0.0
    %2166 = vmatprep.subr.mxu0 0.0
    %2167 = vmatpush1.msra.mxu0 0.0
    %2168 = vmatprep.subr.mxu0 0.0
    %2169 = vmatpush1.msra.mxu0 0.0
    %2170 = vmatprep.subr.mxu0 0.0
    %2171 = vmatpush1.msra.mxu0 0.0
    %2172 = vmatprep.subr.mxu0 0.0
    %2173 = vmatpush1.msra.mxu0 0.0
    %2174 = vmatprep.subr.mxu0 0.0
    %2175 = vmatpush1.msra.mxu0 0.0
    %2176 = vmatprep.subr.mxu0 0.0
    %2177 = vmatpush1.msra.mxu0 0.0
    %2178 = vmatprep.subr.mxu0 0.0
    %2179 = vmatpush1.msra.mxu0 0.0
    %2180 = vmatprep.subr.mxu0 0.0
    %2181 = vmatpush1.msra.mxu0 0.0
    %2182 = vmatprep.subr.mxu0 0.0
    %2183 = vmatpush1.msra.mxu0 0.0
    %2184 = vmatprep.subr.mxu0 0.0
    %2185 = vmatpush1.msra.mxu0 %v112
    %2186 = vmatprep.subr.mxu0 0.0
    %2187 = vmatpush1.msra.mxu0 %v111
    %2188 = vmatprep.subr.mxu0 0.0
    %2189 = vmatpush2.msra.mxu0 0.0
    %2190 = vmatprep.subr.mxu0 0.0
    %2191 = vmatpush2.msra.mxu0 0.0
    %2192 = vmatprep.subr.mxu0 0.0
    %2193 = vmatpush2.msra.mxu0 0.0
    %2194 = vmatprep.subr.mxu0 0.0
    %2195 = vmatpush2.msra.mxu0 0.0
    %2196 = vmatprep.subr.mxu0 0.0
    %2197 = vmatpush2.msra.mxu0 0.0
    %2198 = vmatprep.subr.mxu0 0.0
    %2199 = vmatpush2.msra.mxu0 0.0
    %2200 = vmatprep.subr.mxu0 0.0
    %2201 = vmatpush2.msra.mxu0 0.0
    %2202 = vmatprep.subr.mxu0 0.0
    %2203 = vmatpush2.msra.mxu0 0.0
    %2204 = vmatprep.subr.mxu0 0.0
    %2205 = vmatpush2.msra.mxu0 0.0
    %2206 = vmatprep.subr.mxu0 0.0
    %2207 = vmatpush2.msra.mxu0 0.0
    %2208 = vmatprep.subr.mxu0 0.0
    %2209 = vmatpush2.msra.mxu0 0.0
    %2210 = vmatprep.subr.mxu0 0.0
    %2211 = vmatpush2.msra.mxu0 0.0
    %2212 = vmatprep.subr.mxu0 0.0
    %2213 = vmatpush2.msra.mxu0 0.0
    %2214 = vmatprep.subr.mxu0 0.0
    %2215 = vmatpush2.msra.mxu0 0.0
    %2216 = vmatprep.subr.mxu0 0.0
    %2217 = vmatpush2.msra.mxu0 0.0
    %2218 = vmatprep.subr.mxu0 0.0
    %2219 = vmatpush2.msra.mxu0 0.0
    %2220 = vmatprep.mubr.f32.mxu0 0.0
    %2221 = vmatmul.mubr.f32.gmra.mxu0 %v2154
    %v2222 = vpop.f32.mrf.mxu0
    %v2223 = vadd.f32 0.0, %v2222
    %v2224 = vpop.f32.mrf.mxu0
    %2225 = vdwg.mxu0
    %v2226 = vmul.f32 %v2223, %v113
    %v2227 = vrot.slane %v2226, 4
    %v2228 = vadd.f32 %v2226, %v2227
    %v2229 = vrot.slane %v2228, 2
    %v2230 = vadd.f32 %v2228, %v2229
    %v2231 = vrot.slane %v2230, 1
    %v2232 = vadd.f32 %v2230, %v2231
    %2233 = vmatprep.subr.mxu0 %v160
    %2234 = vmatpush1.msra.mxu0 %v159
    %2235 = vmatprep.subr.mxu0 %v157
    %2236 = vmatpush1.msra.mxu0 %v156
    %2237 = vmatprep.subr.mxu0 %v154
    %2238 = vmatpush1.msra.mxu0 %v153
    %2239 = vmatprep.subr.mxu0 %v151
    %2240 = vmatpush1.msra.mxu0 %v150
    %2241 = vmatprep.subr.mxu0 %v148
    %2242 = vmatpush1.msra.mxu0 %v147
    %2243 = vmatprep.subr.mxu0 %v145
    %2244 = vmatpush1.msra.mxu0 %v144
    %2245 = vmatprep.subr.mxu0 %v142
    %2246 = vmatpush1.msra.mxu0 %v141
    %2247 = vmatprep.subr.mxu0 %v139
    %2248 = vmatpush1.msra.mxu0 %v138
    %2249 = vmatprep.subr.mxu0 %v136
    %2250 = vmatpush1.msra.mxu0 %v135
    %2251 = vmatprep.subr.mxu0 %v133
    %2252 = vmatpush1.msra.mxu0 %v132
    %2253 = vmatprep.subr.mxu0 %v130
    %2254 = vmatpush1.msra.mxu0 %v129
    %2255 = vmatprep.subr.mxu0 %v127
    %2256 = vmatpush1.msra.mxu0 %v126
    %2257 = vmatprep.subr.mxu0 %v124
    %2258 = vmatpush1.msra.mxu0 %v123
    %2259 = vmatprep.subr.mxu0 %v121
    %2260 = vmatpush1.msra.mxu0 %v120
    %2261 = vmatprep.subr.mxu0 %v118
    %2262 = vmatpush1.msra.mxu0 %v117
    %2263 = vmatprep.subr.mxu0 %v115
    %2264 = vmatpush1.msra.mxu0 %v114
    %2265 = vmatprep.subr.mxu0 %v208
    %2266 = vmatpush2.msra.mxu0 %v207
    %2267 = vmatprep.subr.mxu0 %v205
    %2268 = vmatpush2.msra.mxu0 %v204
    %2269 = vmatprep.subr.mxu0 %v202
    %2270 = vmatpush2.msra.mxu0 %v201
    %2271 = vmatprep.subr.mxu0 %v199
    %2272 = vmatpush2.msra.mxu0 %v198
    %2273 = vmatprep.subr.mxu0 %v196
    %2274 = vmatpush2.msra.mxu0 %v195
    %2275 = vmatprep.subr.mxu0 %v193
    %2276 = vmatpush2.msra.mxu0 %v192
    %2277 = vmatprep.subr.mxu0 %v190
    %2278 = vmatpush2.msra.mxu0 %v189
    %2279 = vmatprep.subr.mxu0 %v187
    %2280 = vmatpush2.msra.mxu0 %v186
    %2281 = vmatprep.subr.mxu0 %v184
    %2282 = vmatpush2.msra.mxu0 %v183
    %2283 = vmatprep.subr.mxu0 %v181
    %2284 = vmatpush2.msra.mxu0 %v180
    %2285 = vmatprep.subr.mxu0 %v178
    %2286 = vmatpush2.msra.mxu0 %v177
    %2287 = vmatprep.subr.mxu0 %v175
    %2288 = vmatpush2.msra.mxu0 %v174
    %2289 = vmatprep.subr.mxu0 %v172
    %2290 = vmatpush2.msra.mxu0 %v171
    %2291 = vmatprep.subr.mxu0 %v169
    %2292 = vmatpush2.msra.mxu0 %v168
    %2293 = vmatprep.subr.mxu0 %v166
    %2294 = vmatpush2.msra.mxu0 %v165
    %2295 = vmatprep.subr.mxu0 %v163
    %2296 = vmatpush2.msra.mxu0 %v162
    %2297 = vmatprep.mubr.f32.mxu0 %v1722
    %2298 = vmatmul.mubr.f32.gmra.mxu0 %v2232
    %v2299 = vpop.f32.mrf.mxu0
    %v2300 = vadd.f32 %v749, %v2299
    %v2301 = vpop.f32.mrf.mxu0
    %v2302 = vadd.f32 %v753, %v2301
    %2303 = vdwg.mxu0
    %2304 = vmatprep.subr.mxu0 0.0
    %2305 = vmatpush1.msra.mxu0 %v161
    %2306 = vmatprep.subr.mxu0 0.0
    %2307 = vmatpush1.msra.mxu0 %v158
    %2308 = vmatprep.subr.mxu0 0.0
    %2309 = vmatpush1.msra.mxu0 %v155
    %2310 = vmatprep.subr.mxu0 0.0
    %2311 = vmatpush1.msra.mxu0 %v152
    %2312 = vmatprep.subr.mxu0 0.0
    %2313 = vmatpush1.msra.mxu0 %v149
    %2314 = vmatprep.subr.mxu0 0.0
    %2315 = vmatpush1.msra.mxu0 %v146
    %2316 = vmatprep.subr.mxu0 0.0
    %2317 = vmatpush1.msra.mxu0 %v143
    %2318 = vmatprep.subr.mxu0 0.0
    %2319 = vmatpush1.msra.mxu0 %v140
    %2320 = vmatprep.subr.mxu0 0.0
    %2321 = vmatpush1.msra.mxu0 %v137
    %2322 = vmatprep.subr.mxu0 0.0
    %2323 = vmatpush1.msra.mxu0 %v134
    %2324 = vmatprep.subr.mxu0 0.0
    %2325 = vmatpush1.msra.mxu0 %v131
    %2326 = vmatprep.subr.mxu0 0.0
    %2327 = vmatpush1.msra.mxu0 %v128
    %2328 = vmatprep.subr.mxu0 0.0
    %2329 = vmatpush1.msra.mxu0 %v125
    %2330 = vmatprep.subr.mxu0 0.0
    %2331 = vmatpush1.msra.mxu0 %v122
    %2332 = vmatprep.subr.mxu0 0.0
    %2333 = vmatpush1.msra.mxu0 %v119
    %2334 = vmatprep.subr.mxu0 0.0
    %2335 = vmatpush1.msra.mxu0 %v116
    %2336 = vmatprep.subr.mxu0 0.0
    %2337 = vmatpush2.msra.mxu0 %v209
    %2338 = vmatprep.subr.mxu0 0.0
    %2339 = vmatpush2.msra.mxu0 %v206
    %2340 = vmatprep.subr.mxu0 0.0
    %2341 = vmatpush2.msra.mxu0 %v203
    %2342 = vmatprep.subr.mxu0 0.0
    %2343 = vmatpush2.msra.mxu0 %v200
    %2344 = vmatprep.subr.mxu0 0.0
    %2345 = vmatpush2.msra.mxu0 %v197
    %2346 = vmatprep.subr.mxu0 0.0
    %2347 = vmatpush2.msra.mxu0 %v194
    %2348 = vmatprep.subr.mxu0 0.0
    %2349 = vmatpush2.msra.mxu0 %v191
    %2350 = vmatprep.subr.mxu0 0.0
    %2351 = vmatpush2.msra.mxu0 %v188
    %2352 = vmatprep.subr.mxu0 0.0
    %2353 = vmatpush2.msra.mxu0 %v185
    %2354 = vmatprep.subr.mxu0 0.0
    %2355 = vmatpush2.msra.mxu0 %v182
    %2356 = vmatprep.subr.mxu0 0.0
    %2357 = vmatpush2.msra.mxu0 %v179
    %2358 = vmatprep.subr.mxu0 0.0
    %2359 = vmatpush2.msra.mxu0 %v176
    %2360 = vmatprep.subr.mxu0 0.0
    %2361 = vmatpush2.msra.mxu0 %v173
    %2362 = vmatprep.subr.mxu0 0.0
    %2363 = vmatpush2.msra.mxu0 %v170
    %2364 = vmatprep.subr.mxu0 0.0
    %2365 = vmatpush2.msra.mxu0 %v167
    %2366 = vmatprep.subr.mxu0 0.0
    %2367 = vmatpush2.msra.mxu0 %v164
    %2368 = vmatprep.mubr.f32.mxu0 %v1722
    %2369 = vmatmul.mubr.f32.gmra.mxu0 %v2232
    %v2370 = vpop.f32.mrf.mxu0
    %v2371 = vadd.f32 %v757, %v2370
    %v2372 = vpop.f32.mrf.mxu0
    %2373 = vdwg.mxu0
    %v2374 = vmul.f32 %v2300, 0.5
    %v2375 = vtanh.pop %v2374
    %v2376 = vadd.f32 %v2375, 1.0
    %v2377 = vmul.f32 %v2376, 0.5
    %v2378 = vmul.f32 %v2302, 0.5
    %v2379 = vtanh.pop %v2378
    %v2380 = vadd.f32 %v2379, 1.0
    %v2381 = vmul.f32 %v2380, 0.5
    %v2382 = vmul.f32 %v2381, %v1722
    %2383 = vmatprep.subr.mxu0 0.0
    %2384 = vmatpush1.msra.mxu0 %v225
    %2385 = vmatprep.subr.mxu0 0.0
    %2386 = vmatpush1.msra.mxu0 %v224
    %2387 = vmatprep.subr.mxu0 0.0
    %2388 = vmatpush1.msra.mxu0 %v223
    %2389 = vmatprep.subr.mxu0 0.0
    %2390 = vmatpush1.msra.mxu0 %v222
    %2391 = vmatprep.subr.mxu0 0.0
    %2392 = vmatpush1.msra.mxu0 %v221
    %2393 = vmatprep.subr.mxu0 0.0
    %2394 = vmatpush1.msra.mxu0 %v220
    %2395 = vmatprep.subr.mxu0 0.0
    %2396 = vmatpush1.msra.mxu0 %v219
    %2397 = vmatprep.subr.mxu0 0.0
    %2398 = vmatpush1.msra.mxu0 %v218
    %2399 = vmatprep.subr.mxu0 0.0
    %2400 = vmatpush1.msra.mxu0 %v217
    %2401 = vmatprep.subr.mxu0 0.0
    %2402 = vmatpush1.msra.mxu0 %v216
    %2403 = vmatprep.subr.mxu0 0.0
    %2404 = vmatpush1.msra.mxu0 %v215
    %2405 = vmatprep.subr.mxu0 0.0
    %2406 = vmatpush1.msra.mxu0 %v214
    %2407 = vmatprep.subr.mxu0 0.0
    %2408 = vmatpush1.msra.mxu0 %v213
    %2409 = vmatprep.subr.mxu0 0.0
    %2410 = vmatpush1.msra.mxu0 %v212
    %2411 = vmatprep.subr.mxu0 0.0
    %2412 = vmatpush1.msra.mxu0 %v211
    %2413 = vmatprep.subr.mxu0 0.0
    %2414 = vmatpush1.msra.mxu0 %v210
    %2415 = vmatprep.subr.mxu0 0.0
    %2416 = vmatpush2.msra.mxu0 0.0
    %2417 = vmatprep.subr.mxu0 0.0
    %2418 = vmatpush2.msra.mxu0 0.0
    %2419 = vmatprep.subr.mxu0 0.0
    %2420 = vmatpush2.msra.mxu0 0.0
    %2421 = vmatprep.subr.mxu0 0.0
    %2422 = vmatpush2.msra.mxu0 0.0
    %2423 = vmatprep.subr.mxu0 0.0
    %2424 = vmatpush2.msra.mxu0 0.0
    %2425 = vmatprep.subr.mxu0 0.0
    %2426 = vmatpush2.msra.mxu0 0.0
    %2427 = vmatprep.subr.mxu0 0.0
    %2428 = vmatpush2.msra.mxu0 0.0
    %2429 = vmatprep.subr.mxu0 0.0
    %2430 = vmatpush2.msra.mxu0 0.0
    %2431 = vmatprep.subr.mxu0 0.0
    %2432 = vmatpush2.msra.mxu0 0.0
    %2433 = vmatprep.subr.mxu0 0.0
    %2434 = vmatpush2.msra.mxu0 0.0
    %2435 = vmatprep.subr.mxu0 0.0
    %2436 = vmatpush2.msra.mxu0 0.0
    %2437 = vmatprep.subr.mxu0 0.0
    %2438 = vmatpush2.msra.mxu0 0.0
    %2439 = vmatprep.subr.mxu0 0.0
    %2440 = vmatpush2.msra.mxu0 0.0
    %2441 = vmatprep.subr.mxu0 0.0
    %2442 = vmatpush2.msra.mxu0 0.0
    %2443 = vmatprep.subr.mxu0 0.0
    %2444 = vmatpush2.msra.mxu0 0.0
    %2445 = vmatprep.subr.mxu0 0.0
    %2446 = vmatpush2.msra.mxu0 0.0
    %2447 = vmatprep.mubr.f32.mxu0 0.0
    %2448 = vmatmul.mubr.f32.gmra.mxu0 %v2382
    %v2449 = vpop.f32.mrf.mxu0
    %v2450 = vadd.f32 0.0, %v2449
    %v2451 = vpop.f32.mrf.mxu0
    %2452 = vdwg.mxu0
    %v2453 = vadd.f32 %v2371, %v2450
    %v2454 = vtanh.pop %v2453
    %v2455 = vsub.f32 1.0, %v2377
    %v2456 = vmul.f32 %v2455, %v1722
    %v2457 = vmul.f32 %v2377, %v2454
    %v2458 = vadd.f32 %v2456, %v2457
    %2459 = vst [vmem:[#allocation12 + $0x2] sm:$0x1] %v2458
    %2460 = vst [vmem:[#allocation2] sm:$0x1] %v2458
    // Predicated region
    $region70: #{tpu_custom_call.1} parent=1 // pred_check
      _
    $region71: #{tpu_custom_call.1} parent=1 // pred_check_branch
      %2462 = sbr.rel (0) target = $region73
    $region72: #{tpu_custom_call.1} parent=1 // pred_region
      %s2464 = ssub.s32 64, 64
      %2465 = vsyncadd [#allocation5], %s2464
      %s2467 = sshll.u32 [#allocation12], 4
      %s2468 = int_to_ptr.vmem [resolvable:$true] %s2467
      %2470 = dma.vmem_to_hbm [thread:$0]  %s2468, 64, %s11, [#allocation5]
    $region73: #{tpu_custom_call.1} parent=1 // pred_fallthru
      _
    // Predicated region
    $region74: #{tpu_custom_call.1} parent=1 // pred_check
      _
    $region75: #{tpu_custom_call.1} parent=1 // pred_check_branch
      %2472 = sbr.rel (0) target = $region77
    $region76: #{tpu_custom_call.1} parent=1 // pred_region
      %2473 = dma.done [#allocation5], 64
    $region77: #{tpu_custom_call.1} parent=1 // pred_fallthru
      _
    %2474 = vsyncpa [#allocation4], 1
    %2475 = vsyncpa [#allocation7], 1
    %2476 = vsyncpa [#allocation10], 1
    %2477 = vsyncpa [#allocation5], 1

</llo_original>
